<compile_context>
chip_gen: v7x
topology: tpu7x:2x2x1
jax: 0.10.0
libtpu: 0.0.40
codegen_flags: <defaults>
</compile_context>

<pallas_src>
import math
import functools

import jax
import jax.numpy as jnp
from jax.experimental import pallas as pl
from jax.experimental.pallas import tpu as pltpu


# ----------------------------------------------------------------------------
# shared math helpers (usable both inside kernels and in the pure-JAX reference)
# ----------------------------------------------------------------------------
def _layer_norm(x, gamma, beta, eps):
    mu = jnp.mean(x, axis=-1, keepdims=True)
    var = jnp.mean((x - mu) ** 2, axis=-1, keepdims=True)
    return (x - mu) * jax.lax.rsqrt(var + eps) * gamma + beta


def sinusoidal_pe(seq_len, d_model):
    pos = jnp.arange(seq_len, dtype=jnp.float32)[:, None]
    div = jnp.exp(jnp.arange(0, d_model, 2, dtype=jnp.float32)
                  * (-math.log(10000.0) / d_model))
    pe = jnp.zeros((seq_len, d_model), jnp.float32)
    pe = pe.at[:, 0::2].set(jnp.sin(pos * div))
    pe = pe.at[:, 1::2].set(jnp.cos(pos * div))
    return pe


# ----------------------------------------------------------------------------
# Pallas kernel: the full encoder, grid = (batch_blocks, layer), layer innermost
# ----------------------------------------------------------------------------
def _encoder_kernel(x_ref, mask_ref, fg_ref, fb_ref,
                    wqkv_ref, bqkv_ref, wo_ref, bo_ref, g1_ref, be1_ref,
                    w1_ref, bf1_ref, w2_ref, bf2_ref, g2_ref, be2_ref,
                    o_ref, pool_ref, *, num_heads, d_k, batch_block):
    l = pl.program_id(1)
    last_l = pl.num_programs(1) - 1
    H, dk = num_heads, d_k
    D = H * dk
    scale = 1.0 / math.sqrt(dk)

    # layer 0: seed the carried activation.  o_ref's block index does not depend on
    # the layer axis, so the output block stays resident in VMEM across layers and
    # acts as the carried state (no extra scratch, one HBM writeback per batch block).
    @pl.when(l == 0)
    def _():
        o_ref[...] = x_ref[...]

    # per-layer weights (streamed / double-buffered by the BlockSpec pipeline)
    wqkv, bqkv = wqkv_ref[...], bqkv_ref[...]
    wo, bo = wo_ref[...], bo_ref[...]
    g1, be1 = g1_ref[...], be1_ref[...]
    w1, bf1 = w1_ref[...], bf1_ref[...]
    w2, bf2 = w2_ref[...], bf2_ref[...]
    g2, be2 = g2_ref[...], be2_ref[...]

    # static loop over the Bt sequences of this batch block: the layer's weights stay
    # resident while being reused Bt times (amortizes per-layer weight DMA, the main
    # bandwidth cost on v6e with the layer axis innermost).
    for bt in range(batch_block):
        x = o_ref[bt]                                    # (S, D) f32 carried state
        mrow = mask_ref[bt]                              # (1, S) f32, 1 = valid token
        key_is_valid = mrow > 0.5                        # hoisted once per layer/seq

        # ---- fused QKV: one full-width (S,D)@(D,3D) MXU matmul ------------------
        xb = x.astype(jnp.bfloat16)
        qkv = jnp.dot(xb, wqkv, preferred_element_type=jnp.float32) + bqkv
        q = qkv[:, :D] * scale                           # fold 1/sqrt(dk) into Q
        k = qkv[:, D:2 * D]
        v = qkv[:, 2 * D:]
        qb = q.astype(jnp.bfloat16)
        kb = k.astype(jnp.bfloat16)
        vb = v.astype(jnp.bfloat16)

        # ---- per-head scores / softmax / PV (2-D matmuls; one (S,S) block live
        # at a time keeps VMEM residency small) ----------------------------------
        ctx_parts = []
        for h in range(H):
            sl = slice(h * dk, (h + 1) * dk)
            s = jnp.einsum('qf,kf->qk', qb[:, sl], kb[:, sl],
                           preferred_element_type=jnp.float32)
            # replicate torch: scores.masked_fill(extended_mask == 0, -1e9);
            # the extended mask is 0 exactly where attention_mask == 1 (valid keys)
            s = jnp.where(key_is_valid, -1.0e9, s)
            m = jnp.max(s, axis=-1, keepdims=True)
            p = jnp.exp(s - m)
            p = p * pl.reciprocal(jnp.sum(p, axis=-1, keepdims=True), approx=True)
            ctx_parts.append(jnp.dot(p.astype(jnp.bfloat16), vb[:, sl],
                                     preferred_element_type=jnp.float32))
        ctx = jnp.concatenate(ctx_parts, axis=-1)        # (S, D): head merge in lanes

        # ---- output projection: one full-width (S,D)@(D,D) matmul (head reduction
        # happens inside the MXU contraction), then post-LN residual ---------------
        attn = jnp.dot(ctx.astype(jnp.bfloat16), wo,
                       preferred_element_type=jnp.float32) + bo
        attn = _layer_norm(attn + x, g1, be1, 1e-5)

        # ---- feed-forward (ReLU), post-LN residual ------------------------------
        h1 = jnp.dot(attn.astype(jnp.bfloat16), w1,
                     preferred_element_type=jnp.float32) + bf1
        h1 = jnp.maximum(h1, 0.0)
        ff = jnp.dot(h1.astype(jnp.bfloat16), w2,
                     preferred_element_type=jnp.float32) + bf2
        y = _layer_norm(ff + attn, g2, be2, 1e-5)
        o_ref[bt] = y                                    # carried state update

        # ---- last layer: fused final LayerNorm (eps=1e-12) + masked mean pooling
        @pl.when(l == last_l)
        def _():
            yn = _layer_norm(y, fg_ref[...], fb_ref[...], 1e-12)
            o_ref[bt] = yn                               # last_hidden_state
            se = jnp.dot(mrow, yn, preferred_element_type=jnp.float32)   # (1, D) MXU
            sm = jnp.maximum(jnp.sum(mrow, axis=-1, keepdims=True), 1e-9)
            pool_ref[bt] = se / sm


# ----------------------------------------------------------------------------
# host-side packing / wrapper
# ----------------------------------------------------------------------------
def pack_params(blocks):
    """Stack per-layer params on a leading layer axis; fuse wq|wk|wv into one
    lane-dense (D, 3D) weight; cast matmul weights to bf16."""
    bf16, f32 = jnp.bfloat16, jnp.float32

    def stack(name, dtype):
        return jnp.stack([p[name] for p in blocks]).astype(dtype)

    wqkv = jnp.stack([jnp.concatenate([p['wq'], p['wk'], p['wv']], axis=1)
                      for p in blocks]).astype(bf16)          # (L, D, 3D)
    bqkv = jnp.stack([jnp.concatenate([p['bq'], p['bk'], p['bv']], axis=1)
                      for p in blocks]).astype(f32)           # (L, 1, 3D)
    return dict(
        wqkv=wqkv, bqkv=bqkv,
        wo=stack('wo', bf16), bo=stack('bo', f32),
        ln1_g=stack('ln1_g', f32), ln1_b=stack('ln1_b', f32),
        w1=stack('w1', bf16), b1=stack('b1', f32),
        w2=stack('w2', bf16), b2=stack('b2', f32),
        ln2_g=stack('ln2_g', f32), ln2_b=stack('ln2_b', f32),
    )


def _vmem_limit_bytes():
    """Generation-aware VMEM request: ~85% of physical capacity (64 MiB on v7x,
    128 MiB on v5e/v6e); conservative fallback if the query is unavailable."""
    try:
        cap = pltpu.get_tpu_info().vmem_capacity_bytes
        return int(cap * 0.85)
    except Exception:
        return 48 * 1024 * 1024


def _pick_batch_block(B, requested):
    bt = max(1, min(requested, B))
    while B % bt:
        bt -= 1
    return bt


def encoder_stack(x, mask_row, pk, final_g, final_b, num_heads, batch_block=4):
    """x: (B, S, D) f32 embedded input, mask_row: (B, 1, S) f32 attention mask."""
    B, S, D = x.shape
    L = pk['wqkv'].shape[0]
    dk = D // num_heads
    Bt = _pick_batch_block(B, batch_block)

    kernel = functools.partial(_encoder_kernel, num_heads=num_heads, d_k=dk,
                               batch_block=Bt)

    def lspec(shape):
        nd = len(shape)

        def imap(b, l):
            return (l,) + (0,) * (nd - 1)
        return pl.BlockSpec((None,) + tuple(shape[1:]), imap)

    in_specs = [
        pl.BlockSpec((Bt, S, D), lambda b, l: (b, 0, 0)),    # embedded input (seed)
        pl.BlockSpec((Bt, 1, S), lambda b, l: (b, 0, 0)),    # attention mask row
        pl.BlockSpec((1, D), lambda b, l: (0, 0)),           # final LN gamma
        pl.BlockSpec((1, D), lambda b, l: (0, 0)),           # final LN beta
        lspec(pk['wqkv'].shape), lspec(pk['bqkv'].shape),
        lspec(pk['wo'].shape), lspec(pk['bo'].shape),
        lspec(pk['ln1_g'].shape), lspec(pk['ln1_b'].shape),
        lspec(pk['w1'].shape), lspec(pk['b1'].shape),
        lspec(pk['w2'].shape), lspec(pk['b2'].shape),
        lspec(pk['ln2_g'].shape), lspec(pk['ln2_b'].shape),
    ]
    out_specs = (pl.BlockSpec((Bt, S, D), lambda b, l: (b, 0, 0)),   # last hidden
                 pl.BlockSpec((Bt, 1, D), lambda b, l: (b, 0, 0)))   # pooled

    hidden, pooled = pl.pallas_call(
        kernel,
        out_shape=(jax.ShapeDtypeStruct((B, S, D), jnp.float32),
                   jax.ShapeDtypeStruct((B, 1, D), jnp.float32)),
        grid=(B // Bt, L),
        in_specs=in_specs,
        out_specs=out_specs,
        compiler_params=pltpu.CompilerParams(
            dimension_semantics=("parallel", "arbitrary"),
            vmem_limit_bytes=_vmem_limit_bytes()),
    )(x, mask_row, final_g, final_b,
      pk['wqkv'], pk['bqkv'], pk['wo'], pk['bo'], pk['ln1_g'], pk['ln1_b'],
      pk['w1'], pk['b1'], pk['w2'], pk['b2'], pk['ln2_g'], pk['ln2_b'])
    return hidden, pooled.reshape(B, D)


# ----------------------------------------------------------------------------
# parameter init (deterministic, shapes per module __init__) and full forward
# ----------------------------------------------------------------------------
def init_params(key, vocab, d_model, num_layers, d_ff):
    keys = jax.random.split(key, 1 + num_layers)
    tok = 0.02 * jax.random.normal(keys[0], (vocab, d_model), jnp.float32)

    def xavier(k, shape):
        lim = math.sqrt(6.0 / (shape[0] + shape[1]))
        return jax.random.uniform(k, shape, jnp.float32, -lim, lim)

    blocks = []
    for i in range(num_layers):
        kq, kk, kv, ko, k1, k2 = jax.random.split(keys[1 + i], 6)
        blocks.append(dict(
            wq=xavier(kq, (d_model, d_model)), bq=jnp.zeros((1, d_model)),
            wk=xavier(kk, (d_model, d_model)), bk=jnp.zeros((1, d_model)),
            wv=xavier(kv, (d_model, d_model)), bv=jnp.zeros((1, d_model)),
            wo=xavier(ko, (d_model, d_model)), bo=jnp.zeros((1, d_model)),
            ln1_g=jnp.ones((1, d_model)), ln1_b=jnp.zeros((1, d_model)),
            w1=xavier(k1, (d_model, d_ff)), b1=jnp.zeros((1, d_ff)),
            w2=xavier(k2, (d_ff, d_model)), b2=jnp.zeros((1, d_model)),
            ln2_g=jnp.ones((1, d_model)), ln2_b=jnp.zeros((1, d_model)),
        ))
    return tok, blocks, jnp.ones((1, d_model)), jnp.zeros((1, d_model))


def encoder_forward(input_ids, tok_emb, blocks, final_g, final_b,
                    num_heads, pad_token_id=0, attention_mask=None,
                    batch_block=4):
    B, S = input_ids.shape
    D = tok_emb.shape[1]
    if attention_mask is None:
        attention_mask = (input_ids != pad_token_id).astype(jnp.float32)
    # embedding gather + positional encoding are host-side glue; dropouts = identity
    x = (tok_emb[input_ids] + sinusoidal_pe(S, D)[None]).astype(jnp.float32)

    packed = pack_params(blocks)
    hidden, pooled = encoder_stack(x, attention_mask.reshape(B, 1, S), packed,
                                   final_g, final_b, num_heads,
                                   batch_block=batch_block)
    return {'last_hidden_state': hidden, 'pooler_output': pooled}


# ----------------------------------------------------------------------------
# pure-JAX f32 reference (mirrors the torch forward) for a correctness check
# ----------------------------------------------------------------------------
def reference_forward(input_ids, tok_emb, blocks, final_g, final_b,
                      num_heads, pad_token_id=0):
    B, S = input_ids.shape
    D = tok_emb.shape[1]
    d_k = D // num_heads
    am = (input_ids != pad_token_id).astype(jnp.float32)
    ext = ((1.0 - am) * -10000.0)[:, None, None, :]
    x = tok_emb[input_ids] + sinusoidal_pe(S, D)[None]
    for p in blocks:
        q = x @ p['wq'] + p['bq']
        k = x @ p['wk'] + p['bk']
        v = x @ p['wv'] + p['bv']
        sp = lambda t: t.reshape(B, S, num_heads, d_k).transpose(0, 2, 1, 3)
        Q, K, V = sp(q), sp(k), sp(v)
        s = jnp.einsum('bhqd,bhkd->bhqk', Q, K) / math.sqrt(d_k)
        s = jnp.where(ext == 0.0, -1.0e9, s)
        w = jax.nn.softmax(s, axis=-1)
        ctx = jnp.einsum('bhqk,bhkd->bhqd', w, V).transpose(0, 2, 1, 3).reshape(B, S, D)
        attn = _layer_norm(ctx @ p['wo'] + p['bo'] + x, p['ln1_g'], p['ln1_b'], 1e-5)
        ff = jnp.maximum(attn @ p['w1'] + p['b1'], 0.0) @ p['w2'] + p['b2']
        x = _layer_norm(ff + attn, p['ln2_g'], p['ln2_b'], 1e-5)
    y = _layer_norm(x, final_g, final_b, 1e-12)
    me = am[:, :, None]
    se = jnp.sum(y * me, axis=1)
    sm = jnp.maximum(jnp.sum(me * jnp.ones_like(y), axis=1), 1e-9)
    return y, se / sm


if __name__ == "__main__":
    # small config consistent with LanguageModelConfig fields
    B, S = 2, 8
    vocab_size, hidden_size, num_layers = 64, 32, 2
    num_heads, intermediate_size, pad_token_id = 4, 64, 0

    key = jax.random.PRNGKey(0)
    k_ids, k_par = jax.random.split(key)
    input_ids = jax.random.randint(k_ids, (B, S), 0, vocab_size)

    tok_emb, blocks, fg, fb = init_params(k_par, vocab_size, hidden_size,
                                          num_layers, intermediate_size)

    out = encoder_forward(input_ids, tok_emb, blocks, fg, fb,
                          num_heads, pad_token_id)
    jax.block_until_ready(out)

    ref_h, ref_p = reference_forward(input_ids, tok_emb, blocks, fg, fb,
                                     num_heads, pad_token_id)
    # tolerance reflects bf16 matmuls (with f32 accumulation) vs the all-f32 ref
    assert jnp.allclose(out['last_hidden_state'], ref_h, atol=5e-2, rtol=5e-2)
    assert jnp.allclose(out['pooler_output'], ref_p, atol=5e-2, rtol=5e-2)

    print("KERNEL_OK")
</pallas_src>

<mosaic_0001>
module attributes {stable_mosaic.version = 11 : i64} {
  func.func @_encoder_kernel(%arg0: i32, %arg1: i32, %arg2: memref<2x8x32xf32, #tpu.memory_space<vmem>>, %arg3: memref<2x1x8xf32, #tpu.memory_space<vmem>>, %arg4: memref<1x32xf32, #tpu.memory_space<vmem>>, %arg5: memref<1x32xf32, #tpu.memory_space<vmem>>, %arg6: memref<1x32x96xbf16, #tpu.memory_space<vmem>>, %arg7: memref<1x1x96xf32, #tpu.memory_space<vmem>>, %arg8: memref<1x32x32xbf16, #tpu.memory_space<vmem>>, %arg9: memref<1x1x32xf32, #tpu.memory_space<vmem>>, %arg10: memref<1x1x32xf32, #tpu.memory_space<vmem>>, %arg11: memref<1x1x32xf32, #tpu.memory_space<vmem>>, %arg12: memref<1x32x64xbf16, #tpu.memory_space<vmem>>, %arg13: memref<1x1x64xf32, #tpu.memory_space<vmem>>, %arg14: memref<1x64x32xbf16, #tpu.memory_space<vmem>>, %arg15: memref<1x1x32xf32, #tpu.memory_space<vmem>>, %arg16: memref<1x1x32xf32, #tpu.memory_space<vmem>>, %arg17: memref<1x1x32xf32, #tpu.memory_space<vmem>>, %arg18: memref<2x8x32xf32, #tpu.memory_space<vmem>>, %arg19: memref<2x1x32xf32, #tpu.memory_space<vmem>>) attributes {dimension_semantics = [#tpu.dimension_semantics<parallel>, #tpu.dimension_semantics<arbitrary>], iteration_bounds = array<i64: 1, 2>, scalar_prefetch = 0 : i64, scratch_operands = 0 : i64, tpu.core_type = #tpu.core_type<tc>, window_params = [{transform_indices = @transform_0, window_bounds = array<i64: 2, 8, 32>}, {transform_indices = @transform_1, window_bounds = array<i64: 2, 1, 8>}, {pipeline_mode = #tpu.pipeline_mode<synchronous>, transform_indices = @transform_2, window_bounds = array<i64: 1, 32>}, {pipeline_mode = #tpu.pipeline_mode<synchronous>, transform_indices = @transform_3, window_bounds = array<i64: 1, 32>}, {transform_indices = @transform_4, window_bounds = array<i64: 1, 32, 96>}, {transform_indices = @transform_5, window_bounds = array<i64: 1, 1, 96>}, {transform_indices = @transform_6, window_bounds = array<i64: 1, 32, 32>}, {transform_indices = @transform_7, window_bounds = array<i64: 1, 1, 32>}, {transform_indices = @transform_8, window_bounds = array<i64: 1, 1, 32>}, {transform_indices = @transform_9, window_bounds = array<i64: 1, 1, 32>}, {transform_indices = @transform_10, window_bounds = array<i64: 1, 32, 64>}, {transform_indices = @transform_11, window_bounds = array<i64: 1, 1, 64>}, {transform_indices = @transform_12, window_bounds = array<i64: 1, 64, 32>}, {transform_indices = @transform_13, window_bounds = array<i64: 1, 1, 32>}, {transform_indices = @transform_14, window_bounds = array<i64: 1, 1, 32>}, {transform_indices = @transform_15, window_bounds = array<i64: 1, 1, 32>}, {transform_indices = @transform_16, window_bounds = array<i64: 2, 8, 32>}, {transform_indices = @transform_17, window_bounds = array<i64: 2, 1, 32>}]} {
    %c0_i32 = arith.constant 0 : i32
    %0 = arith.cmpi eq, %arg1, %c0_i32 : i32
    %1 = arith.extui %0 : i1 to i32
    %c0_i32_0 = arith.constant 0 : i32
    %2 = arith.cmpi ne, %1, %c0_i32_0 : i32
    scf.if %2 {
      %c0_129 = arith.constant 0 : index
      %c0_130 = arith.constant 0 : index
      %c0_131 = arith.constant 0 : index
      %357 = vector.load %arg2[%c0_129, %c0_130, %c0_131] : memref<2x8x32xf32, #tpu.memory_space<vmem>>, vector<2x8x32xf32>
      %c0_132 = arith.constant 0 : index
      %c0_133 = arith.constant 0 : index
      %c0_134 = arith.constant 0 : index
      %358 = vector.load %arg18[%c0_132, %c0_133, %c0_134] : memref<2x8x32xf32, #tpu.memory_space<vmem>>, vector<2x8x32xf32>
      tpu.vector_store %arg18[%c0_132, %c0_133, %c0_134], %357 {strides = array<i32>} : memref<2x8x32xf32, #tpu.memory_space<vmem>>, vector<2x8x32xf32>,
    } else {
    }
    %c0 = arith.constant 0 : index
    %c0_1 = arith.constant 0 : index
    %c0_2 = arith.constant 0 : index
    %3 = vector.load %arg6[%c0, %c0_1, %c0_2] : memref<1x32x96xbf16, #tpu.memory_space<vmem>>, vector<1x32x96xbf16>
    %4 = vector.shape_cast %3 : vector<1x32x96xbf16> to vector<32x96xbf16>
    %c0_3 = arith.constant 0 : index
    %c0_4 = arith.constant 0 : index
    %c0_5 = arith.constant 0 : index
    %5 = vector.load %arg7[%c0_3, %c0_4, %c0_5] : memref<1x1x96xf32, #tpu.memory_space<vmem>>, vector<1x1x96xf32>
    %6 = vector.shape_cast %5 : vector<1x1x96xf32> to vector<1x96xf32>
    %c0_6 = arith.constant 0 : index
    %c0_7 = arith.constant 0 : index
    %c0_8 = arith.constant 0 : index
    %7 = vector.load %arg8[%c0_6, %c0_7, %c0_8] : memref<1x32x32xbf16, #tpu.memory_space<vmem>>, vector<1x32x32xbf16>
    %8 = vector.shape_cast %7 : vector<1x32x32xbf16> to vector<32x32xbf16>
    %c0_9 = arith.constant 0 : index
    %c0_10 = arith.constant 0 : index
    %c0_11 = arith.constant 0 : index
    %9 = vector.load %arg9[%c0_9, %c0_10, %c0_11] : memref<1x1x32xf32, #tpu.memory_space<vmem>>, vector<1x1x32xf32>
    %10 = vector.shape_cast %9 : vector<1x1x32xf32> to vector<1x32xf32>
    %c0_12 = arith.constant 0 : index
    %c0_13 = arith.constant 0 : index
    %c0_14 = arith.constant 0 : index
    %11 = vector.load %arg10[%c0_12, %c0_13, %c0_14] : memref<1x1x32xf32, #tpu.memory_space<vmem>>, vector<1x1x32xf32>
    %12 = vector.shape_cast %11 : vector<1x1x32xf32> to vector<1x32xf32>
    %c0_15 = arith.constant 0 : index
    %c0_16 = arith.constant 0 : index
    %c0_17 = arith.constant 0 : index
    %13 = vector.load %arg11[%c0_15, %c0_16, %c0_17] : memref<1x1x32xf32, #tpu.memory_space<vmem>>, vector<1x1x32xf32>
    %14 = vector.shape_cast %13 : vector<1x1x32xf32> to vector<1x32xf32>
    %c0_18 = arith.constant 0 : index
    %c0_19 = arith.constant 0 : index
    %c0_20 = arith.constant 0 : index
    %15 = vector.load %arg12[%c0_18, %c0_19, %c0_20] : memref<1x32x64xbf16, #tpu.memory_space<vmem>>, vector<1x32x64xbf16>
    %16 = vector.shape_cast %15 : vector<1x32x64xbf16> to vector<32x64xbf16>
    %c0_21 = arith.constant 0 : index
    %c0_22 = arith.constant 0 : index
    %c0_23 = arith.constant 0 : index
    %17 = vector.load %arg13[%c0_21, %c0_22, %c0_23] : memref<1x1x64xf32, #tpu.memory_space<vmem>>, vector<1x1x64xf32>
    %18 = vector.shape_cast %17 : vector<1x1x64xf32> to vector<1x64xf32>
    %c0_24 = arith.constant 0 : index
    %c0_25 = arith.constant 0 : index
    %c0_26 = arith.constant 0 : index
    %19 = vector.load %arg14[%c0_24, %c0_25, %c0_26] : memref<1x64x32xbf16, #tpu.memory_space<vmem>>, vector<1x64x32xbf16>
    %20 = vector.shape_cast %19 : vector<1x64x32xbf16> to vector<64x32xbf16>
    %c0_27 = arith.constant 0 : index
    %c0_28 = arith.constant 0 : index
    %c0_29 = arith.constant 0 : index
    %21 = vector.load %arg15[%c0_27, %c0_28, %c0_29] : memref<1x1x32xf32, #tpu.memory_space<vmem>>, vector<1x1x32xf32>
    %22 = vector.shape_cast %21 : vector<1x1x32xf32> to vector<1x32xf32>
    %c0_30 = arith.constant 0 : index
    %c0_31 = arith.constant 0 : index
    %c0_32 = arith.constant 0 : index
    %23 = vector.load %arg16[%c0_30, %c0_31, %c0_32] : memref<1x1x32xf32, #tpu.memory_space<vmem>>, vector<1x1x32xf32>
    %24 = vector.shape_cast %23 : vector<1x1x32xf32> to vector<1x32xf32>
    %c0_33 = arith.constant 0 : index
    %c0_34 = arith.constant 0 : index
    %c0_35 = arith.constant 0 : index
    %25 = vector.load %arg17[%c0_33, %c0_34, %c0_35] : memref<1x1x32xf32, #tpu.memory_space<vmem>>, vector<1x1x32xf32>
    %26 = vector.shape_cast %25 : vector<1x1x32xf32> to vector<1x32xf32>
    %c0_36 = arith.constant 0 : index
    %c0_37 = arith.constant 0 : index
    %c0_38 = arith.constant 0 : index
    %27 = vector.load %arg18[%c0_36, %c0_37, %c0_38] : memref<2x8x32xf32, #tpu.memory_space<vmem>>, vector<1x8x32xf32>
    %28 = vector.shape_cast %27 : vector<1x8x32xf32> to vector<8x32xf32>
    %c0_39 = arith.constant 0 : index
    %c0_40 = arith.constant 0 : index
    %c0_41 = arith.constant 0 : index
    %29 = vector.load %arg3[%c0_39, %c0_40, %c0_41] : memref<2x1x8xf32, #tpu.memory_space<vmem>>, vector<1x1x8xf32>
    %30 = vector.shape_cast %29 : vector<1x1x8xf32> to vector<1x8xf32>
    %cst = arith.constant 5.000000e-01 : f32
    %31 = vector.broadcast %cst : f32 to vector<1x8xf32>
    %32 = arith.cmpf ogt, %30, %31 : vector<1x8xf32>
    %33 = arith.truncf %28 : vector<8x32xf32> to vector<8x32xbf16>
    %cst_42 = arith.constant dense<0.000000e+00> : vector<8x96xf32>
    %34 = tpu.matmul %33, %4, %cst_42 {dimension_numbers = #tpu.dot_dimension_numbers<[1], [0], [0], [1], [0, 0, 1, 1], [], []>} : vector<8x32xbf16>, vector<32x96xbf16>, vector<8x96xf32> -> vector<8x96xf32>
    %35 = vector.broadcast %6 : vector<1x96xf32> to vector<8x96xf32>
    %36 = arith.addf %34, %35 : vector<8x96xf32>
    %37 = vector.extract_strided_slice %36 {offsets = [0, 0], sizes = [8, 32], strides = [1, 1]} : vector<8x96xf32> to vector<8x32xf32>
    %cst_43 = arith.constant 0.353553385 : f32
    %38 = vector.broadcast %cst_43 : f32 to vector<8x32xf32>
    %39 = arith.mulf %37, %38 : vector<8x32xf32>
    %40 = vector.extract_strided_slice %36 {offsets = [0, 32], sizes = [8, 32], strides = [1, 1]} : vector<8x96xf32> to vector<8x32xf32>
    %41 = vector.extract_strided_slice %36 {offsets = [0, 64], sizes = [8, 32], strides = [1, 1]} : vector<8x96xf32> to vector<8x32xf32>
    %42 = arith.truncf %39 : vector<8x32xf32> to vector<8x32xbf16>
    %43 = arith.truncf %40 : vector<8x32xf32> to vector<8x32xbf16>
    %44 = arith.truncf %41 : vector<8x32xf32> to vector<8x32xbf16>
    %45 = vector.extract_strided_slice %42 {offsets = [0, 0], sizes = [8, 8], strides = [1, 1]} : vector<8x32xbf16> to vector<8x8xbf16>
    %46 = vector.extract_strided_slice %43 {offsets = [0, 0], sizes = [8, 8], strides = [1, 1]} : vector<8x32xbf16> to vector<8x8xbf16>
    "tpu.trace_start"() <{level = 10 : i32, message = "qf,kf->qk"}> : () -> ()
    %cst_44 = arith.constant dense<0.000000e+00> : vector<8x8xf32>
    %47 = tpu.matmul %45, %46, %cst_44 {dimension_numbers = #tpu.dot_dimension_numbers<[1], [1], [0], [0], [0, 0, 1, 0], [], []>} : vector<8x8xbf16>, vector<8x8xbf16>, vector<8x8xf32> -> vector<8x8xf32>
    %cst_45 = arith.constant -1.000000e+09 : f32
    "tpu.trace_stop"() : () -> ()
    %48 = vector.shape_cast %32 : vector<1x8xi1> to vector<1x8xi1>
    %49 = vector.broadcast %48 : vector<1x8xi1> to vector<8x8xi1>
    %50 = vector.broadcast %cst_45 : f32 to vector<8x8xf32>
    %51 = arith.select %49, %50, %47 : vector<8x8xi1>, vector<8x8xf32>
    %cst_46 = arith.constant dense<0xFF800000> : vector<8xf32>
    %52 = vector.multi_reduction <maximumf>, %51, %cst_46 [1] : vector<8x8xf32> to vector<8xf32>
    %53 = vector.shape_cast %52 : vector<8xf32> to vector<8x1xf32>
    %54 = vector.broadcast %53 : vector<8x1xf32> to vector<8x8xf32>
    %55 = arith.subf %51, %54 : vector<8x8xf32>
    %56 = math.exp %55 : vector<8x8xf32>
    %cst_47 = arith.constant dense<0.000000e+00> : vector<8xf32>
    %57 = vector.multi_reduction <add>, %56, %cst_47 [1] : vector<8x8xf32> to vector<8xf32>
    %58 = vector.shape_cast %57 : vector<8xf32> to vector<8x1xf32>
    %59 = tpu.reciprocal %58 {approx = true} : vector<8x1xf32> -> vector<8x1xf32>
    %60 = vector.broadcast %59 : vector<8x1xf32> to vector<8x8xf32>
    %61 = arith.mulf %56, %60 : vector<8x8xf32>
    %62 = arith.truncf %61 : vector<8x8xf32> to vector<8x8xbf16>
    %63 = vector.extract_strided_slice %44 {offsets = [0, 0], sizes = [8, 8], strides = [1, 1]} : vector<8x32xbf16> to vector<8x8xbf16>
    %cst_48 = arith.constant dense<0.000000e+00> : vector<8x8xf32>
    %64 = tpu.matmul %62, %63, %cst_48 {dimension_numbers = #tpu.dot_dimension_numbers<[1], [0], [0], [1], [0, 0, 1, 1], [], []>} : vector<8x8xbf16>, vector<8x8xbf16>, vector<8x8xf32> -> vector<8x8xf32>
    %65 = vector.extract_strided_slice %42 {offsets = [0, 8], sizes = [8, 8], strides = [1, 1]} : vector<8x32xbf16> to vector<8x8xbf16>
    %66 = vector.extract_strided_slice %43 {offsets = [0, 8], sizes = [8, 8], strides = [1, 1]} : vector<8x32xbf16> to vector<8x8xbf16>
    "tpu.trace_start"() <{level = 10 : i32, message = "qf,kf->qk"}> : () -> ()
    %cst_49 = arith.constant dense<0.000000e+00> : vector<8x8xf32>
    %67 = tpu.matmul %65, %66, %cst_49 {dimension_numbers = #tpu.dot_dimension_numbers<[1], [1], [0], [0], [0, 0, 1, 0], [], []>} : vector<8x8xbf16>, vector<8x8xbf16>, vector<8x8xf32> -> vector<8x8xf32>
    %cst_50 = arith.constant -1.000000e+09 : f32
    "tpu.trace_stop"() : () -> ()
    %68 = vector.shape_cast %32 : vector<1x8xi1> to vector<1x8xi1>
    %69 = vector.broadcast %68 : vector<1x8xi1> to vector<8x8xi1>
    %70 = vector.broadcast %cst_50 : f32 to vector<8x8xf32>
    %71 = arith.select %69, %70, %67 : vector<8x8xi1>, vector<8x8xf32>
    %cst_51 = arith.constant dense<0xFF800000> : vector<8xf32>
    %72 = vector.multi_reduction <maximumf>, %71, %cst_51 [1] : vector<8x8xf32> to vector<8xf32>
    %73 = vector.shape_cast %72 : vector<8xf32> to vector<8x1xf32>
    %74 = vector.broadcast %73 : vector<8x1xf32> to vector<8x8xf32>
    %75 = arith.subf %71, %74 : vector<8x8xf32>
    %76 = math.exp %75 : vector<8x8xf32>
    %cst_52 = arith.constant dense<0.000000e+00> : vector<8xf32>
    %77 = vector.multi_reduction <add>, %76, %cst_52 [1] : vector<8x8xf32> to vector<8xf32>
    %78 = vector.shape_cast %77 : vector<8xf32> to vector<8x1xf32>
    %79 = tpu.reciprocal %78 {approx = true} : vector<8x1xf32> -> vector<8x1xf32>
    %80 = vector.broadcast %79 : vector<8x1xf32> to vector<8x8xf32>
    %81 = arith.mulf %76, %80 : vector<8x8xf32>
    %82 = arith.truncf %81 : vector<8x8xf32> to vector<8x8xbf16>
    %83 = vector.extract_strided_slice %44 {offsets = [0, 8], sizes = [8, 8], strides = [1, 1]} : vector<8x32xbf16> to vector<8x8xbf16>
    %cst_53 = arith.constant dense<0.000000e+00> : vector<8x8xf32>
    %84 = tpu.matmul %82, %83, %cst_53 {dimension_numbers = #tpu.dot_dimension_numbers<[1], [0], [0], [1], [0, 0, 1, 1], [], []>} : vector<8x8xbf16>, vector<8x8xbf16>, vector<8x8xf32> -> vector<8x8xf32>
    %85 = vector.extract_strided_slice %42 {offsets = [0, 16], sizes = [8, 8], strides = [1, 1]} : vector<8x32xbf16> to vector<8x8xbf16>
    %86 = vector.extract_strided_slice %43 {offsets = [0, 16], sizes = [8, 8], strides = [1, 1]} : vector<8x32xbf16> to vector<8x8xbf16>
    "tpu.trace_start"() <{level = 10 : i32, message = "qf,kf->qk"}> : () -> ()
    %cst_54 = arith.constant dense<0.000000e+00> : vector<8x8xf32>
    %87 = tpu.matmul %85, %86, %cst_54 {dimension_numbers = #tpu.dot_dimension_numbers<[1], [1], [0], [0], [0, 0, 1, 0], [], []>} : vector<8x8xbf16>, vector<8x8xbf16>, vector<8x8xf32> -> vector<8x8xf32>
    %cst_55 = arith.constant -1.000000e+09 : f32
    "tpu.trace_stop"() : () -> ()
    %88 = vector.shape_cast %32 : vector<1x8xi1> to vector<1x8xi1>
    %89 = vector.broadcast %88 : vector<1x8xi1> to vector<8x8xi1>
    %90 = vector.broadcast %cst_55 : f32 to vector<8x8xf32>
    %91 = arith.select %89, %90, %87 : vector<8x8xi1>, vector<8x8xf32>
    %cst_56 = arith.constant dense<0xFF800000> : vector<8xf32>
    %92 = vector.multi_reduction <maximumf>, %91, %cst_56 [1] : vector<8x8xf32> to vector<8xf32>
    %93 = vector.shape_cast %92 : vector<8xf32> to vector<8x1xf32>
    %94 = vector.broadcast %93 : vector<8x1xf32> to vector<8x8xf32>
    %95 = arith.subf %91, %94 : vector<8x8xf32>
    %96 = math.exp %95 : vector<8x8xf32>
    %cst_57 = arith.constant dense<0.000000e+00> : vector<8xf32>
    %97 = vector.multi_reduction <add>, %96, %cst_57 [1] : vector<8x8xf32> to vector<8xf32>
    %98 = vector.shape_cast %97 : vector<8xf32> to vector<8x1xf32>
    %99 = tpu.reciprocal %98 {approx = true} : vector<8x1xf32> -> vector<8x1xf32>
    %100 = vector.broadcast %99 : vector<8x1xf32> to vector<8x8xf32>
    %101 = arith.mulf %96, %100 : vector<8x8xf32>
    %102 = arith.truncf %101 : vector<8x8xf32> to vector<8x8xbf16>
    %103 = vector.extract_strided_slice %44 {offsets = [0, 16], sizes = [8, 8], strides = [1, 1]} : vector<8x32xbf16> to vector<8x8xbf16>
    %cst_58 = arith.constant dense<0.000000e+00> : vector<8x8xf32>
    %104 = tpu.matmul %102, %103, %cst_58 {dimension_numbers = #tpu.dot_dimension_numbers<[1], [0], [0], [1], [0, 0, 1, 1], [], []>} : vector<8x8xbf16>, vector<8x8xbf16>, vector<8x8xf32> -> vector<8x8xf32>
    %105 = vector.extract_strided_slice %42 {offsets = [0, 24], sizes = [8, 8], strides = [1, 1]} : vector<8x32xbf16> to vector<8x8xbf16>
    %106 = vector.extract_strided_slice %43 {offsets = [0, 24], sizes = [8, 8], strides = [1, 1]} : vector<8x32xbf16> to vector<8x8xbf16>
    "tpu.trace_start"() <{level = 10 : i32, message = "qf,kf->qk"}> : () -> ()
    %cst_59 = arith.constant dense<0.000000e+00> : vector<8x8xf32>
    %107 = tpu.matmul %105, %106, %cst_59 {dimension_numbers = #tpu.dot_dimension_numbers<[1], [1], [0], [0], [0, 0, 1, 0], [], []>} : vector<8x8xbf16>, vector<8x8xbf16>, vector<8x8xf32> -> vector<8x8xf32>
    %cst_60 = arith.constant -1.000000e+09 : f32
    "tpu.trace_stop"() : () -> ()
    %108 = vector.shape_cast %32 : vector<1x8xi1> to vector<1x8xi1>
    %109 = vector.broadcast %108 : vector<1x8xi1> to vector<8x8xi1>
    %110 = vector.broadcast %cst_60 : f32 to vector<8x8xf32>
    %111 = arith.select %109, %110, %107 : vector<8x8xi1>, vector<8x8xf32>
    %cst_61 = arith.constant dense<0xFF800000> : vector<8xf32>
    %112 = vector.multi_reduction <maximumf>, %111, %cst_61 [1] : vector<8x8xf32> to vector<8xf32>
    %113 = vector.shape_cast %112 : vector<8xf32> to vector<8x1xf32>
    %114 = vector.broadcast %113 : vector<8x1xf32> to vector<8x8xf32>
    %115 = arith.subf %111, %114 : vector<8x8xf32>
    %116 = math.exp %115 : vector<8x8xf32>
    %cst_62 = arith.constant dense<0.000000e+00> : vector<8xf32>
    %117 = vector.multi_reduction <add>, %116, %cst_62 [1] : vector<8x8xf32> to vector<8xf32>
    %118 = vector.shape_cast %117 : vector<8xf32> to vector<8x1xf32>
    %119 = tpu.reciprocal %118 {approx = true} : vector<8x1xf32> -> vector<8x1xf32>
    %120 = vector.broadcast %119 : vector<8x1xf32> to vector<8x8xf32>
    %121 = arith.mulf %116, %120 : vector<8x8xf32>
    %122 = arith.truncf %121 : vector<8x8xf32> to vector<8x8xbf16>
    %123 = vector.extract_strided_slice %44 {offsets = [0, 24], sizes = [8, 8], strides = [1, 1]} : vector<8x32xbf16> to vector<8x8xbf16>
    %cst_63 = arith.constant dense<0.000000e+00> : vector<8x8xf32>
    %124 = tpu.matmul %122, %123, %cst_63 {dimension_numbers = #tpu.dot_dimension_numbers<[1], [0], [0], [1], [0, 0, 1, 1], [], []>} : vector<8x8xbf16>, vector<8x8xbf16>, vector<8x8xf32> -> vector<8x8xf32>
    %125 = tpu.concatenate %64, %84, %104, %124 in 1 : vector<8x8xf32>, vector<8x8xf32>, vector<8x8xf32>, vector<8x8xf32> -> vector<8x32xf32>
    %126 = arith.truncf %125 : vector<8x32xf32> to vector<8x32xbf16>
    %cst_64 = arith.constant dense<0.000000e+00> : vector<8x32xf32>
    %127 = tpu.matmul %126, %8, %cst_64 {dimension_numbers = #tpu.dot_dimension_numbers<[1], [0], [0], [1], [0, 0, 1, 1], [], []>} : vector<8x32xbf16>, vector<32x32xbf16>, vector<8x32xf32> -> vector<8x32xf32>
    %128 = vector.broadcast %10 : vector<1x32xf32> to vector<8x32xf32>
    %129 = arith.addf %127, %128 : vector<8x32xf32>
    %130 = arith.addf %129, %28 : vector<8x32xf32>
    %cst_65 = arith.constant dense<0.000000e+00> : vector<8xf32>
    %131 = vector.multi_reduction <add>, %130, %cst_65 [1] : vector<8x32xf32> to vector<8xf32>
    %132 = vector.shape_cast %131 : vector<8xf32> to vector<8x1xf32>
    %cst_66 = arith.constant 3.200000e+01 : f32
    %133 = vector.broadcast %cst_66 : f32 to vector<8x1xf32>
    %134 = arith.divf %132, %133 : vector<8x1xf32>
    %135 = vector.broadcast %134 : vector<8x1xf32> to vector<8x32xf32>
    %136 = arith.subf %130, %135 : vector<8x32xf32>
    %137 = arith.mulf %136, %136 : vector<8x32xf32>
    %cst_67 = arith.constant dense<0.000000e+00> : vector<8xf32>
    %138 = vector.multi_reduction <add>, %137, %cst_67 [1] : vector<8x32xf32> to vector<8xf32>
    %139 = vector.shape_cast %138 : vector<8xf32> to vector<8x1xf32>
    %cst_68 = arith.constant 3.200000e+01 : f32
    %140 = vector.broadcast %cst_68 : f32 to vector<8x1xf32>
    %141 = arith.divf %139, %140 : vector<8x1xf32>
    %142 = vector.broadcast %134 : vector<8x1xf32> to vector<8x32xf32>
    %143 = arith.subf %130, %142 : vector<8x32xf32>
    %cst_69 = arith.constant 9.99999974E-6 : f32
    %144 = vector.broadcast %cst_69 : f32 to vector<8x1xf32>
    %145 = arith.addf %141, %144 : vector<8x1xf32>
    %146 = math.rsqrt %145 : vector<8x1xf32>
    %147 = vector.broadcast %146 : vector<8x1xf32> to vector<8x32xf32>
    %148 = arith.mulf %143, %147 : vector<8x32xf32>
    %149 = vector.broadcast %12 : vector<1x32xf32> to vector<8x32xf32>
    %150 = arith.mulf %148, %149 : vector<8x32xf32>
    %151 = vector.broadcast %14 : vector<1x32xf32> to vector<8x32xf32>
    %152 = arith.addf %150, %151 : vector<8x32xf32>
    %153 = arith.truncf %152 : vector<8x32xf32> to vector<8x32xbf16>
    %cst_70 = arith.constant dense<0.000000e+00> : vector<8x64xf32>
    %154 = tpu.matmul %153, %16, %cst_70 {dimension_numbers = #tpu.dot_dimension_numbers<[1], [0], [0], [1], [0, 0, 1, 1], [], []>} : vector<8x32xbf16>, vector<32x64xbf16>, vector<8x64xf32> -> vector<8x64xf32>
    %155 = vector.broadcast %18 : vector<1x64xf32> to vector<8x64xf32>
    %156 = arith.addf %154, %155 : vector<8x64xf32>
    %cst_71 = arith.constant 0.000000e+00 : f32
    %157 = vector.broadcast %cst_71 : f32 to vector<8x64xf32>
    %158 = arith.maximumf %156, %157 : vector<8x64xf32>
    %159 = arith.truncf %158 : vector<8x64xf32> to vector<8x64xbf16>
    %cst_72 = arith.constant dense<0.000000e+00> : vector<8x32xf32>
    %160 = tpu.matmul %159, %20, %cst_72 {dimension_numbers = #tpu.dot_dimension_numbers<[1], [0], [0], [1], [0, 0, 1, 1], [], []>} : vector<8x64xbf16>, vector<64x32xbf16>, vector<8x32xf32> -> vector<8x32xf32>
    %161 = vector.broadcast %22 : vector<1x32xf32> to vector<8x32xf32>
    %162 = arith.addf %160, %161 : vector<8x32xf32>
    %163 = arith.addf %162, %152 : vector<8x32xf32>
    %cst_73 = arith.constant dense<0.000000e+00> : vector<8xf32>
    %164 = vector.multi_reduction <add>, %163, %cst_73 [1] : vector<8x32xf32> to vector<8xf32>
    %165 = vector.shape_cast %164 : vector<8xf32> to vector<8x1xf32>
    %cst_74 = arith.constant 3.200000e+01 : f32
    %166 = vector.broadcast %cst_74 : f32 to vector<8x1xf32>
    %167 = arith.divf %165, %166 : vector<8x1xf32>
    %168 = vector.broadcast %167 : vector<8x1xf32> to vector<8x32xf32>
    %169 = arith.subf %163, %168 : vector<8x32xf32>
    %170 = arith.mulf %169, %169 : vector<8x32xf32>
    %cst_75 = arith.constant dense<0.000000e+00> : vector<8xf32>
    %171 = vector.multi_reduction <add>, %170, %cst_75 [1] : vector<8x32xf32> to vector<8xf32>
    %172 = vector.shape_cast %171 : vector<8xf32> to vector<8x1xf32>
    %cst_76 = arith.constant 3.200000e+01 : f32
    %173 = vector.broadcast %cst_76 : f32 to vector<8x1xf32>
    %174 = arith.divf %172, %173 : vector<8x1xf32>
    %175 = vector.broadcast %167 : vector<8x1xf32> to vector<8x32xf32>
    %176 = arith.subf %163, %175 : vector<8x32xf32>
    %cst_77 = arith.constant 9.99999974E-6 : f32
    %177 = vector.broadcast %cst_77 : f32 to vector<8x1xf32>
    %178 = arith.addf %174, %177 : vector<8x1xf32>
    %179 = math.rsqrt %178 : vector<8x1xf32>
    %180 = vector.broadcast %179 : vector<8x1xf32> to vector<8x32xf32>
    %181 = arith.mulf %176, %180 : vector<8x32xf32>
    %182 = vector.broadcast %24 : vector<1x32xf32> to vector<8x32xf32>
    %183 = arith.mulf %181, %182 : vector<8x32xf32>
    %184 = vector.broadcast %26 : vector<1x32xf32> to vector<8x32xf32>
    %185 = arith.addf %183, %184 : vector<8x32xf32>
    %c0_78 = arith.constant 0 : index
    %c0_79 = arith.constant 0 : index
    %c0_80 = arith.constant 0 : index
    %186 = vector.load %arg18[%c0_78, %c0_79, %c0_80] : memref<2x8x32xf32, #tpu.memory_space<vmem>>, vector<1x8x32xf32>
    %187 = vector.shape_cast %186 : vector<1x8x32xf32> to vector<8x32xf32>
    %188 = vector.shape_cast %185 : vector<8x32xf32> to vector<1x8x32xf32>
    tpu.vector_store %arg18[%c0_78, %c0_79, %c0_80], %188 {strides = array<i32>} : memref<2x8x32xf32, #tpu.memory_space<vmem>>, vector<1x8x32xf32>,
    %c1_i32 = arith.constant 1 : i32
    %189 = arith.cmpi eq, %arg1, %c1_i32 : i32
    %190 = arith.extui %189 : i1 to i32
    %c0_i32_81 = arith.constant 0 : i32
    %191 = arith.cmpi ne, %190, %c0_i32_81 : i32
    scf.if %191 {
      %c0_129 = arith.constant 0 : index
      %c0_130 = arith.constant 0 : index
      %357 = vector.load %arg4[%c0_129, %c0_130] : memref<1x32xf32, #tpu.memory_space<vmem>>, vector<1x32xf32>
      %c0_131 = arith.constant 0 : index
      %c0_132 = arith.constant 0 : index
      %358 = vector.load %arg5[%c0_131, %c0_132] : memref<1x32xf32, #tpu.memory_space<vmem>>, vector<1x32xf32>
      %cst_133 = arith.constant dense<0.000000e+00> : vector<8xf32>
      %359 = vector.multi_reduction <add>, %185, %cst_133 [1] : vector<8x32xf32> to vector<8xf32>
      %360 = vector.shape_cast %359 : vector<8xf32> to vector<8x1xf32>
      %cst_134 = arith.constant 3.200000e+01 : f32
      %361 = vector.broadcast %cst_134 : f32 to vector<8x1xf32>
      %362 = arith.divf %360, %361 : vector<8x1xf32>
      %363 = vector.broadcast %362 : vector<8x1xf32> to vector<8x32xf32>
      %364 = arith.subf %185, %363 : vector<8x32xf32>
      %365 = arith.mulf %364, %364 : vector<8x32xf32>
      %cst_135 = arith.constant dense<0.000000e+00> : vector<8xf32>
      %366 = vector.multi_reduction <add>, %365, %cst_135 [1] : vector<8x32xf32> to vector<8xf32>
      %367 = vector.shape_cast %366 : vector<8xf32> to vector<8x1xf32>
      %cst_136 = arith.constant 3.200000e+01 : f32
      %368 = vector.broadcast %cst_136 : f32 to vector<8x1xf32>
      %369 = arith.divf %367, %368 : vector<8x1xf32>
      %370 = vector.broadcast %362 : vector<8x1xf32> to vector<8x32xf32>
      %371 = arith.subf %185, %370 : vector<8x32xf32>
      %cst_137 = arith.constant 9.99999996E-13 : f32
      %372 = vector.broadcast %cst_137 : f32 to vector<8x1xf32>
      %373 = arith.addf %369, %372 : vector<8x1xf32>
      %374 = math.rsqrt %373 : vector<8x1xf32>
      %375 = vector.broadcast %374 : vector<8x1xf32> to vector<8x32xf32>
      %376 = arith.mulf %371, %375 : vector<8x32xf32>
      %377 = vector.broadcast %357 : vector<1x32xf32> to vector<8x32xf32>
      %378 = arith.mulf %376, %377 : vector<8x32xf32>
      %379 = vector.broadcast %358 : vector<1x32xf32> to vector<8x32xf32>
      %380 = arith.addf %378, %379 : vector<8x32xf32>
      %c0_138 = arith.constant 0 : index
      %c0_139 = arith.constant 0 : index
      %c0_140 = arith.constant 0 : index
      %381 = vector.load %arg18[%c0_138, %c0_139, %c0_140] : memref<2x8x32xf32, #tpu.memory_space<vmem>>, vector<1x8x32xf32>
      %382 = vector.shape_cast %381 : vector<1x8x32xf32> to vector<8x32xf32>
      %383 = vector.shape_cast %380 : vector<8x32xf32> to vector<1x8x32xf32>
      tpu.vector_store %arg18[%c0_138, %c0_139, %c0_140], %383 {strides = array<i32>} : memref<2x8x32xf32, #tpu.memory_space<vmem>>, vector<1x8x32xf32>,
      %cst_141 = arith.constant dense<0.000000e+00> : vector<1x32xf32>
      %384 = tpu.matmul %30, %380, %cst_141 {dimension_numbers = #tpu.dot_dimension_numbers<[1], [0], [0], [1], [0, 0, 1, 1], [], []>} : vector<1x8xf32>, vector<8x32xf32>, vector<1x32xf32> -> vector<1x32xf32>
      %cst_142 = arith.constant dense<0.000000e+00> : vector<1xf32>
      %385 = vector.multi_reduction <add>, %30, %cst_142 [1] : vector<1x8xf32> to vector<1xf32>
      %386 = vector.shape_cast %385 : vector<1xf32> to vector<1x1xf32>
      %cst_143 = arith.constant 9.99999971E-10 : f32
      %387 = vector.broadcast %cst_143 : f32 to vector<1x1xf32>
      %388 = arith.maximumf %386, %387 : vector<1x1xf32>
      %389 = vector.broadcast %388 : vector<1x1xf32> to vector<1x32xf32>
      %390 = arith.divf %384, %389 : vector<1x32xf32>
      %c0_144 = arith.constant 0 : index
      %c0_145 = arith.constant 0 : index
      %c0_146 = arith.constant 0 : index
      %391 = vector.load %arg19[%c0_144, %c0_145, %c0_146] : memref<2x1x32xf32, #tpu.memory_space<vmem>>, vector<1x1x32xf32>
      %392 = vector.shape_cast %391 : vector<1x1x32xf32> to vector<1x32xf32>
      %393 = vector.shape_cast %390 : vector<1x32xf32> to vector<1x1x32xf32>
      tpu.vector_store %arg19[%c0_144, %c0_145, %c0_146], %393 {strides = array<i32>} : memref<2x1x32xf32, #tpu.memory_space<vmem>>, vector<1x1x32xf32>,
    } else {
    }
    %c1 = arith.constant 1 : index
    %c0_82 = arith.constant 0 : index
    %c0_83 = arith.constant 0 : index
    %192 = vector.load %arg18[%c1, %c0_82, %c0_83] : memref<2x8x32xf32, #tpu.memory_space<vmem>>, vector<1x8x32xf32>
    %193 = vector.shape_cast %192 : vector<1x8x32xf32> to vector<8x32xf32>
    %c1_84 = arith.constant 1 : index
    %c0_85 = arith.constant 0 : index
    %c0_86 = arith.constant 0 : index
    %194 = vector.load %arg3[%c1_84, %c0_85, %c0_86] : memref<2x1x8xf32, #tpu.memory_space<vmem>>, vector<1x1x8xf32>
    %195 = vector.shape_cast %194 : vector<1x1x8xf32> to vector<1x8xf32>
    %cst_87 = arith.constant 5.000000e-01 : f32
    %196 = vector.broadcast %cst_87 : f32 to vector<1x8xf32>
    %197 = arith.cmpf ogt, %195, %196 : vector<1x8xf32>
    %198 = arith.truncf %193 : vector<8x32xf32> to vector<8x32xbf16>
    %cst_88 = arith.constant dense<0.000000e+00> : vector<8x96xf32>
    %199 = tpu.matmul %198, %4, %cst_88 {dimension_numbers = #tpu.dot_dimension_numbers<[1], [0], [0], [1], [0, 0, 1, 1], [], []>} : vector<8x32xbf16>, vector<32x96xbf16>, vector<8x96xf32> -> vector<8x96xf32>
    %200 = vector.broadcast %6 : vector<1x96xf32> to vector<8x96xf32>
    %201 = arith.addf %199, %200 : vector<8x96xf32>
    %202 = vector.extract_strided_slice %201 {offsets = [0, 0], sizes = [8, 32], strides = [1, 1]} : vector<8x96xf32> to vector<8x32xf32>
    %cst_89 = arith.constant 0.353553385 : f32
    %203 = vector.broadcast %cst_89 : f32 to vector<8x32xf32>
    %204 = arith.mulf %202, %203 : vector<8x32xf32>
    %205 = vector.extract_strided_slice %201 {offsets = [0, 32], sizes = [8, 32], strides = [1, 1]} : vector<8x96xf32> to vector<8x32xf32>
    %206 = vector.extract_strided_slice %201 {offsets = [0, 64], sizes = [8, 32], strides = [1, 1]} : vector<8x96xf32> to vector<8x32xf32>
    %207 = arith.truncf %204 : vector<8x32xf32> to vector<8x32xbf16>
    %208 = arith.truncf %205 : vector<8x32xf32> to vector<8x32xbf16>
    %209 = arith.truncf %206 : vector<8x32xf32> to vector<8x32xbf16>
    %210 = vector.extract_strided_slice %207 {offsets = [0, 0], sizes = [8, 8], strides = [1, 1]} : vector<8x32xbf16> to vector<8x8xbf16>
    %211 = vector.extract_strided_slice %208 {offsets = [0, 0], sizes = [8, 8], strides = [1, 1]} : vector<8x32xbf16> to vector<8x8xbf16>
    "tpu.trace_start"() <{level = 10 : i32, message = "qf,kf->qk"}> : () -> ()
    %cst_90 = arith.constant dense<0.000000e+00> : vector<8x8xf32>
    %212 = tpu.matmul %210, %211, %cst_90 {dimension_numbers = #tpu.dot_dimension_numbers<[1], [1], [0], [0], [0, 0, 1, 0], [], []>} : vector<8x8xbf16>, vector<8x8xbf16>, vector<8x8xf32> -> vector<8x8xf32>
    %cst_91 = arith.constant -1.000000e+09 : f32
    "tpu.trace_stop"() : () -> ()
    %213 = vector.shape_cast %197 : vector<1x8xi1> to vector<1x8xi1>
    %214 = vector.broadcast %213 : vector<1x8xi1> to vector<8x8xi1>
    %215 = vector.broadcast %cst_91 : f32 to vector<8x8xf32>
    %216 = arith.select %214, %215, %212 : vector<8x8xi1>, vector<8x8xf32>
    %cst_92 = arith.constant dense<0xFF800000> : vector<8xf32>
    %217 = vector.multi_reduction <maximumf>, %216, %cst_92 [1] : vector<8x8xf32> to vector<8xf32>
    %218 = vector.shape_cast %217 : vector<8xf32> to vector<8x1xf32>
    %219 = vector.broadcast %218 : vector<8x1xf32> to vector<8x8xf32>
    %220 = arith.subf %216, %219 : vector<8x8xf32>
    %221 = math.exp %220 : vector<8x8xf32>
    %cst_93 = arith.constant dense<0.000000e+00> : vector<8xf32>
    %222 = vector.multi_reduction <add>, %221, %cst_93 [1] : vector<8x8xf32> to vector<8xf32>
    %223 = vector.shape_cast %222 : vector<8xf32> to vector<8x1xf32>
    %224 = tpu.reciprocal %223 {approx = true} : vector<8x1xf32> -> vector<8x1xf32>
    %225 = vector.broadcast %224 : vector<8x1xf32> to vector<8x8xf32>
    %226 = arith.mulf %221, %225 : vector<8x8xf32>
    %227 = arith.truncf %226 : vector<8x8xf32> to vector<8x8xbf16>
    %228 = vector.extract_strided_slice %209 {offsets = [0, 0], sizes = [8, 8], strides = [1, 1]} : vector<8x32xbf16> to vector<8x8xbf16>
    %cst_94 = arith.constant dense<0.000000e+00> : vector<8x8xf32>
    %229 = tpu.matmul %227, %228, %cst_94 {dimension_numbers = #tpu.dot_dimension_numbers<[1], [0], [0], [1], [0, 0, 1, 1], [], []>} : vector<8x8xbf16>, vector<8x8xbf16>, vector<8x8xf32> -> vector<8x8xf32>
    %230 = vector.extract_strided_slice %207 {offsets = [0, 8], sizes = [8, 8], strides = [1, 1]} : vector<8x32xbf16> to vector<8x8xbf16>
    %231 = vector.extract_strided_slice %208 {offsets = [0, 8], sizes = [8, 8], strides = [1, 1]} : vector<8x32xbf16> to vector<8x8xbf16>
    "tpu.trace_start"() <{level = 10 : i32, message = "qf,kf->qk"}> : () -> ()
    %cst_95 = arith.constant dense<0.000000e+00> : vector<8x8xf32>
    %232 = tpu.matmul %230, %231, %cst_95 {dimension_numbers = #tpu.dot_dimension_numbers<[1], [1], [0], [0], [0, 0, 1, 0], [], []>} : vector<8x8xbf16>, vector<8x8xbf16>, vector<8x8xf32> -> vector<8x8xf32>
    %cst_96 = arith.constant -1.000000e+09 : f32
    "tpu.trace_stop"() : () -> ()
    %233 = vector.shape_cast %197 : vector<1x8xi1> to vector<1x8xi1>
    %234 = vector.broadcast %233 : vector<1x8xi1> to vector<8x8xi1>
    %235 = vector.broadcast %cst_96 : f32 to vector<8x8xf32>
    %236 = arith.select %234, %235, %232 : vector<8x8xi1>, vector<8x8xf32>
    %cst_97 = arith.constant dense<0xFF800000> : vector<8xf32>
    %237 = vector.multi_reduction <maximumf>, %236, %cst_97 [1] : vector<8x8xf32> to vector<8xf32>
    %238 = vector.shape_cast %237 : vector<8xf32> to vector<8x1xf32>
    %239 = vector.broadcast %238 : vector<8x1xf32> to vector<8x8xf32>
    %240 = arith.subf %236, %239 : vector<8x8xf32>
    %241 = math.exp %240 : vector<8x8xf32>
    %cst_98 = arith.constant dense<0.000000e+00> : vector<8xf32>
    %242 = vector.multi_reduction <add>, %241, %cst_98 [1] : vector<8x8xf32> to vector<8xf32>
    %243 = vector.shape_cast %242 : vector<8xf32> to vector<8x1xf32>
    %244 = tpu.reciprocal %243 {approx = true} : vector<8x1xf32> -> vector<8x1xf32>
    %245 = vector.broadcast %244 : vector<8x1xf32> to vector<8x8xf32>
    %246 = arith.mulf %241, %245 : vector<8x8xf32>
    %247 = arith.truncf %246 : vector<8x8xf32> to vector<8x8xbf16>
    %248 = vector.extract_strided_slice %209 {offsets = [0, 8], sizes = [8, 8], strides = [1, 1]} : vector<8x32xbf16> to vector<8x8xbf16>
    %cst_99 = arith.constant dense<0.000000e+00> : vector<8x8xf32>
    %249 = tpu.matmul %247, %248, %cst_99 {dimension_numbers = #tpu.dot_dimension_numbers<[1], [0], [0], [1], [0, 0, 1, 1], [], []>} : vector<8x8xbf16>, vector<8x8xbf16>, vector<8x8xf32> -> vector<8x8xf32>
    %250 = vector.extract_strided_slice %207 {offsets = [0, 16], sizes = [8, 8], strides = [1, 1]} : vector<8x32xbf16> to vector<8x8xbf16>
    %251 = vector.extract_strided_slice %208 {offsets = [0, 16], sizes = [8, 8], strides = [1, 1]} : vector<8x32xbf16> to vector<8x8xbf16>
    "tpu.trace_start"() <{level = 10 : i32, message = "qf,kf->qk"}> : () -> ()
    %cst_100 = arith.constant dense<0.000000e+00> : vector<8x8xf32>
    %252 = tpu.matmul %250, %251, %cst_100 {dimension_numbers = #tpu.dot_dimension_numbers<[1], [1], [0], [0], [0, 0, 1, 0], [], []>} : vector<8x8xbf16>, vector<8x8xbf16>, vector<8x8xf32> -> vector<8x8xf32>
    %cst_101 = arith.constant -1.000000e+09 : f32
    "tpu.trace_stop"() : () -> ()
    %253 = vector.shape_cast %197 : vector<1x8xi1> to vector<1x8xi1>
    %254 = vector.broadcast %253 : vector<1x8xi1> to vector<8x8xi1>
    %255 = vector.broadcast %cst_101 : f32 to vector<8x8xf32>
    %256 = arith.select %254, %255, %252 : vector<8x8xi1>, vector<8x8xf32>
    %cst_102 = arith.constant dense<0xFF800000> : vector<8xf32>
    %257 = vector.multi_reduction <maximumf>, %256, %cst_102 [1] : vector<8x8xf32> to vector<8xf32>
    %258 = vector.shape_cast %257 : vector<8xf32> to vector<8x1xf32>
    %259 = vector.broadcast %258 : vector<8x1xf32> to vector<8x8xf32>
    %260 = arith.subf %256, %259 : vector<8x8xf32>
    %261 = math.exp %260 : vector<8x8xf32>
    %cst_103 = arith.constant dense<0.000000e+00> : vector<8xf32>
    %262 = vector.multi_reduction <add>, %261, %cst_103 [1] : vector<8x8xf32> to vector<8xf32>
    %263 = vector.shape_cast %262 : vector<8xf32> to vector<8x1xf32>
    %264 = tpu.reciprocal %263 {approx = true} : vector<8x1xf32> -> vector<8x1xf32>
    %265 = vector.broadcast %264 : vector<8x1xf32> to vector<8x8xf32>
    %266 = arith.mulf %261, %265 : vector<8x8xf32>
    %267 = arith.truncf %266 : vector<8x8xf32> to vector<8x8xbf16>
    %268 = vector.extract_strided_slice %209 {offsets = [0, 16], sizes = [8, 8], strides = [1, 1]} : vector<8x32xbf16> to vector<8x8xbf16>
    %cst_104 = arith.constant dense<0.000000e+00> : vector<8x8xf32>
    %269 = tpu.matmul %267, %268, %cst_104 {dimension_numbers = #tpu.dot_dimension_numbers<[1], [0], [0], [1], [0, 0, 1, 1], [], []>} : vector<8x8xbf16>, vector<8x8xbf16>, vector<8x8xf32> -> vector<8x8xf32>
    %270 = vector.extract_strided_slice %207 {offsets = [0, 24], sizes = [8, 8], strides = [1, 1]} : vector<8x32xbf16> to vector<8x8xbf16>
    %271 = vector.extract_strided_slice %208 {offsets = [0, 24], sizes = [8, 8], strides = [1, 1]} : vector<8x32xbf16> to vector<8x8xbf16>
    "tpu.trace_start"() <{level = 10 : i32, message = "qf,kf->qk"}> : () -> ()
    %cst_105 = arith.constant dense<0.000000e+00> : vector<8x8xf32>
    %272 = tpu.matmul %270, %271, %cst_105 {dimension_numbers = #tpu.dot_dimension_numbers<[1], [1], [0], [0], [0, 0, 1, 0], [], []>} : vector<8x8xbf16>, vector<8x8xbf16>, vector<8x8xf32> -> vector<8x8xf32>
    %cst_106 = arith.constant -1.000000e+09 : f32
    "tpu.trace_stop"() : () -> ()
    %273 = vector.shape_cast %197 : vector<1x8xi1> to vector<1x8xi1>
    %274 = vector.broadcast %273 : vector<1x8xi1> to vector<8x8xi1>
    %275 = vector.broadcast %cst_106 : f32 to vector<8x8xf32>
    %276 = arith.select %274, %275, %272 : vector<8x8xi1>, vector<8x8xf32>
    %cst_107 = arith.constant dense<0xFF800000> : vector<8xf32>
    %277 = vector.multi_reduction <maximumf>, %276, %cst_107 [1] : vector<8x8xf32> to vector<8xf32>
    %278 = vector.shape_cast %277 : vector<8xf32> to vector<8x1xf32>
    %279 = vector.broadcast %278 : vector<8x1xf32> to vector<8x8xf32>
    %280 = arith.subf %276, %279 : vector<8x8xf32>
    %281 = math.exp %280 : vector<8x8xf32>
    %cst_108 = arith.constant dense<0.000000e+00> : vector<8xf32>
    %282 = vector.multi_reduction <add>, %281, %cst_108 [1] : vector<8x8xf32> to vector<8xf32>
    %283 = vector.shape_cast %282 : vector<8xf32> to vector<8x1xf32>
    %284 = tpu.reciprocal %283 {approx = true} : vector<8x1xf32> -> vector<8x1xf32>
    %285 = vector.broadcast %284 : vector<8x1xf32> to vector<8x8xf32>
    %286 = arith.mulf %281, %285 : vector<8x8xf32>
    %287 = arith.truncf %286 : vector<8x8xf32> to vector<8x8xbf16>
    %288 = vector.extract_strided_slice %209 {offsets = [0, 24], sizes = [8, 8], strides = [1, 1]} : vector<8x32xbf16> to vector<8x8xbf16>
    %cst_109 = arith.constant dense<0.000000e+00> : vector<8x8xf32>
    %289 = tpu.matmul %287, %288, %cst_109 {dimension_numbers = #tpu.dot_dimension_numbers<[1], [0], [0], [1], [0, 0, 1, 1], [], []>} : vector<8x8xbf16>, vector<8x8xbf16>, vector<8x8xf32> -> vector<8x8xf32>
    %290 = tpu.concatenate %229, %249, %269, %289 in 1 : vector<8x8xf32>, vector<8x8xf32>, vector<8x8xf32>, vector<8x8xf32> -> vector<8x32xf32>
    %291 = arith.truncf %290 : vector<8x32xf32> to vector<8x32xbf16>
    %cst_110 = arith.constant dense<0.000000e+00> : vector<8x32xf32>
    %292 = tpu.matmul %291, %8, %cst_110 {dimension_numbers = #tpu.dot_dimension_numbers<[1], [0], [0], [1], [0, 0, 1, 1], [], []>} : vector<8x32xbf16>, vector<32x32xbf16>, vector<8x32xf32> -> vector<8x32xf32>
    %293 = vector.broadcast %10 : vector<1x32xf32> to vector<8x32xf32>
    %294 = arith.addf %292, %293 : vector<8x32xf32>
    %295 = arith.addf %294, %193 : vector<8x32xf32>
    %cst_111 = arith.constant dense<0.000000e+00> : vector<8xf32>
    %296 = vector.multi_reduction <add>, %295, %cst_111 [1] : vector<8x32xf32> to vector<8xf32>
    %297 = vector.shape_cast %296 : vector<8xf32> to vector<8x1xf32>
    %cst_112 = arith.constant 3.200000e+01 : f32
    %298 = vector.broadcast %cst_112 : f32 to vector<8x1xf32>
    %299 = arith.divf %297, %298 : vector<8x1xf32>
    %300 = vector.broadcast %299 : vector<8x1xf32> to vector<8x32xf32>
    %301 = arith.subf %295, %300 : vector<8x32xf32>
    %302 = arith.mulf %301, %301 : vector<8x32xf32>
    %cst_113 = arith.constant dense<0.000000e+00> : vector<8xf32>
    %303 = vector.multi_reduction <add>, %302, %cst_113 [1] : vector<8x32xf32> to vector<8xf32>
    %304 = vector.shape_cast %303 : vector<8xf32> to vector<8x1xf32>
    %cst_114 = arith.constant 3.200000e+01 : f32
    %305 = vector.broadcast %cst_114 : f32 to vector<8x1xf32>
    %306 = arith.divf %304, %305 : vector<8x1xf32>
    %307 = vector.broadcast %299 : vector<8x1xf32> to vector<8x32xf32>
    %308 = arith.subf %295, %307 : vector<8x32xf32>
    %cst_115 = arith.constant 9.99999974E-6 : f32
    %309 = vector.broadcast %cst_115 : f32 to vector<8x1xf32>
    %310 = arith.addf %306, %309 : vector<8x1xf32>
    %311 = math.rsqrt %310 : vector<8x1xf32>
    %312 = vector.broadcast %311 : vector<8x1xf32> to vector<8x32xf32>
    %313 = arith.mulf %308, %312 : vector<8x32xf32>
    %314 = vector.broadcast %12 : vector<1x32xf32> to vector<8x32xf32>
    %315 = arith.mulf %313, %314 : vector<8x32xf32>
    %316 = vector.broadcast %14 : vector<1x32xf32> to vector<8x32xf32>
    %317 = arith.addf %315, %316 : vector<8x32xf32>
    %318 = arith.truncf %317 : vector<8x32xf32> to vector<8x32xbf16>
    %cst_116 = arith.constant dense<0.000000e+00> : vector<8x64xf32>
    %319 = tpu.matmul %318, %16, %cst_116 {dimension_numbers = #tpu.dot_dimension_numbers<[1], [0], [0], [1], [0, 0, 1, 1], [], []>} : vector<8x32xbf16>, vector<32x64xbf16>, vector<8x64xf32> -> vector<8x64xf32>
    %320 = vector.broadcast %18 : vector<1x64xf32> to vector<8x64xf32>
    %321 = arith.addf %319, %320 : vector<8x64xf32>
    %cst_117 = arith.constant 0.000000e+00 : f32
    %322 = vector.broadcast %cst_117 : f32 to vector<8x64xf32>
    %323 = arith.maximumf %321, %322 : vector<8x64xf32>
    %324 = arith.truncf %323 : vector<8x64xf32> to vector<8x64xbf16>
    %cst_118 = arith.constant dense<0.000000e+00> : vector<8x32xf32>
    %325 = tpu.matmul %324, %20, %cst_118 {dimension_numbers = #tpu.dot_dimension_numbers<[1], [0], [0], [1], [0, 0, 1, 1], [], []>} : vector<8x64xbf16>, vector<64x32xbf16>, vector<8x32xf32> -> vector<8x32xf32>
    %326 = vector.broadcast %22 : vector<1x32xf32> to vector<8x32xf32>
    %327 = arith.addf %325, %326 : vector<8x32xf32>
    %328 = arith.addf %327, %317 : vector<8x32xf32>
    %cst_119 = arith.constant dense<0.000000e+00> : vector<8xf32>
    %329 = vector.multi_reduction <add>, %328, %cst_119 [1] : vector<8x32xf32> to vector<8xf32>
    %330 = vector.shape_cast %329 : vector<8xf32> to vector<8x1xf32>
    %cst_120 = arith.constant 3.200000e+01 : f32
    %331 = vector.broadcast %cst_120 : f32 to vector<8x1xf32>
    %332 = arith.divf %330, %331 : vector<8x1xf32>
    %333 = vector.broadcast %332 : vector<8x1xf32> to vector<8x32xf32>
    %334 = arith.subf %328, %333 : vector<8x32xf32>
    %335 = arith.mulf %334, %334 : vector<8x32xf32>
    %cst_121 = arith.constant dense<0.000000e+00> : vector<8xf32>
    %336 = vector.multi_reduction <add>, %335, %cst_121 [1] : vector<8x32xf32> to vector<8xf32>
    %337 = vector.shape_cast %336 : vector<8xf32> to vector<8x1xf32>
    %cst_122 = arith.constant 3.200000e+01 : f32
    %338 = vector.broadcast %cst_122 : f32 to vector<8x1xf32>
    %339 = arith.divf %337, %338 : vector<8x1xf32>
    %340 = vector.broadcast %332 : vector<8x1xf32> to vector<8x32xf32>
    %341 = arith.subf %328, %340 : vector<8x32xf32>
    %cst_123 = arith.constant 9.99999974E-6 : f32
    %342 = vector.broadcast %cst_123 : f32 to vector<8x1xf32>
    %343 = arith.addf %339, %342 : vector<8x1xf32>
    %344 = math.rsqrt %343 : vector<8x1xf32>
    %345 = vector.broadcast %344 : vector<8x1xf32> to vector<8x32xf32>
    %346 = arith.mulf %341, %345 : vector<8x32xf32>
    %347 = vector.broadcast %24 : vector<1x32xf32> to vector<8x32xf32>
    %348 = arith.mulf %346, %347 : vector<8x32xf32>
    %349 = vector.broadcast %26 : vector<1x32xf32> to vector<8x32xf32>
    %350 = arith.addf %348, %349 : vector<8x32xf32>
    %c1_124 = arith.constant 1 : index
    %c0_125 = arith.constant 0 : index
    %c0_126 = arith.constant 0 : index
    %351 = vector.load %arg18[%c1_124, %c0_125, %c0_126] : memref<2x8x32xf32, #tpu.memory_space<vmem>>, vector<1x8x32xf32>
    %352 = vector.shape_cast %351 : vector<1x8x32xf32> to vector<8x32xf32>
    %353 = vector.shape_cast %350 : vector<8x32xf32> to vector<1x8x32xf32>
    tpu.vector_store %arg18[%c1_124, %c0_125, %c0_126], %353 {strides = array<i32>} : memref<2x8x32xf32, #tpu.memory_space<vmem>>, vector<1x8x32xf32>,
    %c1_i32_127 = arith.constant 1 : i32
    %354 = arith.cmpi eq, %arg1, %c1_i32_127 : i32
    %355 = arith.extui %354 : i1 to i32
    %c0_i32_128 = arith.constant 0 : i32
    %356 = arith.cmpi ne, %355, %c0_i32_128 : i32
    scf.if %356 {
      %c0_129 = arith.constant 0 : index
      %c0_130 = arith.constant 0 : index
      %357 = vector.load %arg4[%c0_129, %c0_130] : memref<1x32xf32, #tpu.memory_space<vmem>>, vector<1x32xf32>
      %c0_131 = arith.constant 0 : index
      %c0_132 = arith.constant 0 : index
      %358 = vector.load %arg5[%c0_131, %c0_132] : memref<1x32xf32, #tpu.memory_space<vmem>>, vector<1x32xf32>
      %cst_133 = arith.constant dense<0.000000e+00> : vector<8xf32>
      %359 = vector.multi_reduction <add>, %350, %cst_133 [1] : vector<8x32xf32> to vector<8xf32>
      %360 = vector.shape_cast %359 : vector<8xf32> to vector<8x1xf32>
      %cst_134 = arith.constant 3.200000e+01 : f32
      %361 = vector.broadcast %cst_134 : f32 to vector<8x1xf32>
      %362 = arith.divf %360, %361 : vector<8x1xf32>
      %363 = vector.broadcast %362 : vector<8x1xf32> to vector<8x32xf32>
      %364 = arith.subf %350, %363 : vector<8x32xf32>
      %365 = arith.mulf %364, %364 : vector<8x32xf32>
      %cst_135 = arith.constant dense<0.000000e+00> : vector<8xf32>
      %366 = vector.multi_reduction <add>, %365, %cst_135 [1] : vector<8x32xf32> to vector<8xf32>
      %367 = vector.shape_cast %366 : vector<8xf32> to vector<8x1xf32>
      %cst_136 = arith.constant 3.200000e+01 : f32
      %368 = vector.broadcast %cst_136 : f32 to vector<8x1xf32>
      %369 = arith.divf %367, %368 : vector<8x1xf32>
      %370 = vector.broadcast %362 : vector<8x1xf32> to vector<8x32xf32>
      %371 = arith.subf %350, %370 : vector<8x32xf32>
      %cst_137 = arith.constant 9.99999996E-13 : f32
      %372 = vector.broadcast %cst_137 : f32 to vector<8x1xf32>
      %373 = arith.addf %369, %372 : vector<8x1xf32>
      %374 = math.rsqrt %373 : vector<8x1xf32>
      %375 = vector.broadcast %374 : vector<8x1xf32> to vector<8x32xf32>
      %376 = arith.mulf %371, %375 : vector<8x32xf32>
      %377 = vector.broadcast %357 : vector<1x32xf32> to vector<8x32xf32>
      %378 = arith.mulf %376, %377 : vector<8x32xf32>
      %379 = vector.broadcast %358 : vector<1x32xf32> to vector<8x32xf32>
      %380 = arith.addf %378, %379 : vector<8x32xf32>
      %c1_138 = arith.constant 1 : index
      %c0_139 = arith.constant 0 : index
      %c0_140 = arith.constant 0 : index
      %381 = vector.load %arg18[%c1_138, %c0_139, %c0_140] : memref<2x8x32xf32, #tpu.memory_space<vmem>>, vector<1x8x32xf32>
      %382 = vector.shape_cast %381 : vector<1x8x32xf32> to vector<8x32xf32>
      %383 = vector.shape_cast %380 : vector<8x32xf32> to vector<1x8x32xf32>
      tpu.vector_store %arg18[%c1_138, %c0_139, %c0_140], %383 {strides = array<i32>} : memref<2x8x32xf32, #tpu.memory_space<vmem>>, vector<1x8x32xf32>,
      %cst_141 = arith.constant dense<0.000000e+00> : vector<1x32xf32>
      %384 = tpu.matmul %195, %380, %cst_141 {dimension_numbers = #tpu.dot_dimension_numbers<[1], [0], [0], [1], [0, 0, 1, 1], [], []>} : vector<1x8xf32>, vector<8x32xf32>, vector<1x32xf32> -> vector<1x32xf32>
      %cst_142 = arith.constant dense<0.000000e+00> : vector<1xf32>
      %385 = vector.multi_reduction <add>, %195, %cst_142 [1] : vector<1x8xf32> to vector<1xf32>
      %386 = vector.shape_cast %385 : vector<1xf32> to vector<1x1xf32>
      %cst_143 = arith.constant 9.99999971E-10 : f32
      %387 = vector.broadcast %cst_143 : f32 to vector<1x1xf32>
      %388 = arith.maximumf %386, %387 : vector<1x1xf32>
      %389 = vector.broadcast %388 : vector<1x1xf32> to vector<1x32xf32>
      %390 = arith.divf %384, %389 : vector<1x32xf32>
      %c1_144 = arith.constant 1 : index
      %c0_145 = arith.constant 0 : index
      %c0_146 = arith.constant 0 : index
      %391 = vector.load %arg19[%c1_144, %c0_145, %c0_146] : memref<2x1x32xf32, #tpu.memory_space<vmem>>, vector<1x1x32xf32>
      %392 = vector.shape_cast %391 : vector<1x1x32xf32> to vector<1x32xf32>
      %393 = vector.shape_cast %390 : vector<1x32xf32> to vector<1x1x32xf32>
      tpu.vector_store %arg19[%c1_144, %c0_145, %c0_146], %393 {strides = array<i32>} : memref<2x1x32xf32, #tpu.memory_space<vmem>>, vector<1x1x32xf32>,
    } else {
    }
    return
  }
  func.func @transform_0(%arg0: i32, %arg1: i32) -> (i32, i32, i32) {
    %c0_i32 = arith.constant 0 : i32
    %c0_i32_0 = arith.constant 0 : i32
    %c0_i32_1 = arith.constant 0 : i32
    return %arg0, %c0_i32, %c0_i32_0 : i32, i32, i32
  }
  func.func @transform_1(%arg0: i32, %arg1: i32) -> (i32, i32, i32) {
    %c0_i32 = arith.constant 0 : i32
    %c0_i32_0 = arith.constant 0 : i32
    %c0_i32_1 = arith.constant 0 : i32
    return %arg0, %c0_i32, %c0_i32_0 : i32, i32, i32
  }
  func.func @transform_2(%arg0: i32, %arg1: i32) -> (i32, i32) {
    %c0_i32 = arith.constant 0 : i32
    %c0_i32_0 = arith.constant 0 : i32
    %c0_i32_1 = arith.constant 0 : i32
    return %c0_i32, %c0_i32_0 : i32, i32
  }
  func.func @transform_3(%arg0: i32, %arg1: i32) -> (i32, i32) {
    %c0_i32 = arith.constant 0 : i32
    %c0_i32_0 = arith.constant 0 : i32
    %c0_i32_1 = arith.constant 0 : i32
    return %c0_i32, %c0_i32_0 : i32, i32
  }
  func.func @transform_4(%arg0: i32, %arg1: i32) -> (i32, i32, i32) {
    %c0_i32 = arith.constant 0 : i32
    %c0_i32_0 = arith.constant 0 : i32
    %c0_i32_1 = arith.constant 0 : i32
    return %arg1, %c0_i32, %c0_i32_0 : i32, i32, i32
  }
  func.func @transform_5(%arg0: i32, %arg1: i32) -> (i32, i32, i32) {
    %c0_i32 = arith.constant 0 : i32
    %c0_i32_0 = arith.constant 0 : i32
    %c0_i32_1 = arith.constant 0 : i32
    return %arg1, %c0_i32, %c0_i32_0 : i32, i32, i32
  }
  func.func @transform_6(%arg0: i32, %arg1: i32) -> (i32, i32, i32) {
    %c0_i32 = arith.constant 0 : i32
    %c0_i32_0 = arith.constant 0 : i32
    %c0_i32_1 = arith.constant 0 : i32
    return %arg1, %c0_i32, %c0_i32_0 : i32, i32, i32
  }
  func.func @transform_7(%arg0: i32, %arg1: i32) -> (i32, i32, i32) {
    %c0_i32 = arith.constant 0 : i32
    %c0_i32_0 = arith.constant 0 : i32
    %c0_i32_1 = arith.constant 0 : i32
    return %arg1, %c0_i32, %c0_i32_0 : i32, i32, i32
  }
  func.func @transform_8(%arg0: i32, %arg1: i32) -> (i32, i32, i32) {
    %c0_i32 = arith.constant 0 : i32
    %c0_i32_0 = arith.constant 0 : i32
    %c0_i32_1 = arith.constant 0 : i32
    return %arg1, %c0_i32, %c0_i32_0 : i32, i32, i32
  }
  func.func @transform_9(%arg0: i32, %arg1: i32) -> (i32, i32, i32) {
    %c0_i32 = arith.constant 0 : i32
    %c0_i32_0 = arith.constant 0 : i32
    %c0_i32_1 = arith.constant 0 : i32
    return %arg1, %c0_i32, %c0_i32_0 : i32, i32, i32
  }
  func.func @transform_10(%arg0: i32, %arg1: i32) -> (i32, i32, i32) {
    %c0_i32 = arith.constant 0 : i32
    %c0_i32_0 = arith.constant 0 : i32
    %c0_i32_1 = arith.constant 0 : i32
    return %arg1, %c0_i32, %c0_i32_0 : i32, i32, i32
  }
  func.func @transform_11(%arg0: i32, %arg1: i32) -> (i32, i32, i32) {
    %c0_i32 = arith.constant 0 : i32
    %c0_i32_0 = arith.constant 0 : i32
    %c0_i32_1 = arith.constant 0 : i32
    return %arg1, %c0_i32, %c0_i32_0 : i32, i32, i32
  }
  func.func @transform_12(%arg0: i32, %arg1: i32) -> (i32, i32, i32) {
    %c0_i32 = arith.constant 0 : i32
    %c0_i32_0 = arith.constant 0 : i32
    %c0_i32_1 = arith.constant 0 : i32
    return %arg1, %c0_i32, %c0_i32_0 : i32, i32, i32
  }
  func.func @transform_13(%arg0: i32, %arg1: i32) -> (i32, i32, i32) {
    %c0_i32 = arith.constant 0 : i32
    %c0_i32_0 = arith.constant 0 : i32
    %c0_i32_1 = arith.constant 0 : i32
    return %arg1, %c0_i32, %c0_i32_0 : i32, i32, i32
  }
  func.func @transform_14(%arg0: i32, %arg1: i32) -> (i32, i32, i32) {
    %c0_i32 = arith.constant 0 : i32
    %c0_i32_0 = arith.constant 0 : i32
    %c0_i32_1 = arith.constant 0 : i32
    return %arg1, %c0_i32, %c0_i32_0 : i32, i32, i32
  }
  func.func @transform_15(%arg0: i32, %arg1: i32) -> (i32, i32, i32) {
    %c0_i32 = arith.constant 0 : i32
    %c0_i32_0 = arith.constant 0 : i32
    %c0_i32_1 = arith.constant 0 : i32
    return %arg1, %c0_i32, %c0_i32_0 : i32, i32, i32
  }
  func.func @transform_16(%arg0: i32, %arg1: i32) -> (i32, i32, i32) {
    %c0_i32 = arith.constant 0 : i32
    %c0_i32_0 = arith.constant 0 : i32
    %c0_i32_1 = arith.constant 0 : i32
    return %arg0, %c0_i32, %c0_i32_0 : i32, i32, i32
  }
  func.func @transform_17(%arg0: i32, %arg1: i32) -> (i32, i32, i32) {
    %c0_i32 = arith.constant 0 : i32
    %c0_i32_0 = arith.constant 0 : i32
    %c0_i32_1 = arith.constant 0 : i32
    return %arg0, %c0_i32, %c0_i32_0 : i32, i32, i32
  }
}

</mosaic_0001>

<llo_original>
// kernel: tpu_custom_call.1
$region0: #{tpu_custom_call.1}
  #allocation0 [shape = 'u32[]', space=smem, size = 0x4, offset = 0x4, fixed_abs, tag = 'smem constant byte address 0x4 - core index']
  #allocation1 [shape = 'u32[144,128]{1,0:T(1,128)}', space=vmem, size = 0x12000, scoped, tag = 'internal scratch']
  %s0 = inlined_call_operand.hbm [shape: f32[2,8,32], index: 0, kind: input, shape index: {}]
  %s1 = inlined_call_operand.vmem [shape: f32[2,1,8], index: 1, kind: input, shape index: {}]
  %s2 = inlined_call_operand.vmem [shape: f32[1,32], index: 2, kind: input, shape index: {}]
  %s3 = inlined_call_operand.hbm [shape: f32[1,32], index: 3, kind: input, shape index: {}]
  %s4 = inlined_call_operand.vmem [shape: bf16[2,32,96], index: 4, kind: input, shape index: {}]
  %s5 = inlined_call_operand.vmem [shape: f32[2,1,96], index: 5, kind: input, shape index: {}]
  %s6 = inlined_call_operand.vmem [shape: bf16[2,32,32], index: 6, kind: input, shape index: {}]
  %s7 = inlined_call_operand.vmem [shape: f32[2,1,32], index: 7, kind: input, shape index: {}]
  %s8 = inlined_call_operand.vmem [shape: f32[2,1,32], index: 8, kind: input, shape index: {}]
  %s9 = inlined_call_operand.vmem [shape: f32[2,1,32], index: 9, kind: input, shape index: {}]
  %s10 = inlined_call_operand.vmem [shape: bf16[2,32,64], index: 10, kind: input, shape index: {}]
  %s11 = inlined_call_operand.vmem [shape: f32[2,1,64], index: 11, kind: input, shape index: {}]
  %s12 = inlined_call_operand.vmem [shape: bf16[2,64,32], index: 12, kind: input, shape index: {}]
  %s13 = inlined_call_operand.vmem [shape: f32[2,1,32], index: 13, kind: input, shape index: {}]
  %s14 = inlined_call_operand.vmem [shape: f32[2,1,32], index: 14, kind: input, shape index: {}]
  %s15 = inlined_call_operand.vmem [shape: f32[2,1,32], index: 15, kind: input, shape index: {}]
  %s16 = inlined_call_operand.hbm [shape: f32[2,8,32], index: 16, kind: output, shape index: {0}]
  %s17 = inlined_call_operand.hbm [shape: f32[2,1,32], index: 17, kind: output, shape index: {1}]
  %18 = xla_tuple %s16, %s17
  %s19 = sld [smem:[#allocation0]]
  $region125: #{tpu_custom_call.1} parent=0
    _
  %s21 = ssub.s32 1, %s19
  %s22 = scalar_select 0, %s21, %s19
  $region1: #{tpu_custom_call.1} parent=0
    #allocation2 [shape = 'u8[8192]{0}', space=vmem, size = 0x2000, scoped, tag = 'input window, operand 0, single buffered']
    #allocation3 [shape = 's32[2]{0}', space=sflag, size = 0x8, scoped, tag = 'scoped memory for tpu_custom_call.1']
    #allocation4 [shape = 's32[2]{0}', space=sflag, size = 0x8, scoped, tag = 'scoped memory for tpu_custom_call.1']
    #allocation5 [shape = 'u8[512]{0}', space=vmem, size = 0x400, scoped, tag = 'input window, operand 3, single buffered']
    #allocation6 [shape = 's32[1]{0}', space=sflag, size = 0x4, scoped, tag = 'scoped memory for tpu_custom_call.1']
    #allocation7 [shape = 'u8[8192]{0}', space=vmem, size = 0x2000, scoped, tag = 'output window, operand 0, single buffered']
    #allocation8 [shape = 'u8[1024]{0}', space=vmem, size = 0x400, scoped, tag = 'output window, operand 1, single buffered']
    #allocation9 [shape = 's32[1]{0}', space=sflag, size = 0x4, scoped, tag = 'scoped memory for tpu_custom_call.1']
    %23 = vsyncpa [#allocation3], 0
    %24 = vsyncpa [#allocation6], 0
    %25 = vsyncpa [#allocation4], 0
    %26 = vsyncpa [#allocation9], 0
    loop: start=0, step=1, limit=4
    $region2: #{tpu_custom_call.1} parent=1 // loop_pre_header
      _
    $region3: #{tpu_custom_call.1} parent=1 // loop_header
      %s28 = sphi 0, %s32
      %p29 = scmp.ge.s32.totalorder %s28, 4
      %s35 = sphi 0, %s47
      %s36 = sphi 0, %s43
      %s37 = sphi 0, %s35
      %s38 = sphi 0, %s36
      %s39 = sphi 0, %s37
      %s40 = sphi 0, %s38
      %s50 = sphi 0, %s52
      %s53 = sphi 0, %s50
      %s54 = sphi 0, %s53
      %s70 = sphi 0, %s54
      %s76 = sphi 0, %s78
      %s79 = sphi 0, %s76
      %s80 = sphi 0, %s79
      %s96 = sphi 0, %s80
      %s100 = sphi 0, %s100
      %s102 = sphi 0, %s100
      %s103 = sphi 0, %s102
      %s117 = sphi 0, %s103
      %s121 = sphi 0, %s121
      %s123 = sphi 0, %s121
      %s124 = sphi 0, %s123
      %s138 = sphi 0, %s124
      %s144 = sphi 0, %s146
      %s147 = sphi 0, %s144
      %s148 = sphi 0, %s147
      %s164 = sphi 0, %s148
      %s170 = sphi 0, %s172
      %s173 = sphi 0, %s170
      %s174 = sphi 0, %s173
      %s190 = sphi 0, %s174
      %s196 = sphi 0, %s198
      %s199 = sphi 0, %s196
      %s200 = sphi 0, %s199
      %s216 = sphi 0, %s200
      %s222 = sphi 0, %s224
      %s225 = sphi 0, %s222
      %s226 = sphi 0, %s225
      %s242 = sphi 0, %s226
      %s248 = sphi 0, %s250
      %s251 = sphi 0, %s248
      %s252 = sphi 0, %s251
      %s268 = sphi 0, %s252
      %s274 = sphi 0, %s276
      %s277 = sphi 0, %s274
      %s278 = sphi 0, %s277
      %s294 = sphi 0, %s278
      %s300 = sphi 0, %s302
      %s303 = sphi 0, %s300
      %s304 = sphi 0, %s303
      %s320 = sphi 0, %s304
      %s326 = sphi 0, %s328
      %s329 = sphi 0, %s326
      %s330 = sphi 0, %s329
      %s346 = sphi 0, %s330
      %s352 = sphi 0, %s354
      %s355 = sphi 0, %s352
      %s356 = sphi 0, %s355
      %s372 = sphi 0, %s356
      %s378 = sphi 0, %s380
      %s381 = sphi 0, %s378
      %s382 = sphi 0, %s381
      %s398 = sphi 0, %s382
      %s404 = sphi 0, %s406
      %s407 = sphi 0, %s404
      %s408 = sphi 0, %s407
      %s424 = sphi 0, %s408
      %s430 = sphi 0, %s432
      %s433 = sphi 0, %s430
      %s434 = sphi 0, %s433
      %s450 = sphi 0, %s434
      %s456 = sphi 0, %s458
      %s459 = sphi 0, %s456
      %s460 = sphi 0, %s459
      %s476 = sphi 0, %s460
      %s482 = sphi 0, %s484
      %s485 = sphi 0, %s482
      %s486 = sphi 0, %s485
      %s502 = sphi 0, %s486
    $region4: #{tpu_custom_call.1} parent=1 // loop_header_branch
      %31 = sbr.rel (%p29) target = $region8
    $region5: #{tpu_custom_call.1} parent=1 // loop_body
      %s33 = ssub.s32 %s28, 1
      %s34 = ssub.s32 %s28, 2
      %s41 = sadd.s32 1, %s36
      %p42 = scmp.ge.s32.totalorder %s41, 2
      %s43 = scalar_select %p42, 0, %s41
      %s44 = sadd.s32 1, %s35
      %s45 = scalar_select %p42, %s44, %s35
      %p46 = scmp.ge.s32.totalorder %s45, 1
      %s47 = scalar_select %p46, 0, %s45
      %s48 = ssub.s32 %s35, %s47
      %p49 = scmp.eq.s32.totalorder %s48, 0
      %s51 = sadd.s32 %s50, 1
      %s52 = scalar_select %p49, %s50, %s51
      %p55 = pneg %p49
      %p56 = scmp.eq.s32.totalorder %s28, 1
      %p57 = por %p55, %p56
      %p58 = scmp.ne.s32.totalorder %s50, %s53
      %p59 = scmp.eq.s32.totalorder %s28, 0
      %p60 = por %p58, %p59
      %p61 = scmp.ne.s32.totalorder %s50, %s53
      %p62 = scmp.eq.s32.totalorder %s33, 1
      %p63 = por %p61, %p62
      %p64 = scmp.ne.s32.totalorder %s53, %s54
      %p65 = scmp.eq.s32.totalorder %s33, 0
      %p66 = por %p64, %p65
      %p67 = scmp.ne.s32.totalorder %s53, %s54
      %p68 = scmp.eq.s32.totalorder %s34, 1
      %p69 = por %p67, %p68
      %p71 = scmp.ne.s32.totalorder %s54, %s70
      %p72 = scmp.eq.s32.totalorder %s34, 0
      %p73 = por %p71, %p72
      %s74 = ssub.s32 %s35, %s47
      %p75 = scmp.eq.s32.totalorder %s74, 0
      %s77 = sadd.s32 %s76, 1
      %s78 = scalar_select %p75, %s76, %s77
      %p81 = pneg %p75
      %p82 = scmp.eq.s32.totalorder %s28, 1
      %p83 = por %p81, %p82
      %p84 = scmp.ne.s32.totalorder %s76, %s79
      %p85 = scmp.eq.s32.totalorder %s28, 0
      %p86 = por %p84, %p85
      %p87 = scmp.ne.s32.totalorder %s76, %s79
      %p88 = scmp.eq.s32.totalorder %s33, 1
      %p89 = por %p87, %p88
      %p90 = scmp.ne.s32.totalorder %s79, %s80
      %p91 = scmp.eq.s32.totalorder %s33, 0
      %p92 = por %p90, %p91
      %p93 = scmp.ne.s32.totalorder %s79, %s80
      %p94 = scmp.eq.s32.totalorder %s34, 1
      %p95 = por %p93, %p94
      %p97 = scmp.ne.s32.totalorder %s80, %s96
      %p98 = scmp.eq.s32.totalorder %s34, 0
      %p99 = por %p97, %p98
      %s101 = sadd.s32 %s100, 1
      %p104 = scmp.eq.s32.totalorder %s28, 1
      %p105 = scmp.ne.s32.totalorder %s100, %s102
      %p106 = scmp.eq.s32.totalorder %s28, 0
      %p107 = por %p105, %p106
      %p108 = scmp.ne.s32.totalorder %s100, %s102
      %p109 = scmp.eq.s32.totalorder %s33, 1
      %p110 = por %p108, %p109
      %p111 = scmp.ne.s32.totalorder %s102, %s103
      %p112 = scmp.eq.s32.totalorder %s33, 0
      %p113 = por %p111, %p112
      %p114 = scmp.ne.s32.totalorder %s102, %s103
      %p115 = scmp.eq.s32.totalorder %s34, 1
      %p116 = por %p114, %p115
      %p118 = scmp.ne.s32.totalorder %s103, %s117
      %p119 = scmp.eq.s32.totalorder %s34, 0
      %p120 = por %p118, %p119
      %s122 = sadd.s32 %s121, 1
      %p125 = scmp.eq.s32.totalorder %s28, 1
      %p126 = scmp.ne.s32.totalorder %s121, %s123
      %p127 = scmp.eq.s32.totalorder %s28, 0
      %p128 = por %p126, %p127
      %p129 = scmp.ne.s32.totalorder %s121, %s123
      %p130 = scmp.eq.s32.totalorder %s33, 1
      %p131 = por %p129, %p130
      %p132 = scmp.ne.s32.totalorder %s123, %s124
      %p133 = scmp.eq.s32.totalorder %s33, 0
      %p134 = por %p132, %p133
      %p135 = scmp.ne.s32.totalorder %s123, %s124
      %p136 = scmp.eq.s32.totalorder %s34, 1
      %p137 = por %p135, %p136
      %p139 = scmp.ne.s32.totalorder %s124, %s138
      %p140 = scmp.eq.s32.totalorder %s34, 0
      %p141 = por %p139, %p140
      %s142 = ssub.s32 %s36, %s43
      %p143 = scmp.eq.s32.totalorder %s142, 0
      %s145 = sadd.s32 %s144, 1
      %s146 = scalar_select %p143, %s144, %s145
      %p149 = pneg %p143
      %p150 = scmp.eq.s32.totalorder %s28, 1
      %p151 = por %p149, %p150
      %p152 = scmp.ne.s32.totalorder %s144, %s147
      %p153 = scmp.eq.s32.totalorder %s28, 0
      %p154 = por %p152, %p153
      %p155 = scmp.ne.s32.totalorder %s144, %s147
      %p156 = scmp.eq.s32.totalorder %s33, 1
      %p157 = por %p155, %p156
      %p158 = scmp.ne.s32.totalorder %s147, %s148
      %p159 = scmp.eq.s32.totalorder %s33, 0
      %p160 = por %p158, %p159
      %p161 = scmp.ne.s32.totalorder %s147, %s148
      %p162 = scmp.eq.s32.totalorder %s34, 1
      %p163 = por %p161, %p162
      %p165 = scmp.ne.s32.totalorder %s148, %s164
      %p166 = scmp.eq.s32.totalorder %s34, 0
      %p167 = por %p165, %p166
      %s168 = ssub.s32 %s36, %s43
      %p169 = scmp.eq.s32.totalorder %s168, 0
      %s171 = sadd.s32 %s170, 1
      %s172 = scalar_select %p169, %s170, %s171
      %p175 = pneg %p169
      %p176 = scmp.eq.s32.totalorder %s28, 1
      %p177 = por %p175, %p176
      %p178 = scmp.ne.s32.totalorder %s170, %s173
      %p179 = scmp.eq.s32.totalorder %s28, 0
      %p180 = por %p178, %p179
      %p181 = scmp.ne.s32.totalorder %s170, %s173
      %p182 = scmp.eq.s32.totalorder %s33, 1
      %p183 = por %p181, %p182
      %p184 = scmp.ne.s32.totalorder %s173, %s174
      %p185 = scmp.eq.s32.totalorder %s33, 0
      %p186 = por %p184, %p185
      %p187 = scmp.ne.s32.totalorder %s173, %s174
      %p188 = scmp.eq.s32.totalorder %s34, 1
      %p189 = por %p187, %p188
      %p191 = scmp.ne.s32.totalorder %s174, %s190
      %p192 = scmp.eq.s32.totalorder %s34, 0
      %p193 = por %p191, %p192
      %s194 = ssub.s32 %s36, %s43
      %p195 = scmp.eq.s32.totalorder %s194, 0
      %s197 = sadd.s32 %s196, 1
      %s198 = scalar_select %p195, %s196, %s197
      %p201 = pneg %p195
      %p202 = scmp.eq.s32.totalorder %s28, 1
      %p203 = por %p201, %p202
      %p204 = scmp.ne.s32.totalorder %s196, %s199
      %p205 = scmp.eq.s32.totalorder %s28, 0
      %p206 = por %p204, %p205
      %p207 = scmp.ne.s32.totalorder %s196, %s199
      %p208 = scmp.eq.s32.totalorder %s33, 1
      %p209 = por %p207, %p208
      %p210 = scmp.ne.s32.totalorder %s199, %s200
      %p211 = scmp.eq.s32.totalorder %s33, 0
      %p212 = por %p210, %p211
      %p213 = scmp.ne.s32.totalorder %s199, %s200
      %p214 = scmp.eq.s32.totalorder %s34, 1
      %p215 = por %p213, %p214
      %p217 = scmp.ne.s32.totalorder %s200, %s216
      %p218 = scmp.eq.s32.totalorder %s34, 0
      %p219 = por %p217, %p218
      %s220 = ssub.s32 %s36, %s43
      %p221 = scmp.eq.s32.totalorder %s220, 0
      %s223 = sadd.s32 %s222, 1
      %s224 = scalar_select %p221, %s222, %s223
      %p227 = pneg %p221
      %p228 = scmp.eq.s32.totalorder %s28, 1
      %p229 = por %p227, %p228
      %p230 = scmp.ne.s32.totalorder %s222, %s225
      %p231 = scmp.eq.s32.totalorder %s28, 0
      %p232 = por %p230, %p231
      %p233 = scmp.ne.s32.totalorder %s222, %s225
      %p234 = scmp.eq.s32.totalorder %s33, 1
      %p235 = por %p233, %p234
      %p236 = scmp.ne.s32.totalorder %s225, %s226
      %p237 = scmp.eq.s32.totalorder %s33, 0
      %p238 = por %p236, %p237
      %p239 = scmp.ne.s32.totalorder %s225, %s226
      %p240 = scmp.eq.s32.totalorder %s34, 1
      %p241 = por %p239, %p240
      %p243 = scmp.ne.s32.totalorder %s226, %s242
      %p244 = scmp.eq.s32.totalorder %s34, 0
      %p245 = por %p243, %p244
      %s246 = ssub.s32 %s36, %s43
      %p247 = scmp.eq.s32.totalorder %s246, 0
      %s249 = sadd.s32 %s248, 1
      %s250 = scalar_select %p247, %s248, %s249
      %p253 = pneg %p247
      %p254 = scmp.eq.s32.totalorder %s28, 1
      %p255 = por %p253, %p254
      %p256 = scmp.ne.s32.totalorder %s248, %s251
      %p257 = scmp.eq.s32.totalorder %s28, 0
      %p258 = por %p256, %p257
      %p259 = scmp.ne.s32.totalorder %s248, %s251
      %p260 = scmp.eq.s32.totalorder %s33, 1
      %p261 = por %p259, %p260
      %p262 = scmp.ne.s32.totalorder %s251, %s252
      %p263 = scmp.eq.s32.totalorder %s33, 0
      %p264 = por %p262, %p263
      %p265 = scmp.ne.s32.totalorder %s251, %s252
      %p266 = scmp.eq.s32.totalorder %s34, 1
      %p267 = por %p265, %p266
      %p269 = scmp.ne.s32.totalorder %s252, %s268
      %p270 = scmp.eq.s32.totalorder %s34, 0
      %p271 = por %p269, %p270
      %s272 = ssub.s32 %s36, %s43
      %p273 = scmp.eq.s32.totalorder %s272, 0
      %s275 = sadd.s32 %s274, 1
      %s276 = scalar_select %p273, %s274, %s275
      %p279 = pneg %p273
      %p280 = scmp.eq.s32.totalorder %s28, 1
      %p281 = por %p279, %p280
      %p282 = scmp.ne.s32.totalorder %s274, %s277
      %p283 = scmp.eq.s32.totalorder %s28, 0
      %p284 = por %p282, %p283
      %p285 = scmp.ne.s32.totalorder %s274, %s277
      %p286 = scmp.eq.s32.totalorder %s33, 1
      %p287 = por %p285, %p286
      %p288 = scmp.ne.s32.totalorder %s277, %s278
      %p289 = scmp.eq.s32.totalorder %s33, 0
      %p290 = por %p288, %p289
      %p291 = scmp.ne.s32.totalorder %s277, %s278
      %p292 = scmp.eq.s32.totalorder %s34, 1
      %p293 = por %p291, %p292
      %p295 = scmp.ne.s32.totalorder %s278, %s294
      %p296 = scmp.eq.s32.totalorder %s34, 0
      %p297 = por %p295, %p296
      %s298 = ssub.s32 %s36, %s43
      %p299 = scmp.eq.s32.totalorder %s298, 0
      %s301 = sadd.s32 %s300, 1
      %s302 = scalar_select %p299, %s300, %s301
      %p305 = pneg %p299
      %p306 = scmp.eq.s32.totalorder %s28, 1
      %p307 = por %p305, %p306
      %p308 = scmp.ne.s32.totalorder %s300, %s303
      %p309 = scmp.eq.s32.totalorder %s28, 0
      %p310 = por %p308, %p309
      %p311 = scmp.ne.s32.totalorder %s300, %s303
      %p312 = scmp.eq.s32.totalorder %s33, 1
      %p313 = por %p311, %p312
      %p314 = scmp.ne.s32.totalorder %s303, %s304
      %p315 = scmp.eq.s32.totalorder %s33, 0
      %p316 = por %p314, %p315
      %p317 = scmp.ne.s32.totalorder %s303, %s304
      %p318 = scmp.eq.s32.totalorder %s34, 1
      %p319 = por %p317, %p318
      %p321 = scmp.ne.s32.totalorder %s304, %s320
      %p322 = scmp.eq.s32.totalorder %s34, 0
      %p323 = por %p321, %p322
      %s324 = ssub.s32 %s36, %s43
      %p325 = scmp.eq.s32.totalorder %s324, 0
      %s327 = sadd.s32 %s326, 1
      %s328 = scalar_select %p325, %s326, %s327
      %p331 = pneg %p325
      %p332 = scmp.eq.s32.totalorder %s28, 1
      %p333 = por %p331, %p332
      %p334 = scmp.ne.s32.totalorder %s326, %s329
      %p335 = scmp.eq.s32.totalorder %s28, 0
      %p336 = por %p334, %p335
      %p337 = scmp.ne.s32.totalorder %s326, %s329
      %p338 = scmp.eq.s32.totalorder %s33, 1
      %p339 = por %p337, %p338
      %p340 = scmp.ne.s32.totalorder %s329, %s330
      %p341 = scmp.eq.s32.totalorder %s33, 0
      %p342 = por %p340, %p341
      %p343 = scmp.ne.s32.totalorder %s329, %s330
      %p344 = scmp.eq.s32.totalorder %s34, 1
      %p345 = por %p343, %p344
      %p347 = scmp.ne.s32.totalorder %s330, %s346
      %p348 = scmp.eq.s32.totalorder %s34, 0
      %p349 = por %p347, %p348
      %s350 = ssub.s32 %s36, %s43
      %p351 = scmp.eq.s32.totalorder %s350, 0
      %s353 = sadd.s32 %s352, 1
      %s354 = scalar_select %p351, %s352, %s353
      %p357 = pneg %p351
      %p358 = scmp.eq.s32.totalorder %s28, 1
      %p359 = por %p357, %p358
      %p360 = scmp.ne.s32.totalorder %s352, %s355
      %p361 = scmp.eq.s32.totalorder %s28, 0
      %p362 = por %p360, %p361
      %p363 = scmp.ne.s32.totalorder %s352, %s355
      %p364 = scmp.eq.s32.totalorder %s33, 1
      %p365 = por %p363, %p364
      %p366 = scmp.ne.s32.totalorder %s355, %s356
      %p367 = scmp.eq.s32.totalorder %s33, 0
      %p368 = por %p366, %p367
      %p369 = scmp.ne.s32.totalorder %s355, %s356
      %p370 = scmp.eq.s32.totalorder %s34, 1
      %p371 = por %p369, %p370
      %p373 = scmp.ne.s32.totalorder %s356, %s372
      %p374 = scmp.eq.s32.totalorder %s34, 0
      %p375 = por %p373, %p374
      %s376 = ssub.s32 %s36, %s43
      %p377 = scmp.eq.s32.totalorder %s376, 0
      %s379 = sadd.s32 %s378, 1
      %s380 = scalar_select %p377, %s378, %s379
      %p383 = pneg %p377
      %p384 = scmp.eq.s32.totalorder %s28, 1
      %p385 = por %p383, %p384
      %p386 = scmp.ne.s32.totalorder %s378, %s381
      %p387 = scmp.eq.s32.totalorder %s28, 0
      %p388 = por %p386, %p387
      %p389 = scmp.ne.s32.totalorder %s378, %s381
      %p390 = scmp.eq.s32.totalorder %s33, 1
      %p391 = por %p389, %p390
      %p392 = scmp.ne.s32.totalorder %s381, %s382
      %p393 = scmp.eq.s32.totalorder %s33, 0
      %p394 = por %p392, %p393
      %p395 = scmp.ne.s32.totalorder %s381, %s382
      %p396 = scmp.eq.s32.totalorder %s34, 1
      %p397 = por %p395, %p396
      %p399 = scmp.ne.s32.totalorder %s382, %s398
      %p400 = scmp.eq.s32.totalorder %s34, 0
      %p401 = por %p399, %p400
      %s402 = ssub.s32 %s36, %s43
      %p403 = scmp.eq.s32.totalorder %s402, 0
      %s405 = sadd.s32 %s404, 1
      %s406 = scalar_select %p403, %s404, %s405
      %p409 = pneg %p403
      %p410 = scmp.eq.s32.totalorder %s28, 1
      %p411 = por %p409, %p410
      %p412 = scmp.ne.s32.totalorder %s404, %s407
      %p413 = scmp.eq.s32.totalorder %s28, 0
      %p414 = por %p412, %p413
      %p415 = scmp.ne.s32.totalorder %s404, %s407
      %p416 = scmp.eq.s32.totalorder %s33, 1
      %p417 = por %p415, %p416
      %p418 = scmp.ne.s32.totalorder %s407, %s408
      %p419 = scmp.eq.s32.totalorder %s33, 0
      %p420 = por %p418, %p419
      %p421 = scmp.ne.s32.totalorder %s407, %s408
      %p422 = scmp.eq.s32.totalorder %s34, 1
      %p423 = por %p421, %p422
      %p425 = scmp.ne.s32.totalorder %s408, %s424
      %p426 = scmp.eq.s32.totalorder %s34, 0
      %p427 = por %p425, %p426
      %s428 = ssub.s32 %s36, %s43
      %p429 = scmp.eq.s32.totalorder %s428, 0
      %s431 = sadd.s32 %s430, 1
      %s432 = scalar_select %p429, %s430, %s431
      %p435 = pneg %p429
      %p436 = scmp.eq.s32.totalorder %s28, 1
      %p437 = por %p435, %p436
      %p438 = scmp.ne.s32.totalorder %s430, %s433
      %p439 = scmp.eq.s32.totalorder %s28, 0
      %p440 = por %p438, %p439
      %p441 = scmp.ne.s32.totalorder %s430, %s433
      %p442 = scmp.eq.s32.totalorder %s33, 1
      %p443 = por %p441, %p442
      %p444 = scmp.ne.s32.totalorder %s433, %s434
      %p445 = scmp.eq.s32.totalorder %s33, 0
      %p446 = por %p444, %p445
      %p447 = scmp.ne.s32.totalorder %s433, %s434
      %p448 = scmp.eq.s32.totalorder %s34, 1
      %p449 = por %p447, %p448
      %p451 = scmp.ne.s32.totalorder %s434, %s450
      %p452 = scmp.eq.s32.totalorder %s34, 0
      %p453 = por %p451, %p452
      %s454 = ssub.s32 %s35, %s47
      %p455 = scmp.eq.s32.totalorder %s454, 0
      %s457 = sadd.s32 %s456, 1
      %s458 = scalar_select %p455, %s456, %s457
      %p461 = pneg %p455
      %p462 = scmp.eq.s32.totalorder %s28, 1
      %p463 = por %p461, %p462
      %p464 = scmp.ne.s32.totalorder %s456, %s459
      %p465 = scmp.eq.s32.totalorder %s28, 0
      %p466 = por %p464, %p465
      %p467 = scmp.ne.s32.totalorder %s456, %s459
      %p468 = scmp.eq.s32.totalorder %s33, 1
      %p469 = por %p467, %p468
      %p470 = scmp.ne.s32.totalorder %s459, %s460
      %p471 = scmp.eq.s32.totalorder %s33, 0
      %p472 = por %p470, %p471
      %p473 = scmp.ne.s32.totalorder %s459, %s460
      %p474 = scmp.eq.s32.totalorder %s34, 1
      %p475 = por %p473, %p474
      %p477 = scmp.ne.s32.totalorder %s460, %s476
      %p478 = scmp.eq.s32.totalorder %s34, 0
      %p479 = por %p477, %p478
      %s480 = ssub.s32 %s35, %s47
      %p481 = scmp.eq.s32.totalorder %s480, 0
      %s483 = sadd.s32 %s482, 1
      %s484 = scalar_select %p481, %s482, %s483
      %p487 = pneg %p481
      %p488 = scmp.eq.s32.totalorder %s28, 1
      %p489 = por %p487, %p488
      %p490 = scmp.ne.s32.totalorder %s482, %s485
      %p491 = scmp.eq.s32.totalorder %s28, 0
      %p492 = por %p490, %p491
      %p493 = scmp.ne.s32.totalorder %s482, %s485
      %p494 = scmp.eq.s32.totalorder %s33, 1
      %p495 = por %p493, %p494
      %p496 = scmp.ne.s32.totalorder %s485, %s486
      %p497 = scmp.eq.s32.totalorder %s33, 0
      %p498 = por %p496, %p497
      %p499 = scmp.ne.s32.totalorder %s485, %s486
      %p500 = scmp.eq.s32.totalorder %s34, 1
      %p501 = por %p499, %p500
      %p503 = scmp.ne.s32.totalorder %s486, %s502
      %p504 = scmp.eq.s32.totalorder %s34, 0
      %p505 = por %p503, %p504
      %p506 = scmp.le.s32.totalorder 1, %s28
      %p507 = scmp.lt.s32.totalorder %s28, 3
      %p508 = pnand %p506, %p507
      %p509 = pneg %p508
      // Predicated region
      $region9: #{tpu_custom_call.1} parent=5 // pred_check
        _
      $region10: #{tpu_custom_call.1} parent=5 // pred_check_branch
        %511 = sbr.rel (%p508) target = $region12
      $region11: #{tpu_custom_call.1} parent=5 // pred_region
        %s512 = ssub.s32 %s28, 1
        // Predicated region
        $region13: #{tpu_custom_call.1} parent=11 // pred_check
          %p513 = pneg %p66
        $region14: #{tpu_custom_call.1} parent=11 // pred_check_branch
          %515 = sbr.rel (%p513) target = $region16
        $region15: #{tpu_custom_call.1} parent=11 // pred_region
          %s516 = smul.u32 2, %s37
          %s518 = ssub.s32 256, 256
          %519 = vsyncadd [#allocation3], %s518
          %s520 = smul.addr %s516, 128
          %s521 = scalar_lea.hbm %s0, %s520
          %s522 = sshll.u32 [#allocation2], 4
          %s523 = int_to_ptr.vmem [resolvable:$true] %s522
          %528 = dma.hbm_to_vmem [thread:$0]  %s521, 256, %s523, [#allocation3], 128, 128, 8
        $region16: #{tpu_custom_call.1} parent=11 // pred_fallthru
          _
        // Predicated region
        $region17: #{tpu_custom_call.1} parent=11 // pred_check
          %p529 = pneg %p92
        $region18: #{tpu_custom_call.1} parent=11 // pred_check_branch
          %531 = sbr.rel (%p529) target = $region20
        $region19: #{tpu_custom_call.1} parent=11 // pred_region
          %s532 = smul.u32 2, %s37
          %p533 = scmp.lt.s32.totalorder %s532, 1
          %s534 = scalar_select %p533, %s532, 1
          %s535 = scalar_lea.vmem %s1, %s534
          %s536 = smul.u32 2, %s37
        $region20: #{tpu_custom_call.1} parent=11 // pred_fallthru
          _
        // Predicated region
        $region21: #{tpu_custom_call.1} parent=11 // pred_check
          %p537 = pneg %p113
        $region22: #{tpu_custom_call.1} parent=11 // pred_check_branch
          %539 = sbr.rel (%p537) target = $region24
        $region23: #{tpu_custom_call.1} parent=11 // pred_region
          _
        $region24: #{tpu_custom_call.1} parent=11 // pred_fallthru
          _
        // Predicated region
        $region25: #{tpu_custom_call.1} parent=11 // pred_check
          %p540 = pneg %p134
        $region26: #{tpu_custom_call.1} parent=11 // pred_check_branch
          %542 = sbr.rel (%p540) target = $region28
        $region27: #{tpu_custom_call.1} parent=11 // pred_region
          %s544 = ssub.s32 16, 16
          %545 = vsyncadd [#allocation6], %s544
          %s547 = sshll.u32 [#allocation5], 4
          %s548 = int_to_ptr.vmem [resolvable:$true] %s547
          %550 = dma.hbm_to_vmem [thread:$0]  %s3, 16, %s548, [#allocation6]
        $region28: #{tpu_custom_call.1} parent=11 // pred_fallthru
          _
      $region12: #{tpu_custom_call.1} parent=5 // pred_fallthru
        _
      %p551 = scmp.lt.s32.totalorder %s28, 2
      // Predicated region
      $region29: #{tpu_custom_call.1} parent=5 // pred_check
        %p552 = pneg %p551
      $region30: #{tpu_custom_call.1} parent=5 // pred_check_branch
        %554 = sbr.rel (%p552) target = $region32
      $region31: #{tpu_custom_call.1} parent=5 // pred_region
        // Predicated region
        $region33: #{tpu_custom_call.1} parent=31 // pred_check
          %p555 = pneg %p154
        $region34: #{tpu_custom_call.1} parent=31 // pred_check_branch
          %557 = sbr.rel (%p555) target = $region36
        $region35: #{tpu_custom_call.1} parent=31 // pred_region
          %p558 = scmp.lt.s32.totalorder %s36, 1
          %s559 = scalar_select %p558, %s36, 1
          %s560 = smul.addr %s559, 4
          %s561 = smul.addr %s560, 4
          %s562 = scalar_lea.vmem %s4, %s561
        $region36: #{tpu_custom_call.1} parent=31 // pred_fallthru
          _
        // Predicated region
        $region37: #{tpu_custom_call.1} parent=31 // pred_check
          %p563 = pneg %p180
        $region38: #{tpu_custom_call.1} parent=31 // pred_check_branch
          %565 = sbr.rel (%p563) target = $region40
        $region39: #{tpu_custom_call.1} parent=31 // pred_region
          %p566 = scmp.lt.s32.totalorder %s36, 1
          %s567 = scalar_select %p566, %s36, 1
          %s568 = scalar_lea.vmem %s5, %s567
        $region40: #{tpu_custom_call.1} parent=31 // pred_fallthru
          _
        // Predicated region
        $region41: #{tpu_custom_call.1} parent=31 // pred_check
          %p569 = pneg %p206
        $region42: #{tpu_custom_call.1} parent=31 // pred_check_branch
          %571 = sbr.rel (%p569) target = $region44
        $region43: #{tpu_custom_call.1} parent=31 // pred_region
          %p572 = scmp.lt.s32.totalorder %s36, 1
          %s573 = scalar_select %p572, %s36, 1
          %s574 = smul.addr %s573, 4
          %s575 = smul.addr %s574, 4
          %s576 = scalar_lea.vmem %s6, %s575
        $region44: #{tpu_custom_call.1} parent=31 // pred_fallthru
          _
        // Predicated region
        $region45: #{tpu_custom_call.1} parent=31 // pred_check
          %p577 = pneg %p232
        $region46: #{tpu_custom_call.1} parent=31 // pred_check_branch
          %579 = sbr.rel (%p577) target = $region48
        $region47: #{tpu_custom_call.1} parent=31 // pred_region
          %p580 = scmp.lt.s32.totalorder %s36, 1
          %s581 = scalar_select %p580, %s36, 1
          %s582 = scalar_lea.vmem %s7, %s581
        $region48: #{tpu_custom_call.1} parent=31 // pred_fallthru
          _
        // Predicated region
        $region49: #{tpu_custom_call.1} parent=31 // pred_check
          %p583 = pneg %p258
        $region50: #{tpu_custom_call.1} parent=31 // pred_check_branch
          %585 = sbr.rel (%p583) target = $region52
        $region51: #{tpu_custom_call.1} parent=31 // pred_region
          %p586 = scmp.lt.s32.totalorder %s36, 1
          %s587 = scalar_select %p586, %s36, 1
          %s588 = scalar_lea.vmem %s8, %s587
        $region52: #{tpu_custom_call.1} parent=31 // pred_fallthru
          _
        // Predicated region
        $region53: #{tpu_custom_call.1} parent=31 // pred_check
          %p589 = pneg %p284
        $region54: #{tpu_custom_call.1} parent=31 // pred_check_branch
          %591 = sbr.rel (%p589) target = $region56
        $region55: #{tpu_custom_call.1} parent=31 // pred_region
          %p592 = scmp.lt.s32.totalorder %s36, 1
          %s593 = scalar_select %p592, %s36, 1
          %s594 = scalar_lea.vmem %s9, %s593
        $region56: #{tpu_custom_call.1} parent=31 // pred_fallthru
          _
        // Predicated region
        $region57: #{tpu_custom_call.1} parent=31 // pred_check
          %p595 = pneg %p310
        $region58: #{tpu_custom_call.1} parent=31 // pred_check_branch
          %597 = sbr.rel (%p595) target = $region60
        $region59: #{tpu_custom_call.1} parent=31 // pred_region
          %p598 = scmp.lt.s32.totalorder %s36, 1
          %s599 = scalar_select %p598, %s36, 1
          %s600 = smul.addr %s599, 4
          %s601 = smul.addr %s600, 4
          %s602 = scalar_lea.vmem %s10, %s601
        $region60: #{tpu_custom_call.1} parent=31 // pred_fallthru
          _
        // Predicated region
        $region61: #{tpu_custom_call.1} parent=31 // pred_check
          %p603 = pneg %p336
        $region62: #{tpu_custom_call.1} parent=31 // pred_check_branch
          %605 = sbr.rel (%p603) target = $region64
        $region63: #{tpu_custom_call.1} parent=31 // pred_region
          %p606 = scmp.lt.s32.totalorder %s36, 1
          %s607 = scalar_select %p606, %s36, 1
          %s608 = scalar_lea.vmem %s11, %s607
        $region64: #{tpu_custom_call.1} parent=31 // pred_fallthru
          _
        // Predicated region
        $region65: #{tpu_custom_call.1} parent=31 // pred_check
          %p609 = pneg %p362
        $region66: #{tpu_custom_call.1} parent=31 // pred_check_branch
          %611 = sbr.rel (%p609) target = $region68
        $region67: #{tpu_custom_call.1} parent=31 // pred_region
          %p612 = scmp.lt.s32.totalorder %s36, 1
          %s613 = scalar_select %p612, %s36, 1
          %s614 = smul.addr %s613, 8
          %s615 = smul.addr %s614, 4
          %s616 = scalar_lea.vmem %s12, %s615
        $region68: #{tpu_custom_call.1} parent=31 // pred_fallthru
          _
        // Predicated region
        $region69: #{tpu_custom_call.1} parent=31 // pred_check
          %p617 = pneg %p388
        $region70: #{tpu_custom_call.1} parent=31 // pred_check_branch
          %619 = sbr.rel (%p617) target = $region72
        $region71: #{tpu_custom_call.1} parent=31 // pred_region
          %p620 = scmp.lt.s32.totalorder %s36, 1
          %s621 = scalar_select %p620, %s36, 1
          %s622 = scalar_lea.vmem %s13, %s621
        $region72: #{tpu_custom_call.1} parent=31 // pred_fallthru
          _
        // Predicated region
        $region73: #{tpu_custom_call.1} parent=31 // pred_check
          %p623 = pneg %p414
        $region74: #{tpu_custom_call.1} parent=31 // pred_check_branch
          %625 = sbr.rel (%p623) target = $region76
        $region75: #{tpu_custom_call.1} parent=31 // pred_region
          %p626 = scmp.lt.s32.totalorder %s36, 1
          %s627 = scalar_select %p626, %s36, 1
          %s628 = scalar_lea.vmem %s14, %s627
        $region76: #{tpu_custom_call.1} parent=31 // pred_fallthru
          _
        // Predicated region
        $region77: #{tpu_custom_call.1} parent=31 // pred_check
          %p629 = pneg %p440
        $region78: #{tpu_custom_call.1} parent=31 // pred_check_branch
          %631 = sbr.rel (%p629) target = $region80
        $region79: #{tpu_custom_call.1} parent=31 // pred_region
          %p632 = scmp.lt.s32.totalorder %s36, 1
          %s633 = scalar_select %p632, %s36, 1
          %s634 = scalar_lea.vmem %s15, %s633
        $region80: #{tpu_custom_call.1} parent=31 // pred_fallthru
          _
      $region32: #{tpu_custom_call.1} parent=5 // pred_fallthru
        _
      %p635 = scmp.le.s32.totalorder 1, %s28
      %p636 = scmp.lt.s32.totalorder %s28, 3
      %p637 = pnand %p635, %p636
      %p638 = pneg %p637
      // Predicated region
      $region81: #{tpu_custom_call.1} parent=5 // pred_check
        _
      $region82: #{tpu_custom_call.1} parent=5 // pred_check_branch
        %640 = sbr.rel (%p637) target = $region84
      $region83: #{tpu_custom_call.1} parent=5 // pred_region
        %s641 = ssub.s32 %s28, 1
        // Predicated region
        $region85: #{tpu_custom_call.1} parent=83 // pred_check
          %p642 = pneg %p66
        $region86: #{tpu_custom_call.1} parent=83 // pred_check_branch
          %644 = sbr.rel (%p642) target = $region88
        $region87: #{tpu_custom_call.1} parent=83 // pred_region
          %645 = dma.done [#allocation3], 256
        $region88: #{tpu_custom_call.1} parent=83 // pred_fallthru
          _
        // Predicated region
        $region89: #{tpu_custom_call.1} parent=83 // pred_check
          %p646 = pneg %p134
        $region90: #{tpu_custom_call.1} parent=83 // pred_check_branch
          %648 = sbr.rel (%p646) target = $region92
        $region91: #{tpu_custom_call.1} parent=83 // pred_region
          %649 = dma.done [#allocation6], 16
        $region92: #{tpu_custom_call.1} parent=83 // pred_fallthru
          _
        %p650 = pneg %p66
        %p651 = pneg %p63
        %s652 = smul.u32 2, %s37
        %p653 = scmp.lt.s32.totalorder %s652, 1
        %s654 = scalar_select %p653, %s652, 1
        %s655 = scalar_lea.vmem %s1, %s654
        %p656 = pneg %p92
        %p657 = pneg %p89
        %p658 = pneg %p113
        %p659 = pneg %p110
        %p660 = pneg %p134
        %p661 = pneg %p131
        %p662 = scmp.lt.s32.totalorder %s38, 1
        %s663 = scalar_select %p662, %s38, 1
        %s664 = smul.addr %s663, 4
        %s665 = smul.addr %s664, 4
        %s666 = scalar_lea.vmem %s4, %s665
        %p667 = pneg %p160
        %p668 = pneg %p157
        %p669 = scmp.lt.s32.totalorder %s38, 1
        %s670 = scalar_select %p669, %s38, 1
        %s671 = scalar_lea.vmem %s5, %s670
        %p672 = pneg %p186
        %p673 = pneg %p183
        %p674 = scmp.lt.s32.totalorder %s38, 1
        %s675 = scalar_select %p674, %s38, 1
        %s676 = smul.addr %s675, 4
        %s677 = smul.addr %s676, 4
        %s678 = scalar_lea.vmem %s6, %s677
        %p679 = pneg %p212
        %p680 = pneg %p209
        %p681 = scmp.lt.s32.totalorder %s38, 1
        %s682 = scalar_select %p681, %s38, 1
        %s683 = scalar_lea.vmem %s7, %s682
        %p684 = pneg %p238
        %p685 = pneg %p235
        %p686 = scmp.lt.s32.totalorder %s38, 1
        %s687 = scalar_select %p686, %s38, 1
        %s688 = scalar_lea.vmem %s8, %s687
        %p689 = pneg %p264
        %p690 = pneg %p261
        %p691 = scmp.lt.s32.totalorder %s38, 1
        %s692 = scalar_select %p691, %s38, 1
        %s693 = scalar_lea.vmem %s9, %s692
        %p694 = pneg %p290
        %p695 = pneg %p287
        %p696 = scmp.lt.s32.totalorder %s38, 1
        %s697 = scalar_select %p696, %s38, 1
        %s698 = smul.addr %s697, 4
        %s699 = smul.addr %s698, 4
        %s700 = scalar_lea.vmem %s10, %s699
        %p701 = pneg %p316
        %p702 = pneg %p313
        %p703 = scmp.lt.s32.totalorder %s38, 1
        %s704 = scalar_select %p703, %s38, 1
        %s705 = scalar_lea.vmem %s11, %s704
        %p706 = pneg %p342
        %p707 = pneg %p339
        %p708 = scmp.lt.s32.totalorder %s38, 1
        %s709 = scalar_select %p708, %s38, 1
        %s710 = smul.addr %s709, 8
        %s711 = smul.addr %s710, 4
        %s712 = scalar_lea.vmem %s12, %s711
        %p713 = pneg %p368
        %p714 = pneg %p365
        %p715 = scmp.lt.s32.totalorder %s38, 1
        %s716 = scalar_select %p715, %s38, 1
        %s717 = scalar_lea.vmem %s13, %s716
        %p718 = pneg %p394
        %p719 = pneg %p391
        %p720 = scmp.lt.s32.totalorder %s38, 1
        %s721 = scalar_select %p720, %s38, 1
        %s722 = scalar_lea.vmem %s14, %s721
        %p723 = pneg %p420
        %p724 = pneg %p417
        %p725 = scmp.lt.s32.totalorder %s38, 1
        %s726 = scalar_select %p725, %s38, 1
        %s727 = scalar_lea.vmem %s15, %s726
        %p728 = pneg %p446
        %p729 = pneg %p443
        %p730 = pneg %p472
        %p731 = pneg %p469
        %p732 = pneg %p498
        %p733 = pneg %p495
        %s734 = smul.u32 2, %s37
        %s735 = smul.u32 2, %s37
        %p736 = scmp.lt.s32.totalorder %s735, 1
        %s737 = scalar_select %p736, %s735, 1
        %s738 = scalar_lea.vmem %s1, %s737
        %s739 = smul.u32 2, %s37
        %p740 = scmp.lt.s32.totalorder %s38, 1
        %s741 = scalar_select %p740, %s38, 1
        %s742 = smul.addr %s741, 4
        %s743 = smul.addr %s742, 4
        %s744 = scalar_lea.vmem %s4, %s743
        %p745 = scmp.lt.s32.totalorder %s38, 1
        %s746 = scalar_select %p745, %s38, 1
        %s747 = scalar_lea.vmem %s5, %s746
        %p748 = scmp.lt.s32.totalorder %s38, 1
        %s749 = scalar_select %p748, %s38, 1
        %s750 = smul.addr %s749, 4
        %s751 = smul.addr %s750, 4
        %s752 = scalar_lea.vmem %s6, %s751
        %p753 = scmp.lt.s32.totalorder %s38, 1
        %s754 = scalar_select %p753, %s38, 1
        %s755 = scalar_lea.vmem %s7, %s754
        %p756 = scmp.lt.s32.totalorder %s38, 1
        %s757 = scalar_select %p756, %s38, 1
        %s758 = scalar_lea.vmem %s8, %s757
        %p759 = scmp.lt.s32.totalorder %s38, 1
        %s760 = scalar_select %p759, %s38, 1
        %s761 = scalar_lea.vmem %s9, %s760
        %p762 = scmp.lt.s32.totalorder %s38, 1
        %s763 = scalar_select %p762, %s38, 1
        %s764 = smul.addr %s763, 4
        %s765 = smul.addr %s764, 4
        %s766 = scalar_lea.vmem %s10, %s765
        %p767 = scmp.lt.s32.totalorder %s38, 1
        %s768 = scalar_select %p767, %s38, 1
        %s769 = scalar_lea.vmem %s11, %s768
        %p770 = scmp.lt.s32.totalorder %s38, 1
        %s771 = scalar_select %p770, %s38, 1
        %s772 = smul.addr %s771, 8
        %s773 = smul.addr %s772, 4
        %s774 = scalar_lea.vmem %s12, %s773
        %p775 = scmp.lt.s32.totalorder %s38, 1
        %s776 = scalar_select %p775, %s38, 1
        %s777 = scalar_lea.vmem %s13, %s776
        %p778 = scmp.lt.s32.totalorder %s38, 1
        %s779 = scalar_select %p778, %s38, 1
        %s780 = scalar_lea.vmem %s14, %s779
        %p781 = scmp.lt.s32.totalorder %s38, 1
        %s782 = scalar_select %p781, %s38, 1
        %s783 = scalar_lea.vmem %s15, %s782
        %s784 = smul.u32 2, %s37
        %s785 = smul.u32 2, %s37
        %p787 = scmp.eq.s32.totalorder %s38, 0
        // Predicated region
        $region93: #{tpu_custom_call.1} parent=83 // pred_check
          %p788 = pneg %p787
        $region94: #{tpu_custom_call.1} parent=83 // pred_check_branch
          %790 = sbr.rel (%p788) target = $region96
        $region95: #{tpu_custom_call.1} parent=83 // pred_region
          %v791 = vld [vmem:[#allocation2] sm:$0xff]
          %v792 = vld [vmem:[#allocation2 + $0x8] sm:$0xff]
          %vm793 = vcmask 261120
          %794 = vst.msk [vmem:[#allocation7] sm:$0xff] %vm793, %v791
          %795 = vst.msk [vmem:[#allocation7 + $0x8] sm:$0xff] %vm793, %v792
        $region96: #{tpu_custom_call.1} parent=83 // pred_fallthru
          _
        %v796 = vld [vmem:[%s744] sm:$0xf]
        %v797 = vld [vmem:[%s744 + $0x4] sm:$0xf]
        %v798 = vld [vmem:[%s744 + $0x8] sm:$0xf]
        %v799 = vld [vmem:[%s744 + $0xc] sm:$0xf]
        %v800 = vld [vmem:[%s747] sm:$0x1]
        %v801 = vld [vmem:[%s752] sm:$0xf]
        %v802 = vld [vmem:[%s752 + $0x4] sm:$0xf]
        %v803 = vld [vmem:[%s752 + $0x8] sm:$0xf]
        %v804 = vld [vmem:[%s752 + $0xc] sm:$0xf]
        %v805 = vld [vmem:[%s755] sm:$0x1]
        %v806 = vld [vmem:[%s758] sm:$0x1]
        %v807 = vld [vmem:[%s761] sm:$0x1]
        %v808 = vld [vmem:[%s766] sm:$0xf]
        %v809 = vld [vmem:[%s766 + $0x4] sm:$0xf]
        %v810 = vld [vmem:[%s766 + $0x8] sm:$0xf]
        %v811 = vld [vmem:[%s766 + $0xc] sm:$0xf]
        %v812 = vld [vmem:[%s769] sm:$0x1]
        %v813 = vld [vmem:[%s774] sm:$0xf]
        %v814 = vld [vmem:[%s774 + $0x4] sm:$0xf]
        %v815 = vld [vmem:[%s774 + $0x8] sm:$0xf]
        %v816 = vld [vmem:[%s774 + $0xc] sm:$0xf]
        %v817 = vld [vmem:[%s774 + $0x10] sm:$0xf]
        %v818 = vld [vmem:[%s774 + $0x14] sm:$0xf]
        %v819 = vld [vmem:[%s774 + $0x18] sm:$0xf]
        %v820 = vld [vmem:[%s774 + $0x1c] sm:$0xf]
        %v821 = vld [vmem:[%s777] sm:$0x1]
        %v822 = vld [vmem:[%s780] sm:$0x1]
        %v823 = vld [vmem:[%s783] sm:$0x1]
        %v824 = vld [vmem:[#allocation7] sm:$0xff]
        %v825 = vld [vmem:[%s738] sm:$0x1]
        %vm826 = vcmp.gt.f32.partialorder %v825, 0.5
        %v827 = vpack.c.bf16 %v824, %v824
        %v829 = vlaneseq
        %v830 = vshrl.u32 %v829, 7
        %v831 = vsub.s32 0, %v830
        %v832 = vrot.slane %v800, %v831
        %v838 = vunpack.c.l.b16 %v796
        %v839 = vunpack.c.l.b16 %v797
        %v840 = vunpack.c.l.b16 %v798
        %v841 = vunpack.c.l.b16 %v799
        %v842 = vpack.c.b16 %v839, %v838
        %v843 = vpack.c.b16 %v841, %v840
        %vm846 = vcmask 261120
        %v848 = vsel %vm846, %v827, 0
        %850 = vmatprep.subr.bf16.mxu0 0
        %851 = vmatpush1.bf16.msra.mxu0 %v842
        %852 = vmatprep.subr.bf16.mxu0 0
        %853 = vmatpush1.bf16.msra.mxu0 %v843
        %854 = vmatprep.subr.bf16.mxu0 0
        %855 = vmatpush1.bf16.msra.mxu0 0
        %856 = vmatprep.subr.bf16.mxu0 0
        %857 = vmatpush1.bf16.msra.mxu0 0
        %858 = vmatprep.subr.bf16.mxu0 0
        %859 = vmatpush1.bf16.msra.mxu0 0
        %860 = vmatprep.subr.bf16.mxu0 0
        %861 = vmatpush1.bf16.msra.mxu0 0
        %862 = vmatprep.subr.bf16.mxu0 0
        %863 = vmatpush1.bf16.msra.mxu0 0
        %864 = vmatprep.subr.bf16.mxu0 0
        %865 = vmatpush1.bf16.msra.mxu0 0
        %866 = vmatprep.subr.bf16.mxu0 0
        %867 = vmatpush1.bf16.msra.mxu0 0
        %868 = vmatprep.subr.bf16.mxu0 0
        %869 = vmatpush1.bf16.msra.mxu0 0
        %870 = vmatprep.subr.bf16.mxu0 0
        %871 = vmatpush1.bf16.msra.mxu0 0
        %872 = vmatprep.subr.bf16.mxu0 0
        %873 = vmatpush1.bf16.msra.mxu0 0
        %874 = vmatprep.subr.bf16.mxu0 0
        %875 = vmatpush1.bf16.msra.mxu0 0
        %876 = vmatprep.subr.bf16.mxu0 0
        %877 = vmatpush1.bf16.msra.mxu0 0
        %878 = vmatprep.subr.bf16.mxu0 0
        %879 = vmatpush1.bf16.msra.mxu0 0
        %880 = vmatprep.subr.bf16.mxu0 0
        %881 = vmatpush1.bf16.msra.mxu0 0
        %882 = vmatprep.mubr.bf16.mxu0 0
        %883 = vmatmul.mubr.bf16.gmra.mrb[0].mxu0 %v848
        %v884 = vpop.f32.mrb[0].mxu0
        %v885 = vadd.f32 %v832, %v884
        %v886 = vpop.f32.mrb[0].mxu0
        %v887 = vpop.f32.mrb[0].mxu0
        %v888 = vpop.f32.mrb[0].mxu0
        %889 = vdwg.mxu0
        %v890 = vmul.f32 %v885, 0.35355338
        %v891 = vpack.c.bf16 %v890, %v890
        %v892 = vpack.c.bf16 %v885, %v885
        %894 = vrot.lane.b32.xlu0 %v892, 96
        %v895 = vpop.permute.xlu0 %894
        %vm896 = vcmask 64512
        %v898 = vsel %vm896, %v891, 0
        %v901 = vsel %vm896, %v895, 0
        %903 = vmatprep.subr.bf16.mxu0 0
        %904 = vmatpush1.bf16.xpose.msra.mxu0 %v901
        %905 = vmatprep.subr.bf16.mxu0 0
        %906 = vmatpush1.bf16.xpose.msra.mxu0 0
        %907 = vmatprep.subr.bf16.mxu0 0
        %908 = vmatpush1.bf16.xpose.msra.mxu0 0
        %909 = vmatprep.subr.bf16.mxu0 0
        %910 = vmatpush1.bf16.xpose.msra.mxu0 0
        %911 = vmatprep.subr.bf16.mxu0 0
        %912 = vmatpush1.bf16.xpose.msra.mxu0 0
        %913 = vmatprep.subr.bf16.mxu0 0
        %914 = vmatpush1.bf16.xpose.msra.mxu0 0
        %915 = vmatprep.subr.bf16.mxu0 0
        %916 = vmatpush1.bf16.xpose.msra.mxu0 0
        %917 = vmatprep.subr.bf16.mxu0 0
        %918 = vmatpush1.bf16.xpose.msra.mxu0 0
        %919 = vmatprep.subr.bf16.mxu0 0
        %920 = vmatpush1.bf16.xpose.msra.mxu0 0
        %921 = vmatprep.subr.bf16.mxu0 0
        %922 = vmatpush1.bf16.xpose.msra.mxu0 0
        %923 = vmatprep.subr.bf16.mxu0 0
        %924 = vmatpush1.bf16.xpose.msra.mxu0 0
        %925 = vmatprep.subr.bf16.mxu0 0
        %926 = vmatpush1.bf16.xpose.msra.mxu0 0
        %927 = vmatprep.subr.bf16.mxu0 0
        %928 = vmatpush1.bf16.xpose.msra.mxu0 0
        %929 = vmatprep.subr.bf16.mxu0 0
        %930 = vmatpush1.bf16.xpose.msra.mxu0 0
        %931 = vmatprep.subr.bf16.mxu0 0
        %932 = vmatpush1.bf16.xpose.msra.mxu0 0
        %933 = vmatprep.subr.bf16.mxu0 0
        %934 = vmatpush1.bf16.xpose.msra.mxu0 0
        %935 = vmatprep.mubr.bf16.mxu0 0
        %936 = vmatmul.mubr.bf16.gmra.mrb[0].mxu0 %v898
        %v937 = vpop.f32.mrb[0].mxu0
        %v938 = vadd.f32 0.0, %v937
        %v939 = vpop.f32.mrb[0].mxu0
        %v940 = vpop.f32.mrb[0].mxu0
        %v941 = vpop.f32.mrb[0].mxu0
        %942 = vdwg.mxu0
        %v943 = vsel %vm826, 1, 0
        %v944 = vlaneseq
        %v945 = vshrl.u32 %v944, 7
        %v946 = vsub.s32 0, %v945
        %v947 = vrot.slane %v943, %v946
        %vm948 = vcmp.eq.s32.totalorder %v947, 1
        %v949 = vsel %vm948, -1e+09, %v938
        %v950 = vsel %vm896, %v949, -inf
        %951 = vmax.xlane.f32.xlu0 %v950
        %v952 = vpop.xlane.xlu0 %951
        %v953 = vsub.f32 %v949, %v952
        %v954 = vmul.f32 %v953, 1.442695
        %v955 = vpow.pop %v954
        %v956 = vsel %vm896, %v955, 0.0
        %957 = vadd.xlane.f32.xlu0 %v956
        %v958 = vpop.xlane.xlu0 %957
        %v959 = vrcp.pop %v958
        %v960 = vmul.f32 %v955, %v959
        %v961 = vpack.c.bf16 %v960, %v960
        %962 = vrot.lane.b32.xlu0 %v892, 64
        %v963 = vpop.permute.xlu0 %962
        %v965 = vsel %vm896, %v961, 0
        %vm967 = vcmask 1043456
        %v969 = vsel %vm967, %v963, 0
        %971 = vmatprep.subr.bf16.mxu0 0
        %972 = vmatpush1.bf16.msra.mxu0 %v969
        %973 = vmatprep.subr.bf16.mxu0 0
        %974 = vmatpush1.bf16.msra.mxu0 0
        %975 = vmatprep.subr.bf16.mxu0 0
        %976 = vmatpush1.bf16.msra.mxu0 0
        %977 = vmatprep.subr.bf16.mxu0 0
        %978 = vmatpush1.bf16.msra.mxu0 0
        %979 = vmatprep.subr.bf16.mxu0 0
        %980 = vmatpush1.bf16.msra.mxu0 0
        %981 = vmatprep.subr.bf16.mxu0 0
        %982 = vmatpush1.bf16.msra.mxu0 0
        %983 = vmatprep.subr.bf16.mxu0 0
        %984 = vmatpush1.bf16.msra.mxu0 0
        %985 = vmatprep.subr.bf16.mxu0 0
        %986 = vmatpush1.bf16.msra.mxu0 0
        %987 = vmatprep.subr.bf16.mxu0 0
        %988 = vmatpush1.bf16.msra.mxu0 0
        %989 = vmatprep.subr.bf16.mxu0 0
        %990 = vmatpush1.bf16.msra.mxu0 0
        %991 = vmatprep.subr.bf16.mxu0 0
        %992 = vmatpush1.bf16.msra.mxu0 0
        %993 = vmatprep.subr.bf16.mxu0 0
        %994 = vmatpush1.bf16.msra.mxu0 0
        %995 = vmatprep.subr.bf16.mxu0 0
        %996 = vmatpush1.bf16.msra.mxu0 0
        %997 = vmatprep.subr.bf16.mxu0 0
        %998 = vmatpush1.bf16.msra.mxu0 0
        %999 = vmatprep.subr.bf16.mxu0 0
        %1000 = vmatpush1.bf16.msra.mxu0 0
        %1001 = vmatprep.subr.bf16.mxu0 0
        %1002 = vmatpush1.bf16.msra.mxu0 0
        %1003 = vmatprep.mubr.bf16.mxu0 0
        %1004 = vmatmul.mubr.bf16.gmra.mrb[0].mxu0 %v965
        %v1005 = vpop.f32.mrb[0].mxu0
        %v1006 = vadd.f32 0.0, %v1005
        %v1007 = vpop.f32.mrb[0].mxu0
        %v1008 = vpop.f32.mrb[0].mxu0
        %v1009 = vpop.f32.mrb[0].mxu0
        %1010 = vdwg.mxu0
        %1012 = vrot.lane.b32.xlu0 %v891, 120
        %v1013 = vpop.permute.xlu0 %1012
        %1014 = vrot.lane.b32.xlu0 %v892, 88
        %v1015 = vpop.permute.xlu0 %1014
        %v1017 = vsel %vm896, %v1013, 0
        %v1020 = vsel %vm896, %v1015, 0
        %1022 = vmatprep.subr.bf16.mxu0 0
        %1023 = vmatpush1.bf16.xpose.msra.mxu0 %v1020
        %1024 = vmatprep.subr.bf16.mxu0 0
        %1025 = vmatpush1.bf16.xpose.msra.mxu0 0
        %1026 = vmatprep.subr.bf16.mxu0 0
        %1027 = vmatpush1.bf16.xpose.msra.mxu0 0
        %1028 = vmatprep.subr.bf16.mxu0 0
        %1029 = vmatpush1.bf16.xpose.msra.mxu0 0
        %1030 = vmatprep.subr.bf16.mxu0 0
        %1031 = vmatpush1.bf16.xpose.msra.mxu0 0
        %1032 = vmatprep.subr.bf16.mxu0 0
        %1033 = vmatpush1.bf16.xpose.msra.mxu0 0
        %1034 = vmatprep.subr.bf16.mxu0 0
        %1035 = vmatpush1.bf16.xpose.msra.mxu0 0
        %1036 = vmatprep.subr.bf16.mxu0 0
        %1037 = vmatpush1.bf16.xpose.msra.mxu0 0
        %1038 = vmatprep.subr.bf16.mxu0 0
        %1039 = vmatpush1.bf16.xpose.msra.mxu0 0
        %1040 = vmatprep.subr.bf16.mxu0 0
        %1041 = vmatpush1.bf16.xpose.msra.mxu0 0
        %1042 = vmatprep.subr.bf16.mxu0 0
        %1043 = vmatpush1.bf16.xpose.msra.mxu0 0
        %1044 = vmatprep.subr.bf16.mxu0 0
        %1045 = vmatpush1.bf16.xpose.msra.mxu0 0
        %1046 = vmatprep.subr.bf16.mxu0 0
        %1047 = vmatpush1.bf16.xpose.msra.mxu0 0
        %1048 = vmatprep.subr.bf16.mxu0 0
        %1049 = vmatpush1.bf16.xpose.msra.mxu0 0
        %1050 = vmatprep.subr.bf16.mxu0 0
        %1051 = vmatpush1.bf16.xpose.msra.mxu0 0
        %1052 = vmatprep.subr.bf16.mxu0 0
        %1053 = vmatpush1.bf16.xpose.msra.mxu0 0
        %1054 = vmatprep.mubr.bf16.mxu0 0
        %1055 = vmatmul.mubr.bf16.gmra.mrb[0].mxu0 %v1017
        %v1056 = vpop.f32.mrb[0].mxu0
        %v1057 = vadd.f32 0.0, %v1056
        %v1058 = vpop.f32.mrb[0].mxu0
        %v1059 = vpop.f32.mrb[0].mxu0
        %v1060 = vpop.f32.mrb[0].mxu0
        %1061 = vdwg.mxu0
        %v1062 = vsel %vm948, -1e+09, %v1057
        %v1063 = vsel %vm896, %v1062, -inf
        %1064 = vmax.xlane.f32.xlu0 %v1063
        %v1065 = vpop.xlane.xlu0 %1064
        %v1066 = vsub.f32 %v1062, %v1065
        %v1067 = vmul.f32 %v1066, 1.442695
        %v1068 = vpow.pop %v1067
        %v1069 = vsel %vm896, %v1068, 0.0
        %1070 = vadd.xlane.f32.xlu0 %v1069
        %v1071 = vpop.xlane.xlu0 %1070
        %v1072 = vrcp.pop %v1071
        %v1073 = vmul.f32 %v1068, %v1072
        %v1074 = vpack.c.bf16 %v1073, %v1073
        %1075 = vrot.lane.b32.xlu0 %v892, 56
        %v1076 = vpop.permute.xlu0 %1075
        %v1078 = vsel %vm896, %v1074, 0
        %v1081 = vsel %vm967, %v1076, 0
        %1083 = vmatprep.subr.bf16.mxu0 0
        %1084 = vmatpush1.bf16.msra.mxu0 %v1081
        %1085 = vmatprep.subr.bf16.mxu0 0
        %1086 = vmatpush1.bf16.msra.mxu0 0
        %1087 = vmatprep.subr.bf16.mxu0 0
        %1088 = vmatpush1.bf16.msra.mxu0 0
        %1089 = vmatprep.subr.bf16.mxu0 0
        %1090 = vmatpush1.bf16.msra.mxu0 0
        %1091 = vmatprep.subr.bf16.mxu0 0
        %1092 = vmatpush1.bf16.msra.mxu0 0
        %1093 = vmatprep.subr.bf16.mxu0 0
        %1094 = vmatpush1.bf16.msra.mxu0 0
        %1095 = vmatprep.subr.bf16.mxu0 0
        %1096 = vmatpush1.bf16.msra.mxu0 0
        %1097 = vmatprep.subr.bf16.mxu0 0
        %1098 = vmatpush1.bf16.msra.mxu0 0
        %1099 = vmatprep.subr.bf16.mxu0 0
        %1100 = vmatpush1.bf16.msra.mxu0 0
        %1101 = vmatprep.subr.bf16.mxu0 0
        %1102 = vmatpush1.bf16.msra.mxu0 0
        %1103 = vmatprep.subr.bf16.mxu0 0
        %1104 = vmatpush1.bf16.msra.mxu0 0
        %1105 = vmatprep.subr.bf16.mxu0 0
        %1106 = vmatpush1.bf16.msra.mxu0 0
        %1107 = vmatprep.subr.bf16.mxu0 0
        %1108 = vmatpush1.bf16.msra.mxu0 0
        %1109 = vmatprep.subr.bf16.mxu0 0
        %1110 = vmatpush1.bf16.msra.mxu0 0
        %1111 = vmatprep.subr.bf16.mxu0 0
        %1112 = vmatpush1.bf16.msra.mxu0 0
        %1113 = vmatprep.subr.bf16.mxu0 0
        %1114 = vmatpush1.bf16.msra.mxu0 0
        %1115 = vmatprep.mubr.bf16.mxu0 0
        %1116 = vmatmul.mubr.bf16.gmra.mrb[0].mxu0 %v1078
        %v1117 = vpop.f32.mrb[0].mxu0
        %v1118 = vadd.f32 0.0, %v1117
        %v1119 = vpop.f32.mrb[0].mxu0
        %v1120 = vpop.f32.mrb[0].mxu0
        %v1121 = vpop.f32.mrb[0].mxu0
        %1122 = vdwg.mxu0
        %1123 = vrot.lane.b32.xlu0 %v891, 112
        %v1124 = vpop.permute.xlu0 %1123
        %1125 = vrot.lane.b32.xlu0 %v892, 80
        %v1126 = vpop.permute.xlu0 %1125
        %v1128 = vsel %vm896, %v1124, 0
        %v1131 = vsel %vm896, %v1126, 0
        %1133 = vmatprep.subr.bf16.mxu0 0
        %1134 = vmatpush1.bf16.xpose.msra.mxu0 %v1131
        %1135 = vmatprep.subr.bf16.mxu0 0
        %1136 = vmatpush1.bf16.xpose.msra.mxu0 0
        %1137 = vmatprep.subr.bf16.mxu0 0
        %1138 = vmatpush1.bf16.xpose.msra.mxu0 0
        %1139 = vmatprep.subr.bf16.mxu0 0
        %1140 = vmatpush1.bf16.xpose.msra.mxu0 0
        %1141 = vmatprep.subr.bf16.mxu0 0
        %1142 = vmatpush1.bf16.xpose.msra.mxu0 0
        %1143 = vmatprep.subr.bf16.mxu0 0
        %1144 = vmatpush1.bf16.xpose.msra.mxu0 0
        %1145 = vmatprep.subr.bf16.mxu0 0
        %1146 = vmatpush1.bf16.xpose.msra.mxu0 0
        %1147 = vmatprep.subr.bf16.mxu0 0
        %1148 = vmatpush1.bf16.xpose.msra.mxu0 0
        %1149 = vmatprep.subr.bf16.mxu0 0
        %1150 = vmatpush1.bf16.xpose.msra.mxu0 0
        %1151 = vmatprep.subr.bf16.mxu0 0
        %1152 = vmatpush1.bf16.xpose.msra.mxu0 0
        %1153 = vmatprep.subr.bf16.mxu0 0
        %1154 = vmatpush1.bf16.xpose.msra.mxu0 0
        %1155 = vmatprep.subr.bf16.mxu0 0
        %1156 = vmatpush1.bf16.xpose.msra.mxu0 0
        %1157 = vmatprep.subr.bf16.mxu0 0
        %1158 = vmatpush1.bf16.xpose.msra.mxu0 0
        %1159 = vmatprep.subr.bf16.mxu0 0
        %1160 = vmatpush1.bf16.xpose.msra.mxu0 0
        %1161 = vmatprep.subr.bf16.mxu0 0
        %1162 = vmatpush1.bf16.xpose.msra.mxu0 0
        %1163 = vmatprep.subr.bf16.mxu0 0
        %1164 = vmatpush1.bf16.xpose.msra.mxu0 0
        %1165 = vmatprep.mubr.bf16.mxu0 0
        %1166 = vmatmul.mubr.bf16.gmra.mrb[0].mxu0 %v1128
        %v1167 = vpop.f32.mrb[0].mxu0
        %v1168 = vadd.f32 0.0, %v1167
        %v1169 = vpop.f32.mrb[0].mxu0
        %v1170 = vpop.f32.mrb[0].mxu0
        %v1171 = vpop.f32.mrb[0].mxu0
        %1172 = vdwg.mxu0
        %v1173 = vsel %vm948, -1e+09, %v1168
        %v1174 = vsel %vm896, %v1173, -inf
        %1175 = vmax.xlane.f32.xlu0 %v1174
        %v1176 = vpop.xlane.xlu0 %1175
        %v1177 = vsub.f32 %v1173, %v1176
        %v1178 = vmul.f32 %v1177, 1.442695
        %v1179 = vpow.pop %v1178
        %v1180 = vsel %vm896, %v1179, 0.0
        %1181 = vadd.xlane.f32.xlu0 %v1180
        %v1182 = vpop.xlane.xlu0 %1181
        %v1183 = vrcp.pop %v1182
        %v1184 = vmul.f32 %v1179, %v1183
        %v1185 = vpack.c.bf16 %v1184, %v1184
        %1186 = vrot.lane.b32.xlu0 %v892, 48
        %v1187 = vpop.permute.xlu0 %1186
        %v1189 = vsel %vm896, %v1185, 0
        %v1192 = vsel %vm967, %v1187, 0
        %1194 = vmatprep.subr.bf16.mxu0 0
        %1195 = vmatpush1.bf16.msra.mxu0 %v1192
        %1196 = vmatprep.subr.bf16.mxu0 0
        %1197 = vmatpush1.bf16.msra.mxu0 0
        %1198 = vmatprep.subr.bf16.mxu0 0
        %1199 = vmatpush1.bf16.msra.mxu0 0
        %1200 = vmatprep.subr.bf16.mxu0 0
        %1201 = vmatpush1.bf16.msra.mxu0 0
        %1202 = vmatprep.subr.bf16.mxu0 0
        %1203 = vmatpush1.bf16.msra.mxu0 0
        %1204 = vmatprep.subr.bf16.mxu0 0
        %1205 = vmatpush1.bf16.msra.mxu0 0
        %1206 = vmatprep.subr.bf16.mxu0 0
        %1207 = vmatpush1.bf16.msra.mxu0 0
        %1208 = vmatprep.subr.bf16.mxu0 0
        %1209 = vmatpush1.bf16.msra.mxu0 0
        %1210 = vmatprep.subr.bf16.mxu0 0
        %1211 = vmatpush1.bf16.msra.mxu0 0
        %1212 = vmatprep.subr.bf16.mxu0 0
        %1213 = vmatpush1.bf16.msra.mxu0 0
        %1214 = vmatprep.subr.bf16.mxu0 0
        %1215 = vmatpush1.bf16.msra.mxu0 0
        %1216 = vmatprep.subr.bf16.mxu0 0
        %1217 = vmatpush1.bf16.msra.mxu0 0
        %1218 = vmatprep.subr.bf16.mxu0 0
        %1219 = vmatpush1.bf16.msra.mxu0 0
        %1220 = vmatprep.subr.bf16.mxu0 0
        %1221 = vmatpush1.bf16.msra.mxu0 0
        %1222 = vmatprep.subr.bf16.mxu0 0
        %1223 = vmatpush1.bf16.msra.mxu0 0
        %1224 = vmatprep.subr.bf16.mxu0 0
        %1225 = vmatpush1.bf16.msra.mxu0 0
        %1226 = vmatprep.mubr.bf16.mxu0 0
        %1227 = vmatmul.mubr.bf16.gmra.mrb[0].mxu0 %v1189
        %v1228 = vpop.f32.mrb[0].mxu0
        %v1229 = vadd.f32 0.0, %v1228
        %v1230 = vpop.f32.mrb[0].mxu0
        %v1231 = vpop.f32.mrb[0].mxu0
        %v1232 = vpop.f32.mrb[0].mxu0
        %1233 = vdwg.mxu0
        %1234 = vrot.lane.b32.xlu0 %v891, 104
        %v1235 = vpop.permute.xlu0 %1234
        %1236 = vrot.lane.b32.xlu0 %v892, 72
        %v1237 = vpop.permute.xlu0 %1236
        %v1239 = vsel %vm896, %v1235, 0
        %v1242 = vsel %vm896, %v1237, 0
        %1244 = vmatprep.subr.bf16.mxu0 0
        %1245 = vmatpush1.bf16.xpose.msra.mxu0 %v1242
        %1246 = vmatprep.subr.bf16.mxu0 0
        %1247 = vmatpush1.bf16.xpose.msra.mxu0 0
        %1248 = vmatprep.subr.bf16.mxu0 0
        %1249 = vmatpush1.bf16.xpose.msra.mxu0 0
        %1250 = vmatprep.subr.bf16.mxu0 0
        %1251 = vmatpush1.bf16.xpose.msra.mxu0 0
        %1252 = vmatprep.subr.bf16.mxu0 0
        %1253 = vmatpush1.bf16.xpose.msra.mxu0 0
        %1254 = vmatprep.subr.bf16.mxu0 0
        %1255 = vmatpush1.bf16.xpose.msra.mxu0 0
        %1256 = vmatprep.subr.bf16.mxu0 0
        %1257 = vmatpush1.bf16.xpose.msra.mxu0 0
        %1258 = vmatprep.subr.bf16.mxu0 0
        %1259 = vmatpush1.bf16.xpose.msra.mxu0 0
        %1260 = vmatprep.subr.bf16.mxu0 0
        %1261 = vmatpush1.bf16.xpose.msra.mxu0 0
        %1262 = vmatprep.subr.bf16.mxu0 0
        %1263 = vmatpush1.bf16.xpose.msra.mxu0 0
        %1264 = vmatprep.subr.bf16.mxu0 0
        %1265 = vmatpush1.bf16.xpose.msra.mxu0 0
        %1266 = vmatprep.subr.bf16.mxu0 0
        %1267 = vmatpush1.bf16.xpose.msra.mxu0 0
        %1268 = vmatprep.subr.bf16.mxu0 0
        %1269 = vmatpush1.bf16.xpose.msra.mxu0 0
        %1270 = vmatprep.subr.bf16.mxu0 0
        %1271 = vmatpush1.bf16.xpose.msra.mxu0 0
        %1272 = vmatprep.subr.bf16.mxu0 0
        %1273 = vmatpush1.bf16.xpose.msra.mxu0 0
        %1274 = vmatprep.subr.bf16.mxu0 0
        %1275 = vmatpush1.bf16.xpose.msra.mxu0 0
        %1276 = vmatprep.mubr.bf16.mxu0 0
        %1277 = vmatmul.mubr.bf16.gmra.mrb[0].mxu0 %v1239
        %v1278 = vpop.f32.mrb[0].mxu0
        %v1279 = vadd.f32 0.0, %v1278
        %v1280 = vpop.f32.mrb[0].mxu0
        %v1281 = vpop.f32.mrb[0].mxu0
        %v1282 = vpop.f32.mrb[0].mxu0
        %1283 = vdwg.mxu0
        %v1284 = vsel %vm948, -1e+09, %v1279
        %v1285 = vsel %vm896, %v1284, -inf
        %1286 = vmax.xlane.f32.xlu0 %v1285
        %v1287 = vpop.xlane.xlu0 %1286
        %v1288 = vsub.f32 %v1284, %v1287
        %v1289 = vmul.f32 %v1288, 1.442695
        %v1290 = vpow.pop %v1289
        %v1291 = vsel %vm896, %v1290, 0.0
        %1292 = vadd.xlane.f32.xlu0 %v1291
        %v1293 = vpop.xlane.xlu0 %1292
        %v1294 = vrcp.pop %v1293
        %v1295 = vmul.f32 %v1290, %v1294
        %v1296 = vpack.c.bf16 %v1295, %v1295
        %1297 = vrot.lane.b32.xlu0 %v892, 40
        %v1298 = vpop.permute.xlu0 %1297
        %v1300 = vsel %vm896, %v1296, 0
        %v1303 = vsel %vm967, %v1298, 0
        %1305 = vmatprep.subr.bf16.mxu0 0
        %1306 = vmatpush1.bf16.msra.mxu0 %v1303
        %1307 = vmatprep.subr.bf16.mxu0 0
        %1308 = vmatpush1.bf16.msra.mxu0 0
        %1309 = vmatprep.subr.bf16.mxu0 0
        %1310 = vmatpush1.bf16.msra.mxu0 0
        %1311 = vmatprep.subr.bf16.mxu0 0
        %1312 = vmatpush1.bf16.msra.mxu0 0
        %1313 = vmatprep.subr.bf16.mxu0 0
        %1314 = vmatpush1.bf16.msra.mxu0 0
        %1315 = vmatprep.subr.bf16.mxu0 0
        %1316 = vmatpush1.bf16.msra.mxu0 0
        %1317 = vmatprep.subr.bf16.mxu0 0
        %1318 = vmatpush1.bf16.msra.mxu0 0
        %1319 = vmatprep.subr.bf16.mxu0 0
        %1320 = vmatpush1.bf16.msra.mxu0 0
        %1321 = vmatprep.subr.bf16.mxu0 0
        %1322 = vmatpush1.bf16.msra.mxu0 0
        %1323 = vmatprep.subr.bf16.mxu0 0
        %1324 = vmatpush1.bf16.msra.mxu0 0
        %1325 = vmatprep.subr.bf16.mxu0 0
        %1326 = vmatpush1.bf16.msra.mxu0 0
        %1327 = vmatprep.subr.bf16.mxu0 0
        %1328 = vmatpush1.bf16.msra.mxu0 0
        %1329 = vmatprep.subr.bf16.mxu0 0
        %1330 = vmatpush1.bf16.msra.mxu0 0
        %1331 = vmatprep.subr.bf16.mxu0 0
        %1332 = vmatpush1.bf16.msra.mxu0 0
        %1333 = vmatprep.subr.bf16.mxu0 0
        %1334 = vmatpush1.bf16.msra.mxu0 0
        %1335 = vmatprep.subr.bf16.mxu0 0
        %1336 = vmatpush1.bf16.msra.mxu0 0
        %1337 = vmatprep.mubr.bf16.mxu0 0
        %1338 = vmatmul.mubr.bf16.gmra.mrb[0].mxu0 %v1300
        %v1339 = vpop.f32.mrb[0].mxu0
        %v1340 = vadd.f32 0.0, %v1339
        %v1341 = vpop.f32.mrb[0].mxu0
        %v1342 = vpop.f32.mrb[0].mxu0
        %v1343 = vpop.f32.mrb[0].mxu0
        %1344 = vdwg.mxu0
        %1346 = vrot.lane.b32.xlu0 %v1118, 8
        %v1347 = vpop.permute.xlu0 %1346
        %1350 = vrot.lane.b32.xlu0 %v1229, 16
        %v1351 = vpop.permute.xlu0 %1350
        %1354 = vrot.lane.b32.xlu0 %v1340, 24
        %v1355 = vpop.permute.xlu0 %1354
        %v1357 = vsel %vm896, %v1006, %v1347
        %vm1358 = vcmask 130048
        %v1359 = vsel %vm1358, %v1357, %v1351
        %vm1360 = vcmask 195584
        %v1361 = vsel %vm1360, %v1359, %v1355
        %v1362 = vpack.c.bf16 %v1361, %v1361
        %v1364 = vlaneseq
        %v1365 = vshrl.u32 %v1364, 7
        %v1366 = vsub.s32 0, %v1365
        %v1367 = vrot.slane %v805, %v1366
        %v1373 = vunpack.c.l.b16 %v801
        %v1374 = vunpack.c.l.b16 %v802
        %v1375 = vunpack.c.l.b16 %v803
        %v1376 = vunpack.c.l.b16 %v804
        %v1377 = vpack.c.b16 %v1374, %v1373
        %v1378 = vpack.c.b16 %v1376, %v1375
        %v1382 = vsel %vm846, %v1362, 0
        %1384 = vmatprep.subr.bf16.mxu0 0
        %1385 = vmatpush1.bf16.msra.mxu0 %v1377
        %1386 = vmatprep.subr.bf16.mxu0 0
        %1387 = vmatpush1.bf16.msra.mxu0 %v1378
        %1388 = vmatprep.subr.bf16.mxu0 0
        %1389 = vmatpush1.bf16.msra.mxu0 0
        %1390 = vmatprep.subr.bf16.mxu0 0
        %1391 = vmatpush1.bf16.msra.mxu0 0
        %1392 = vmatprep.subr.bf16.mxu0 0
        %1393 = vmatpush1.bf16.msra.mxu0 0
        %1394 = vmatprep.subr.bf16.mxu0 0
        %1395 = vmatpush1.bf16.msra.mxu0 0
        %1396 = vmatprep.subr.bf16.mxu0 0
        %1397 = vmatpush1.bf16.msra.mxu0 0
        %1398 = vmatprep.subr.bf16.mxu0 0
        %1399 = vmatpush1.bf16.msra.mxu0 0
        %1400 = vmatprep.subr.bf16.mxu0 0
        %1401 = vmatpush1.bf16.msra.mxu0 0
        %1402 = vmatprep.subr.bf16.mxu0 0
        %1403 = vmatpush1.bf16.msra.mxu0 0
        %1404 = vmatprep.subr.bf16.mxu0 0
        %1405 = vmatpush1.bf16.msra.mxu0 0
        %1406 = vmatprep.subr.bf16.mxu0 0
        %1407 = vmatpush1.bf16.msra.mxu0 0
        %1408 = vmatprep.subr.bf16.mxu0 0
        %1409 = vmatpush1.bf16.msra.mxu0 0
        %1410 = vmatprep.subr.bf16.mxu0 0
        %1411 = vmatpush1.bf16.msra.mxu0 0
        %1412 = vmatprep.subr.bf16.mxu0 0
        %1413 = vmatpush1.bf16.msra.mxu0 0
        %1414 = vmatprep.subr.bf16.mxu0 0
        %1415 = vmatpush1.bf16.msra.mxu0 0
        %1416 = vmatprep.mubr.bf16.mxu0 0
        %1417 = vmatmul.mubr.bf16.gmra.mrb[0].mxu0 %v1382
        %v1418 = vpop.f32.mrb[0].mxu0
        %v1419 = vadd.f32 %v1367, %v1418
        %v1420 = vpop.f32.mrb[0].mxu0
        %v1421 = vpop.f32.mrb[0].mxu0
        %v1422 = vpop.f32.mrb[0].mxu0
        %1423 = vdwg.mxu0
        %v1424 = vadd.f32 %v1419, %v824
        %v1425 = vsel %vm846, %v1424, 0.0
        %1426 = vadd.xlane.f32.xlu0 %v1425
        %v1427 = vpop.xlane.xlu0 %1426
        %v1428 = vrcp.pop 32.0
        %v1429 = vmul.f32 %v1427, %v1428
        %v1430 = vsub.f32 %v1424, %v1429
        %v1431 = vmul.f32 %v1430, %v1430
        %v1432 = vsel %vm846, %v1431, 0.0
        %1433 = vadd.xlane.f32.xlu0 %v1432
        %v1434 = vpop.xlane.xlu0 %1433
        %v1435 = vmul.f32 %v1434, %v1428
        %v1436 = vadd.f32 %v1435, 1e-05
        %v1437 = vrsqrt.pop %v1436
        %v1438 = vmul.f32 %v1430, %v1437
        %v1440 = vlaneseq
        %v1441 = vshrl.u32 %v1440, 7
        %v1442 = vsub.s32 0, %v1441
        %v1443 = vrot.slane %v806, %v1442
        %v1445 = vmul.f32 %v1438, %v1443
        %v1447 = vlaneseq
        %v1448 = vshrl.u32 %v1447, 7
        %v1449 = vsub.s32 0, %v1448
        %v1450 = vrot.slane %v807, %v1449
        %v1452 = vadd.f32 %v1445, %v1450
        %v1453 = vpack.c.bf16 %v1452, %v1452
        %v1455 = vlaneseq
        %v1456 = vshrl.u32 %v1455, 7
        %v1457 = vsub.s32 0, %v1456
        %v1458 = vrot.slane %v812, %v1457
        %v1464 = vunpack.c.l.b16 %v808
        %v1465 = vunpack.c.l.b16 %v809
        %v1466 = vunpack.c.l.b16 %v810
        %v1467 = vunpack.c.l.b16 %v811
        %v1468 = vpack.c.b16 %v1465, %v1464
        %v1469 = vpack.c.b16 %v1467, %v1466
        %v1473 = vsel %vm846, %v1453, 0
        %1475 = vmatprep.subr.bf16.mxu0 0
        %1476 = vmatpush1.bf16.msra.mxu0 %v1468
        %1477 = vmatprep.subr.bf16.mxu0 0
        %1478 = vmatpush1.bf16.msra.mxu0 %v1469
        %1479 = vmatprep.subr.bf16.mxu0 0
        %1480 = vmatpush1.bf16.msra.mxu0 0
        %1481 = vmatprep.subr.bf16.mxu0 0
        %1482 = vmatpush1.bf16.msra.mxu0 0
        %1483 = vmatprep.subr.bf16.mxu0 0
        %1484 = vmatpush1.bf16.msra.mxu0 0
        %1485 = vmatprep.subr.bf16.mxu0 0
        %1486 = vmatpush1.bf16.msra.mxu0 0
        %1487 = vmatprep.subr.bf16.mxu0 0
        %1488 = vmatpush1.bf16.msra.mxu0 0
        %1489 = vmatprep.subr.bf16.mxu0 0
        %1490 = vmatpush1.bf16.msra.mxu0 0
        %1491 = vmatprep.subr.bf16.mxu0 0
        %1492 = vmatpush1.bf16.msra.mxu0 0
        %1493 = vmatprep.subr.bf16.mxu0 0
        %1494 = vmatpush1.bf16.msra.mxu0 0
        %1495 = vmatprep.subr.bf16.mxu0 0
        %1496 = vmatpush1.bf16.msra.mxu0 0
        %1497 = vmatprep.subr.bf16.mxu0 0
        %1498 = vmatpush1.bf16.msra.mxu0 0
        %1499 = vmatprep.subr.bf16.mxu0 0
        %1500 = vmatpush1.bf16.msra.mxu0 0
        %1501 = vmatprep.subr.bf16.mxu0 0
        %1502 = vmatpush1.bf16.msra.mxu0 0
        %1503 = vmatprep.subr.bf16.mxu0 0
        %1504 = vmatpush1.bf16.msra.mxu0 0
        %1505 = vmatprep.subr.bf16.mxu0 0
        %1506 = vmatpush1.bf16.msra.mxu0 0
        %1507 = vmatprep.mubr.bf16.mxu0 0
        %1508 = vmatmul.mubr.bf16.gmra.mrb[0].mxu0 %v1473
        %v1509 = vpop.f32.mrb[0].mxu0
        %v1510 = vadd.f32 %v1458, %v1509
        %v1511 = vpop.f32.mrb[0].mxu0
        %v1512 = vpop.f32.mrb[0].mxu0
        %v1513 = vpop.f32.mrb[0].mxu0
        %1514 = vdwg.mxu0
        %v1515 = vmax.f32 %v1510, 0.0
        %v1516 = vpack.c.bf16 %v1515, %v1515
        %v1518 = vlaneseq
        %v1519 = vshrl.u32 %v1518, 7
        %v1520 = vsub.s32 0, %v1519
        %v1521 = vrot.slane %v821, %v1520
        %v1531 = vunpack.c.l.b16 %v813
        %v1532 = vunpack.c.l.b16 %v814
        %v1533 = vunpack.c.l.b16 %v815
        %v1534 = vunpack.c.l.b16 %v816
        %v1535 = vunpack.c.l.b16 %v817
        %v1536 = vunpack.c.l.b16 %v818
        %v1537 = vunpack.c.l.b16 %v819
        %v1538 = vunpack.c.l.b16 %v820
        %v1539 = vpack.c.b16 %v1532, %v1531
        %v1540 = vpack.c.b16 %v1534, %v1533
        %v1541 = vpack.c.b16 %v1536, %v1535
        %v1542 = vpack.c.b16 %v1538, %v1537
        %vm1547 = vcmask 523264
        %v1549 = vsel %vm1547, %v1516, 0
        %1551 = vmatprep.subr.bf16.mxu0 0
        %1552 = vmatpush1.bf16.msra.mxu0 %v1539
        %1553 = vmatprep.subr.bf16.mxu0 0
        %1554 = vmatpush1.bf16.msra.mxu0 %v1540
        %1555 = vmatprep.subr.bf16.mxu0 0
        %1556 = vmatpush1.bf16.msra.mxu0 %v1541
        %1557 = vmatprep.subr.bf16.mxu0 0
        %1558 = vmatpush1.bf16.msra.mxu0 %v1542
        %1559 = vmatprep.subr.bf16.mxu0 0
        %1560 = vmatpush1.bf16.msra.mxu0 0
        %1561 = vmatprep.subr.bf16.mxu0 0
        %1562 = vmatpush1.bf16.msra.mxu0 0
        %1563 = vmatprep.subr.bf16.mxu0 0
        %1564 = vmatpush1.bf16.msra.mxu0 0
        %1565 = vmatprep.subr.bf16.mxu0 0
        %1566 = vmatpush1.bf16.msra.mxu0 0
        %1567 = vmatprep.subr.bf16.mxu0 0
        %1568 = vmatpush1.bf16.msra.mxu0 0
        %1569 = vmatprep.subr.bf16.mxu0 0
        %1570 = vmatpush1.bf16.msra.mxu0 0
        %1571 = vmatprep.subr.bf16.mxu0 0
        %1572 = vmatpush1.bf16.msra.mxu0 0
        %1573 = vmatprep.subr.bf16.mxu0 0
        %1574 = vmatpush1.bf16.msra.mxu0 0
        %1575 = vmatprep.subr.bf16.mxu0 0
        %1576 = vmatpush1.bf16.msra.mxu0 0
        %1577 = vmatprep.subr.bf16.mxu0 0
        %1578 = vmatpush1.bf16.msra.mxu0 0
        %1579 = vmatprep.subr.bf16.mxu0 0
        %1580 = vmatpush1.bf16.msra.mxu0 0
        %1581 = vmatprep.subr.bf16.mxu0 0
        %1582 = vmatpush1.bf16.msra.mxu0 0
        %1583 = vmatprep.mubr.bf16.mxu0 0
        %1584 = vmatmul.mubr.bf16.gmra.mrb[0].mxu0 %v1549
        %v1585 = vpop.f32.mrb[0].mxu0
        %v1586 = vadd.f32 %v1521, %v1585
        %v1587 = vpop.f32.mrb[0].mxu0
        %v1588 = vpop.f32.mrb[0].mxu0
        %v1589 = vpop.f32.mrb[0].mxu0
        %1590 = vdwg.mxu0
        %v1591 = vadd.f32 %v1586, %v1452
        %v1592 = vsel %vm846, %v1591, 0.0
        %1593 = vadd.xlane.f32.xlu0 %v1592
        %v1594 = vpop.xlane.xlu0 %1593
        %v1595 = vmul.f32 %v1594, %v1428
        %v1596 = vsub.f32 %v1591, %v1595
        %v1597 = vmul.f32 %v1596, %v1596
        %v1598 = vsel %vm846, %v1597, 0.0
        %1599 = vadd.xlane.f32.xlu0 %v1598
        %v1600 = vpop.xlane.xlu0 %1599
        %v1601 = vmul.f32 %v1600, %v1428
        %v1602 = vadd.f32 %v1601, 1e-05
        %v1603 = vrsqrt.pop %v1602
        %v1604 = vmul.f32 %v1596, %v1603
        %v1606 = vlaneseq
        %v1607 = vshrl.u32 %v1606, 7
        %v1608 = vsub.s32 0, %v1607
        %v1609 = vrot.slane %v822, %v1608
        %v1611 = vmul.f32 %v1604, %v1609
        %v1613 = vlaneseq
        %v1614 = vshrl.u32 %v1613, 7
        %v1615 = vsub.s32 0, %v1614
        %v1616 = vrot.slane %v823, %v1615
        %v1618 = vadd.f32 %v1611, %v1616
        %1619 = vst.msk [vmem:[#allocation7] sm:$0xff] %vm846, %v1618
        %p1620 = scmp.eq.s32.totalorder %s38, 1
        // Predicated region
        $region97: #{tpu_custom_call.1} parent=83 // pred_check
          %p1621 = pneg %p1620
        $region98: #{tpu_custom_call.1} parent=83 // pred_check_branch
          %1623 = sbr.rel (%p1621) target = $region100
        $region99: #{tpu_custom_call.1} parent=83 // pred_region
          %v1624 = vld [vmem:[%s2] sm:$0x1]
          %v1625 = vld [vmem:[#allocation5] sm:$0x1]
          %v1626 = vsel %vm846, %v1618, 0.0
          %1627 = vadd.xlane.f32.xlu0 %v1626
          %v1628 = vpop.xlane.xlu0 %1627
          %v1629 = vmul.f32 %v1628, %v1428
          %v1630 = vsub.f32 %v1618, %v1629
          %v1631 = vmul.f32 %v1630, %v1630
          %v1632 = vsel %vm846, %v1631, 0.0
          %1633 = vadd.xlane.f32.xlu0 %v1632
          %v1634 = vpop.xlane.xlu0 %1633
          %v1635 = vmul.f32 %v1634, %v1428
          %v1636 = vadd.f32 %v1635, 1e-12
          %v1637 = vrsqrt.pop %v1636
          %v1638 = vmul.f32 %v1630, %v1637
          %v1640 = vlaneseq
          %v1641 = vshrl.u32 %v1640, 7
          %v1642 = vsub.s32 0, %v1641
          %v1643 = vrot.slane %v1624, %v1642
          %v1645 = vmul.f32 %v1638, %v1643
          %v1647 = vlaneseq
          %v1648 = vshrl.u32 %v1647, 7
          %v1649 = vsub.s32 0, %v1648
          %v1650 = vrot.slane %v1625, %v1649
          %v1652 = vadd.f32 %v1645, %v1650
          %1653 = vst.msk [vmem:[#allocation7] sm:$0xff] %vm846, %v1652
          %v1655 = vsel %vm896, %v825, 0
          %1657 = vmatprep.subr.mxu0 0.0
          %1658 = vmatpush1.msra.mxu0 %v1652
          %1659 = vmatprep.subr.mxu0 0.0
          %1660 = vmatpush1.msra.mxu0 0.0
          %1661 = vmatprep.subr.mxu0 0.0
          %1662 = vmatpush1.msra.mxu0 0.0
          %1663 = vmatprep.subr.mxu0 0.0
          %1664 = vmatpush1.msra.mxu0 0.0
          %1665 = vmatprep.subr.mxu0 0.0
          %1666 = vmatpush1.msra.mxu0 0.0
          %1667 = vmatprep.subr.mxu0 0.0
          %1668 = vmatpush1.msra.mxu0 0.0
          %1669 = vmatprep.subr.mxu0 0.0
          %1670 = vmatpush1.msra.mxu0 0.0
          %1671 = vmatprep.subr.mxu0 0.0
          %1672 = vmatpush1.msra.mxu0 0.0
          %1673 = vmatprep.subr.mxu0 0.0
          %1674 = vmatpush1.msra.mxu0 0.0
          %1675 = vmatprep.subr.mxu0 0.0
          %1676 = vmatpush1.msra.mxu0 0.0
          %1677 = vmatprep.subr.mxu0 0.0
          %1678 = vmatpush1.msra.mxu0 0.0
          %1679 = vmatprep.subr.mxu0 0.0
          %1680 = vmatpush1.msra.mxu0 0.0
          %1681 = vmatprep.subr.mxu0 0.0
          %1682 = vmatpush1.msra.mxu0 0.0
          %1683 = vmatprep.subr.mxu0 0.0
          %1684 = vmatpush1.msra.mxu0 0.0
          %1685 = vmatprep.subr.mxu0 0.0
          %1686 = vmatpush1.msra.mxu0 0.0
          %1687 = vmatprep.subr.mxu0 0.0
          %1688 = vmatpush1.msra.mxu0 0.0
          %1689 = vmatprep.subr.mxu0 0.0
          %1690 = vmatpush1.msra.mxu0 0.0
          %1691 = vmatprep.subr.mxu0 0.0
          %1692 = vmatpush1.msra.mxu0 0.0
          %1693 = vmatprep.subr.mxu0 0.0
          %1694 = vmatpush1.msra.mxu0 0.0
          %1695 = vmatprep.subr.mxu0 0.0
          %1696 = vmatpush1.msra.mxu0 0.0
          %1697 = vmatprep.subr.mxu0 0.0
          %1698 = vmatpush1.msra.mxu0 0.0
          %1699 = vmatprep.subr.mxu0 0.0
          %1700 = vmatpush1.msra.mxu0 0.0
          %1701 = vmatprep.subr.mxu0 0.0
          %1702 = vmatpush1.msra.mxu0 0.0
          %1703 = vmatprep.subr.mxu0 0.0
          %1704 = vmatpush1.msra.mxu0 0.0
          %1705 = vmatprep.subr.mxu0 0.0
          %1706 = vmatpush1.msra.mxu0 0.0
          %1707 = vmatprep.subr.mxu0 0.0
          %1708 = vmatpush1.msra.mxu0 0.0
          %1709 = vmatprep.subr.mxu0 0.0
          %1710 = vmatpush1.msra.mxu0 0.0
          %1711 = vmatprep.subr.mxu0 0.0
          %1712 = vmatpush1.msra.mxu0 0.0
          %1713 = vmatprep.subr.mxu0 0.0
          %1714 = vmatpush1.msra.mxu0 0.0
          %1715 = vmatprep.subr.mxu0 0.0
          %1716 = vmatpush1.msra.mxu0 0.0
          %1717 = vmatprep.subr.mxu0 0.0
          %1718 = vmatpush1.msra.mxu0 0.0
          %1719 = vmatprep.subr.mxu0 0.0
          %1720 = vmatpush1.msra.mxu0 0.0
          %1721 = vmatprep.mubr.f32.mxu0 0.0
          %1722 = vmatmul.mubr.f32.gmra.mrb[0].mxu0 %v1655
          %v1723 = vpop.f32.mrb[0].mxu0
          %v1724 = vadd.f32 0.0, %v1723
          %v1725 = vpop.f32.mrb[0].mxu0
          %1726 = vdwg.mxu0
          %vm1727 = vcmask 57344
          %v1728 = vsel %vm1727, %v825, 0.0
          %1729 = vadd.xlane.f32.xlu0 %v1728
          %v1730 = vpop.xlane.xlu0 %1729
          %v1731 = vmax.f32 %v1730, 1e-09
          %v1732 = vrcp.pop %v1731
          %v1733 = vmul.f32 %v1724, %v1732
          %vm1734 = vcmask 253952
          %1735 = vst.msk [vmem:[#allocation8] sm:$0x1] %vm1734, %v1733
        $region100: #{tpu_custom_call.1} parent=83 // pred_fallthru
          _
        %s1736 = scalar_lea.vmem [#allocation7], 8
        %v1737 = vld [vmem:[%s1736] sm:$0xff]
        %s1738 = scalar_lea.vmem %s738, 1
        %v1739 = vld [vmem:[%s1738] sm:$0x1]
        %vm1740 = vcmp.gt.f32.partialorder %v1739, 0.5
        %v1741 = vpack.c.bf16 %v1737, %v1737
        %v1743 = vsel %vm846, %v1741, 0
        %1745 = vmatprep.subr.bf16.mxu0 0
        %1746 = vmatpush1.bf16.msra.mxu0 %v842
        %1747 = vmatprep.subr.bf16.mxu0 0
        %1748 = vmatpush1.bf16.msra.mxu0 %v843
        %1749 = vmatprep.subr.bf16.mxu0 0
        %1750 = vmatpush1.bf16.msra.mxu0 0
        %1751 = vmatprep.subr.bf16.mxu0 0
        %1752 = vmatpush1.bf16.msra.mxu0 0
        %1753 = vmatprep.subr.bf16.mxu0 0
        %1754 = vmatpush1.bf16.msra.mxu0 0
        %1755 = vmatprep.subr.bf16.mxu0 0
        %1756 = vmatpush1.bf16.msra.mxu0 0
        %1757 = vmatprep.subr.bf16.mxu0 0
        %1758 = vmatpush1.bf16.msra.mxu0 0
        %1759 = vmatprep.subr.bf16.mxu0 0
        %1760 = vmatpush1.bf16.msra.mxu0 0
        %1761 = vmatprep.subr.bf16.mxu0 0
        %1762 = vmatpush1.bf16.msra.mxu0 0
        %1763 = vmatprep.subr.bf16.mxu0 0
        %1764 = vmatpush1.bf16.msra.mxu0 0
        %1765 = vmatprep.subr.bf16.mxu0 0
        %1766 = vmatpush1.bf16.msra.mxu0 0
        %1767 = vmatprep.subr.bf16.mxu0 0
        %1768 = vmatpush1.bf16.msra.mxu0 0
        %1769 = vmatprep.subr.bf16.mxu0 0
        %1770 = vmatpush1.bf16.msra.mxu0 0
        %1771 = vmatprep.subr.bf16.mxu0 0
        %1772 = vmatpush1.bf16.msra.mxu0 0
        %1773 = vmatprep.subr.bf16.mxu0 0
        %1774 = vmatpush1.bf16.msra.mxu0 0
        %1775 = vmatprep.subr.bf16.mxu0 0
        %1776 = vmatpush1.bf16.msra.mxu0 0
        %1777 = vmatprep.mubr.bf16.mxu0 0
        %1778 = vmatmul.mubr.bf16.gmra.mrb[0].mxu0 %v1743
        %v1779 = vpop.f32.mrb[0].mxu0
        %v1780 = vadd.f32 %v832, %v1779
        %v1781 = vpop.f32.mrb[0].mxu0
        %v1782 = vpop.f32.mrb[0].mxu0
        %v1783 = vpop.f32.mrb[0].mxu0
        %1784 = vdwg.mxu0
        %v1785 = vmul.f32 %v1780, 0.35355338
        %v1786 = vpack.c.bf16 %v1785, %v1785
        %v1787 = vpack.c.bf16 %v1780, %v1780
        %1789 = vrot.lane.b32.xlu0 %v1787, 96
        %v1790 = vpop.permute.xlu0 %1789
        %v1792 = vsel %vm896, %v1786, 0
        %v1795 = vsel %vm896, %v1790, 0
        %1797 = vmatprep.subr.bf16.mxu0 0
        %1798 = vmatpush1.bf16.xpose.msra.mxu0 %v1795
        %1799 = vmatprep.subr.bf16.mxu0 0
        %1800 = vmatpush1.bf16.xpose.msra.mxu0 0
        %1801 = vmatprep.subr.bf16.mxu0 0
        %1802 = vmatpush1.bf16.xpose.msra.mxu0 0
        %1803 = vmatprep.subr.bf16.mxu0 0
        %1804 = vmatpush1.bf16.xpose.msra.mxu0 0
        %1805 = vmatprep.subr.bf16.mxu0 0
        %1806 = vmatpush1.bf16.xpose.msra.mxu0 0
        %1807 = vmatprep.subr.bf16.mxu0 0
        %1808 = vmatpush1.bf16.xpose.msra.mxu0 0
        %1809 = vmatprep.subr.bf16.mxu0 0
        %1810 = vmatpush1.bf16.xpose.msra.mxu0 0
        %1811 = vmatprep.subr.bf16.mxu0 0
        %1812 = vmatpush1.bf16.xpose.msra.mxu0 0
        %1813 = vmatprep.subr.bf16.mxu0 0
        %1814 = vmatpush1.bf16.xpose.msra.mxu0 0
        %1815 = vmatprep.subr.bf16.mxu0 0
        %1816 = vmatpush1.bf16.xpose.msra.mxu0 0
        %1817 = vmatprep.subr.bf16.mxu0 0
        %1818 = vmatpush1.bf16.xpose.msra.mxu0 0
        %1819 = vmatprep.subr.bf16.mxu0 0
        %1820 = vmatpush1.bf16.xpose.msra.mxu0 0
        %1821 = vmatprep.subr.bf16.mxu0 0
        %1822 = vmatpush1.bf16.xpose.msra.mxu0 0
        %1823 = vmatprep.subr.bf16.mxu0 0
        %1824 = vmatpush1.bf16.xpose.msra.mxu0 0
        %1825 = vmatprep.subr.bf16.mxu0 0
        %1826 = vmatpush1.bf16.xpose.msra.mxu0 0
        %1827 = vmatprep.subr.bf16.mxu0 0
        %1828 = vmatpush1.bf16.xpose.msra.mxu0 0
        %1829 = vmatprep.mubr.bf16.mxu0 0
        %1830 = vmatmul.mubr.bf16.gmra.mrb[0].mxu0 %v1792
        %v1831 = vpop.f32.mrb[0].mxu0
        %v1832 = vadd.f32 0.0, %v1831
        %v1833 = vpop.f32.mrb[0].mxu0
        %v1834 = vpop.f32.mrb[0].mxu0
        %v1835 = vpop.f32.mrb[0].mxu0
        %1836 = vdwg.mxu0
        %v1837 = vsel %vm1740, 1, 0
        %v1838 = vlaneseq
        %v1839 = vshrl.u32 %v1838, 7
        %v1840 = vsub.s32 0, %v1839
        %v1841 = vrot.slane %v1837, %v1840
        %vm1842 = vcmp.eq.s32.totalorder %v1841, 1
        %v1843 = vsel %vm1842, -1e+09, %v1832
        %v1844 = vsel %vm896, %v1843, -inf
        %1845 = vmax.xlane.f32.xlu0 %v1844
        %v1846 = vpop.xlane.xlu0 %1845
        %v1847 = vsub.f32 %v1843, %v1846
        %v1848 = vmul.f32 %v1847, 1.442695
        %v1849 = vpow.pop %v1848
        %v1850 = vsel %vm896, %v1849, 0.0
        %1851 = vadd.xlane.f32.xlu0 %v1850
        %v1852 = vpop.xlane.xlu0 %1851
        %v1853 = vrcp.pop %v1852
        %v1854 = vmul.f32 %v1849, %v1853
        %v1855 = vpack.c.bf16 %v1854, %v1854
        %1856 = vrot.lane.b32.xlu0 %v1787, 64
        %v1857 = vpop.permute.xlu0 %1856
        %v1859 = vsel %vm896, %v1855, 0
        %v1862 = vsel %vm967, %v1857, 0
        %1864 = vmatprep.subr.bf16.mxu0 0
        %1865 = vmatpush1.bf16.msra.mxu0 %v1862
        %1866 = vmatprep.subr.bf16.mxu0 0
        %1867 = vmatpush1.bf16.msra.mxu0 0
        %1868 = vmatprep.subr.bf16.mxu0 0
        %1869 = vmatpush1.bf16.msra.mxu0 0
        %1870 = vmatprep.subr.bf16.mxu0 0
        %1871 = vmatpush1.bf16.msra.mxu0 0
        %1872 = vmatprep.subr.bf16.mxu0 0
        %1873 = vmatpush1.bf16.msra.mxu0 0
        %1874 = vmatprep.subr.bf16.mxu0 0
        %1875 = vmatpush1.bf16.msra.mxu0 0
        %1876 = vmatprep.subr.bf16.mxu0 0
        %1877 = vmatpush1.bf16.msra.mxu0 0
        %1878 = vmatprep.subr.bf16.mxu0 0
        %1879 = vmatpush1.bf16.msra.mxu0 0
        %1880 = vmatprep.subr.bf16.mxu0 0
        %1881 = vmatpush1.bf16.msra.mxu0 0
        %1882 = vmatprep.subr.bf16.mxu0 0
        %1883 = vmatpush1.bf16.msra.mxu0 0
        %1884 = vmatprep.subr.bf16.mxu0 0
        %1885 = vmatpush1.bf16.msra.mxu0 0
        %1886 = vmatprep.subr.bf16.mxu0 0
        %1887 = vmatpush1.bf16.msra.mxu0 0
        %1888 = vmatprep.subr.bf16.mxu0 0
        %1889 = vmatpush1.bf16.msra.mxu0 0
        %1890 = vmatprep.subr.bf16.mxu0 0
        %1891 = vmatpush1.bf16.msra.mxu0 0
        %1892 = vmatprep.subr.bf16.mxu0 0
        %1893 = vmatpush1.bf16.msra.mxu0 0
        %1894 = vmatprep.subr.bf16.mxu0 0
        %1895 = vmatpush1.bf16.msra.mxu0 0
        %1896 = vmatprep.mubr.bf16.mxu0 0
        %1897 = vmatmul.mubr.bf16.gmra.mrb[0].mxu0 %v1859
        %v1898 = vpop.f32.mrb[0].mxu0
        %v1899 = vadd.f32 0.0, %v1898
        %v1900 = vpop.f32.mrb[0].mxu0
        %v1901 = vpop.f32.mrb[0].mxu0
        %v1902 = vpop.f32.mrb[0].mxu0
        %1903 = vdwg.mxu0
        %1905 = vrot.lane.b32.xlu0 %v1786, 120
        %v1906 = vpop.permute.xlu0 %1905
        %1907 = vrot.lane.b32.xlu0 %v1787, 88
        %v1908 = vpop.permute.xlu0 %1907
        %v1910 = vsel %vm896, %v1906, 0
        %v1913 = vsel %vm896, %v1908, 0
        %1915 = vmatprep.subr.bf16.mxu0 0
        %1916 = vmatpush1.bf16.xpose.msra.mxu0 %v1913
        %1917 = vmatprep.subr.bf16.mxu0 0
        %1918 = vmatpush1.bf16.xpose.msra.mxu0 0
        %1919 = vmatprep.subr.bf16.mxu0 0
        %1920 = vmatpush1.bf16.xpose.msra.mxu0 0
        %1921 = vmatprep.subr.bf16.mxu0 0
        %1922 = vmatpush1.bf16.xpose.msra.mxu0 0
        %1923 = vmatprep.subr.bf16.mxu0 0
        %1924 = vmatpush1.bf16.xpose.msra.mxu0 0
        %1925 = vmatprep.subr.bf16.mxu0 0
        %1926 = vmatpush1.bf16.xpose.msra.mxu0 0
        %1927 = vmatprep.subr.bf16.mxu0 0
        %1928 = vmatpush1.bf16.xpose.msra.mxu0 0
        %1929 = vmatprep.subr.bf16.mxu0 0
        %1930 = vmatpush1.bf16.xpose.msra.mxu0 0
        %1931 = vmatprep.subr.bf16.mxu0 0
        %1932 = vmatpush1.bf16.xpose.msra.mxu0 0
        %1933 = vmatprep.subr.bf16.mxu0 0
        %1934 = vmatpush1.bf16.xpose.msra.mxu0 0
        %1935 = vmatprep.subr.bf16.mxu0 0
        %1936 = vmatpush1.bf16.xpose.msra.mxu0 0
        %1937 = vmatprep.subr.bf16.mxu0 0
        %1938 = vmatpush1.bf16.xpose.msra.mxu0 0
        %1939 = vmatprep.subr.bf16.mxu0 0
        %1940 = vmatpush1.bf16.xpose.msra.mxu0 0
        %1941 = vmatprep.subr.bf16.mxu0 0
        %1942 = vmatpush1.bf16.xpose.msra.mxu0 0
        %1943 = vmatprep.subr.bf16.mxu0 0
        %1944 = vmatpush1.bf16.xpose.msra.mxu0 0
        %1945 = vmatprep.subr.bf16.mxu0 0
        %1946 = vmatpush1.bf16.xpose.msra.mxu0 0
        %1947 = vmatprep.mubr.bf16.mxu0 0
        %1948 = vmatmul.mubr.bf16.gmra.mrb[0].mxu0 %v1910
        %v1949 = vpop.f32.mrb[0].mxu0
        %v1950 = vadd.f32 0.0, %v1949
        %v1951 = vpop.f32.mrb[0].mxu0
        %v1952 = vpop.f32.mrb[0].mxu0
        %v1953 = vpop.f32.mrb[0].mxu0
        %1954 = vdwg.mxu0
        %v1955 = vsel %vm1842, -1e+09, %v1950
        %v1956 = vsel %vm896, %v1955, -inf
        %1957 = vmax.xlane.f32.xlu0 %v1956
        %v1958 = vpop.xlane.xlu0 %1957
        %v1959 = vsub.f32 %v1955, %v1958
        %v1960 = vmul.f32 %v1959, 1.442695
        %v1961 = vpow.pop %v1960
        %v1962 = vsel %vm896, %v1961, 0.0
        %1963 = vadd.xlane.f32.xlu0 %v1962
        %v1964 = vpop.xlane.xlu0 %1963
        %v1965 = vrcp.pop %v1964
        %v1966 = vmul.f32 %v1961, %v1965
        %v1967 = vpack.c.bf16 %v1966, %v1966
        %1968 = vrot.lane.b32.xlu0 %v1787, 56
        %v1969 = vpop.permute.xlu0 %1968
        %v1971 = vsel %vm896, %v1967, 0
        %v1974 = vsel %vm967, %v1969, 0
        %1976 = vmatprep.subr.bf16.mxu0 0
        %1977 = vmatpush1.bf16.msra.mxu0 %v1974
        %1978 = vmatprep.subr.bf16.mxu0 0
        %1979 = vmatpush1.bf16.msra.mxu0 0
        %1980 = vmatprep.subr.bf16.mxu0 0
        %1981 = vmatpush1.bf16.msra.mxu0 0
        %1982 = vmatprep.subr.bf16.mxu0 0
        %1983 = vmatpush1.bf16.msra.mxu0 0
        %1984 = vmatprep.subr.bf16.mxu0 0
        %1985 = vmatpush1.bf16.msra.mxu0 0
        %1986 = vmatprep.subr.bf16.mxu0 0
        %1987 = vmatpush1.bf16.msra.mxu0 0
        %1988 = vmatprep.subr.bf16.mxu0 0
        %1989 = vmatpush1.bf16.msra.mxu0 0
        %1990 = vmatprep.subr.bf16.mxu0 0
        %1991 = vmatpush1.bf16.msra.mxu0 0
        %1992 = vmatprep.subr.bf16.mxu0 0
        %1993 = vmatpush1.bf16.msra.mxu0 0
        %1994 = vmatprep.subr.bf16.mxu0 0
        %1995 = vmatpush1.bf16.msra.mxu0 0
        %1996 = vmatprep.subr.bf16.mxu0 0
        %1997 = vmatpush1.bf16.msra.mxu0 0
        %1998 = vmatprep.subr.bf16.mxu0 0
        %1999 = vmatpush1.bf16.msra.mxu0 0
        %2000 = vmatprep.subr.bf16.mxu0 0
        %2001 = vmatpush1.bf16.msra.mxu0 0
        %2002 = vmatprep.subr.bf16.mxu0 0
        %2003 = vmatpush1.bf16.msra.mxu0 0
        %2004 = vmatprep.subr.bf16.mxu0 0
        %2005 = vmatpush1.bf16.msra.mxu0 0
        %2006 = vmatprep.subr.bf16.mxu0 0
        %2007 = vmatpush1.bf16.msra.mxu0 0
        %2008 = vmatprep.mubr.bf16.mxu0 0
        %2009 = vmatmul.mubr.bf16.gmra.mrb[0].mxu0 %v1971
        %v2010 = vpop.f32.mrb[0].mxu0
        %v2011 = vadd.f32 0.0, %v2010
        %v2012 = vpop.f32.mrb[0].mxu0
        %v2013 = vpop.f32.mrb[0].mxu0
        %v2014 = vpop.f32.mrb[0].mxu0
        %2015 = vdwg.mxu0
        %2016 = vrot.lane.b32.xlu0 %v1786, 112
        %v2017 = vpop.permute.xlu0 %2016
        %2018 = vrot.lane.b32.xlu0 %v1787, 80
        %v2019 = vpop.permute.xlu0 %2018
        %v2021 = vsel %vm896, %v2017, 0
        %v2024 = vsel %vm896, %v2019, 0
        %2026 = vmatprep.subr.bf16.mxu0 0
        %2027 = vmatpush1.bf16.xpose.msra.mxu0 %v2024
        %2028 = vmatprep.subr.bf16.mxu0 0
        %2029 = vmatpush1.bf16.xpose.msra.mxu0 0
        %2030 = vmatprep.subr.bf16.mxu0 0
        %2031 = vmatpush1.bf16.xpose.msra.mxu0 0
        %2032 = vmatprep.subr.bf16.mxu0 0
        %2033 = vmatpush1.bf16.xpose.msra.mxu0 0
        %2034 = vmatprep.subr.bf16.mxu0 0
        %2035 = vmatpush1.bf16.xpose.msra.mxu0 0
        %2036 = vmatprep.subr.bf16.mxu0 0
        %2037 = vmatpush1.bf16.xpose.msra.mxu0 0
        %2038 = vmatprep.subr.bf16.mxu0 0
        %2039 = vmatpush1.bf16.xpose.msra.mxu0 0
        %2040 = vmatprep.subr.bf16.mxu0 0
        %2041 = vmatpush1.bf16.xpose.msra.mxu0 0
        %2042 = vmatprep.subr.bf16.mxu0 0
        %2043 = vmatpush1.bf16.xpose.msra.mxu0 0
        %2044 = vmatprep.subr.bf16.mxu0 0
        %2045 = vmatpush1.bf16.xpose.msra.mxu0 0
        %2046 = vmatprep.subr.bf16.mxu0 0
        %2047 = vmatpush1.bf16.xpose.msra.mxu0 0
        %2048 = vmatprep.subr.bf16.mxu0 0
        %2049 = vmatpush1.bf16.xpose.msra.mxu0 0
        %2050 = vmatprep.subr.bf16.mxu0 0
        %2051 = vmatpush1.bf16.xpose.msra.mxu0 0
        %2052 = vmatprep.subr.bf16.mxu0 0
        %2053 = vmatpush1.bf16.xpose.msra.mxu0 0
        %2054 = vmatprep.subr.bf16.mxu0 0
        %2055 = vmatpush1.bf16.xpose.msra.mxu0 0
        %2056 = vmatprep.subr.bf16.mxu0 0
        %2057 = vmatpush1.bf16.xpose.msra.mxu0 0
        %2058 = vmatprep.mubr.bf16.mxu0 0
        %2059 = vmatmul.mubr.bf16.gmra.mrb[0].mxu0 %v2021
        %v2060 = vpop.f32.mrb[0].mxu0
        %v2061 = vadd.f32 0.0, %v2060
        %v2062 = vpop.f32.mrb[0].mxu0
        %v2063 = vpop.f32.mrb[0].mxu0
        %v2064 = vpop.f32.mrb[0].mxu0
        %2065 = vdwg.mxu0
        %v2066 = vsel %vm1842, -1e+09, %v2061
        %v2067 = vsel %vm896, %v2066, -inf
        %2068 = vmax.xlane.f32.xlu0 %v2067
        %v2069 = vpop.xlane.xlu0 %2068
        %v2070 = vsub.f32 %v2066, %v2069
        %v2071 = vmul.f32 %v2070, 1.442695
        %v2072 = vpow.pop %v2071
        %v2073 = vsel %vm896, %v2072, 0.0
        %2074 = vadd.xlane.f32.xlu0 %v2073
        %v2075 = vpop.xlane.xlu0 %2074
        %v2076 = vrcp.pop %v2075
        %v2077 = vmul.f32 %v2072, %v2076
        %v2078 = vpack.c.bf16 %v2077, %v2077
        %2079 = vrot.lane.b32.xlu0 %v1787, 48
        %v2080 = vpop.permute.xlu0 %2079
        %v2082 = vsel %vm896, %v2078, 0
        %v2085 = vsel %vm967, %v2080, 0
        %2087 = vmatprep.subr.bf16.mxu0 0
        %2088 = vmatpush1.bf16.msra.mxu0 %v2085
        %2089 = vmatprep.subr.bf16.mxu0 0
        %2090 = vmatpush1.bf16.msra.mxu0 0
        %2091 = vmatprep.subr.bf16.mxu0 0
        %2092 = vmatpush1.bf16.msra.mxu0 0
        %2093 = vmatprep.subr.bf16.mxu0 0
        %2094 = vmatpush1.bf16.msra.mxu0 0
        %2095 = vmatprep.subr.bf16.mxu0 0
        %2096 = vmatpush1.bf16.msra.mxu0 0
        %2097 = vmatprep.subr.bf16.mxu0 0
        %2098 = vmatpush1.bf16.msra.mxu0 0
        %2099 = vmatprep.subr.bf16.mxu0 0
        %2100 = vmatpush1.bf16.msra.mxu0 0
        %2101 = vmatprep.subr.bf16.mxu0 0
        %2102 = vmatpush1.bf16.msra.mxu0 0
        %2103 = vmatprep.subr.bf16.mxu0 0
        %2104 = vmatpush1.bf16.msra.mxu0 0
        %2105 = vmatprep.subr.bf16.mxu0 0
        %2106 = vmatpush1.bf16.msra.mxu0 0
        %2107 = vmatprep.subr.bf16.mxu0 0
        %2108 = vmatpush1.bf16.msra.mxu0 0
        %2109 = vmatprep.subr.bf16.mxu0 0
        %2110 = vmatpush1.bf16.msra.mxu0 0
        %2111 = vmatprep.subr.bf16.mxu0 0
        %2112 = vmatpush1.bf16.msra.mxu0 0
        %2113 = vmatprep.subr.bf16.mxu0 0
        %2114 = vmatpush1.bf16.msra.mxu0 0
        %2115 = vmatprep.subr.bf16.mxu0 0
        %2116 = vmatpush1.bf16.msra.mxu0 0
        %2117 = vmatprep.subr.bf16.mxu0 0
        %2118 = vmatpush1.bf16.msra.mxu0 0
        %2119 = vmatprep.mubr.bf16.mxu0 0
        %2120 = vmatmul.mubr.bf16.gmra.mrb[0].mxu0 %v2082
        %v2121 = vpop.f32.mrb[0].mxu0
        %v2122 = vadd.f32 0.0, %v2121
        %v2123 = vpop.f32.mrb[0].mxu0
        %v2124 = vpop.f32.mrb[0].mxu0
        %v2125 = vpop.f32.mrb[0].mxu0
        %2126 = vdwg.mxu0
        %2127 = vrot.lane.b32.xlu0 %v1786, 104
        %v2128 = vpop.permute.xlu0 %2127
        %2129 = vrot.lane.b32.xlu0 %v1787, 72
        %v2130 = vpop.permute.xlu0 %2129
        %v2132 = vsel %vm896, %v2128, 0
        %v2135 = vsel %vm896, %v2130, 0
        %2137 = vmatprep.subr.bf16.mxu0 0
        %2138 = vmatpush1.bf16.xpose.msra.mxu0 %v2135
        %2139 = vmatprep.subr.bf16.mxu0 0
        %2140 = vmatpush1.bf16.xpose.msra.mxu0 0
        %2141 = vmatprep.subr.bf16.mxu0 0
        %2142 = vmatpush1.bf16.xpose.msra.mxu0 0
        %2143 = vmatprep.subr.bf16.mxu0 0
        %2144 = vmatpush1.bf16.xpose.msra.mxu0 0
        %2145 = vmatprep.subr.bf16.mxu0 0
        %2146 = vmatpush1.bf16.xpose.msra.mxu0 0
        %2147 = vmatprep.subr.bf16.mxu0 0
        %2148 = vmatpush1.bf16.xpose.msra.mxu0 0
        %2149 = vmatprep.subr.bf16.mxu0 0
        %2150 = vmatpush1.bf16.xpose.msra.mxu0 0
        %2151 = vmatprep.subr.bf16.mxu0 0
        %2152 = vmatpush1.bf16.xpose.msra.mxu0 0
        %2153 = vmatprep.subr.bf16.mxu0 0
        %2154 = vmatpush1.bf16.xpose.msra.mxu0 0
        %2155 = vmatprep.subr.bf16.mxu0 0
        %2156 = vmatpush1.bf16.xpose.msra.mxu0 0
        %2157 = vmatprep.subr.bf16.mxu0 0
        %2158 = vmatpush1.bf16.xpose.msra.mxu0 0
        %2159 = vmatprep.subr.bf16.mxu0 0
        %2160 = vmatpush1.bf16.xpose.msra.mxu0 0
        %2161 = vmatprep.subr.bf16.mxu0 0
        %2162 = vmatpush1.bf16.xpose.msra.mxu0 0
        %2163 = vmatprep.subr.bf16.mxu0 0
        %2164 = vmatpush1.bf16.xpose.msra.mxu0 0
        %2165 = vmatprep.subr.bf16.mxu0 0
        %2166 = vmatpush1.bf16.xpose.msra.mxu0 0
        %2167 = vmatprep.subr.bf16.mxu0 0
        %2168 = vmatpush1.bf16.xpose.msra.mxu0 0
        %2169 = vmatprep.mubr.bf16.mxu0 0
        %2170 = vmatmul.mubr.bf16.gmra.mrb[0].mxu0 %v2132
        %v2171 = vpop.f32.mrb[0].mxu0
        %v2172 = vadd.f32 0.0, %v2171
        %v2173 = vpop.f32.mrb[0].mxu0
        %v2174 = vpop.f32.mrb[0].mxu0
        %v2175 = vpop.f32.mrb[0].mxu0
        %2176 = vdwg.mxu0
        %v2177 = vsel %vm1842, -1e+09, %v2172
        %v2178 = vsel %vm896, %v2177, -inf
        %2179 = vmax.xlane.f32.xlu0 %v2178
        %v2180 = vpop.xlane.xlu0 %2179
        %v2181 = vsub.f32 %v2177, %v2180
        %v2182 = vmul.f32 %v2181, 1.442695
        %v2183 = vpow.pop %v2182
        %v2184 = vsel %vm896, %v2183, 0.0
        %2185 = vadd.xlane.f32.xlu0 %v2184
        %v2186 = vpop.xlane.xlu0 %2185
        %v2187 = vrcp.pop %v2186
        %v2188 = vmul.f32 %v2183, %v2187
        %v2189 = vpack.c.bf16 %v2188, %v2188
        %2190 = vrot.lane.b32.xlu0 %v1787, 40
        %v2191 = vpop.permute.xlu0 %2190
        %v2193 = vsel %vm896, %v2189, 0
        %v2196 = vsel %vm967, %v2191, 0
        %2198 = vmatprep.subr.bf16.mxu0 0
        %2199 = vmatpush1.bf16.msra.mxu0 %v2196
        %2200 = vmatprep.subr.bf16.mxu0 0
        %2201 = vmatpush1.bf16.msra.mxu0 0
        %2202 = vmatprep.subr.bf16.mxu0 0
        %2203 = vmatpush1.bf16.msra.mxu0 0
        %2204 = vmatprep.subr.bf16.mxu0 0
        %2205 = vmatpush1.bf16.msra.mxu0 0
        %2206 = vmatprep.subr.bf16.mxu0 0
        %2207 = vmatpush1.bf16.msra.mxu0 0
        %2208 = vmatprep.subr.bf16.mxu0 0
        %2209 = vmatpush1.bf16.msra.mxu0 0
        %2210 = vmatprep.subr.bf16.mxu0 0
        %2211 = vmatpush1.bf16.msra.mxu0 0
        %2212 = vmatprep.subr.bf16.mxu0 0
        %2213 = vmatpush1.bf16.msra.mxu0 0
        %2214 = vmatprep.subr.bf16.mxu0 0
        %2215 = vmatpush1.bf16.msra.mxu0 0
        %2216 = vmatprep.subr.bf16.mxu0 0
        %2217 = vmatpush1.bf16.msra.mxu0 0
        %2218 = vmatprep.subr.bf16.mxu0 0
        %2219 = vmatpush1.bf16.msra.mxu0 0
        %2220 = vmatprep.subr.bf16.mxu0 0
        %2221 = vmatpush1.bf16.msra.mxu0 0
        %2222 = vmatprep.subr.bf16.mxu0 0
        %2223 = vmatpush1.bf16.msra.mxu0 0
        %2224 = vmatprep.subr.bf16.mxu0 0
        %2225 = vmatpush1.bf16.msra.mxu0 0
        %2226 = vmatprep.subr.bf16.mxu0 0
        %2227 = vmatpush1.bf16.msra.mxu0 0
        %2228 = vmatprep.subr.bf16.mxu0 0
        %2229 = vmatpush1.bf16.msra.mxu0 0
        %2230 = vmatprep.mubr.bf16.mxu0 0
        %2231 = vmatmul.mubr.bf16.gmra.mrb[0].mxu0 %v2193
        %v2232 = vpop.f32.mrb[0].mxu0
        %v2233 = vadd.f32 0.0, %v2232
        %v2234 = vpop.f32.mrb[0].mxu0
        %v2235 = vpop.f32.mrb[0].mxu0
        %v2236 = vpop.f32.mrb[0].mxu0
        %2237 = vdwg.mxu0
        %2239 = vrot.lane.b32.xlu0 %v2011, 8
        %v2240 = vpop.permute.xlu0 %2239
        %2243 = vrot.lane.b32.xlu0 %v2122, 16
        %v2244 = vpop.permute.xlu0 %2243
        %2247 = vrot.lane.b32.xlu0 %v2233, 24
        %v2248 = vpop.permute.xlu0 %2247
        %v2250 = vsel %vm896, %v1899, %v2240
        %v2251 = vsel %vm1358, %v2250, %v2244
        %v2252 = vsel %vm1360, %v2251, %v2248
        %v2253 = vpack.c.bf16 %v2252, %v2252
        %v2255 = vsel %vm846, %v2253, 0
        %2257 = vmatprep.subr.bf16.mxu0 0
        %2258 = vmatpush1.bf16.msra.mxu0 %v1377
        %2259 = vmatprep.subr.bf16.mxu0 0
        %2260 = vmatpush1.bf16.msra.mxu0 %v1378
        %2261 = vmatprep.subr.bf16.mxu0 0
        %2262 = vmatpush1.bf16.msra.mxu0 0
        %2263 = vmatprep.subr.bf16.mxu0 0
        %2264 = vmatpush1.bf16.msra.mxu0 0
        %2265 = vmatprep.subr.bf16.mxu0 0
        %2266 = vmatpush1.bf16.msra.mxu0 0
        %2267 = vmatprep.subr.bf16.mxu0 0
        %2268 = vmatpush1.bf16.msra.mxu0 0
        %2269 = vmatprep.subr.bf16.mxu0 0
        %2270 = vmatpush1.bf16.msra.mxu0 0
        %2271 = vmatprep.subr.bf16.mxu0 0
        %2272 = vmatpush1.bf16.msra.mxu0 0
        %2273 = vmatprep.subr.bf16.mxu0 0
        %2274 = vmatpush1.bf16.msra.mxu0 0
        %2275 = vmatprep.subr.bf16.mxu0 0
        %2276 = vmatpush1.bf16.msra.mxu0 0
        %2277 = vmatprep.subr.bf16.mxu0 0
        %2278 = vmatpush1.bf16.msra.mxu0 0
        %2279 = vmatprep.subr.bf16.mxu0 0
        %2280 = vmatpush1.bf16.msra.mxu0 0
        %2281 = vmatprep.subr.bf16.mxu0 0
        %2282 = vmatpush1.bf16.msra.mxu0 0
        %2283 = vmatprep.subr.bf16.mxu0 0
        %2284 = vmatpush1.bf16.msra.mxu0 0
        %2285 = vmatprep.subr.bf16.mxu0 0
        %2286 = vmatpush1.bf16.msra.mxu0 0
        %2287 = vmatprep.subr.bf16.mxu0 0
        %2288 = vmatpush1.bf16.msra.mxu0 0
        %2289 = vmatprep.mubr.bf16.mxu0 0
        %2290 = vmatmul.mubr.bf16.gmra.mrb[0].mxu0 %v2255
        %v2291 = vpop.f32.mrb[0].mxu0
        %v2292 = vadd.f32 %v1367, %v2291
        %v2293 = vpop.f32.mrb[0].mxu0
        %v2294 = vpop.f32.mrb[0].mxu0
        %v2295 = vpop.f32.mrb[0].mxu0
        %2296 = vdwg.mxu0
        %v2297 = vadd.f32 %v2292, %v1737
        %v2298 = vsel %vm846, %v2297, 0.0
        %2299 = vadd.xlane.f32.xlu0 %v2298
        %v2300 = vpop.xlane.xlu0 %2299
        %v2301 = vmul.f32 %v2300, %v1428
        %v2302 = vsub.f32 %v2297, %v2301
        %v2303 = vmul.f32 %v2302, %v2302
        %v2304 = vsel %vm846, %v2303, 0.0
        %2305 = vadd.xlane.f32.xlu0 %v2304
        %v2306 = vpop.xlane.xlu0 %2305
        %v2307 = vmul.f32 %v2306, %v1428
        %v2308 = vadd.f32 %v2307, 1e-05
        %v2309 = vrsqrt.pop %v2308
        %v2310 = vmul.f32 %v2302, %v2309
        %v2311 = vmul.f32 %v2310, %v1443
        %v2312 = vadd.f32 %v2311, %v1450
        %v2313 = vpack.c.bf16 %v2312, %v2312
        %v2315 = vsel %vm846, %v2313, 0
        %2317 = vmatprep.subr.bf16.mxu0 0
        %2318 = vmatpush1.bf16.msra.mxu0 %v1468
        %2319 = vmatprep.subr.bf16.mxu0 0
        %2320 = vmatpush1.bf16.msra.mxu0 %v1469
        %2321 = vmatprep.subr.bf16.mxu0 0
        %2322 = vmatpush1.bf16.msra.mxu0 0
        %2323 = vmatprep.subr.bf16.mxu0 0
        %2324 = vmatpush1.bf16.msra.mxu0 0
        %2325 = vmatprep.subr.bf16.mxu0 0
        %2326 = vmatpush1.bf16.msra.mxu0 0
        %2327 = vmatprep.subr.bf16.mxu0 0
        %2328 = vmatpush1.bf16.msra.mxu0 0
        %2329 = vmatprep.subr.bf16.mxu0 0
        %2330 = vmatpush1.bf16.msra.mxu0 0
        %2331 = vmatprep.subr.bf16.mxu0 0
        %2332 = vmatpush1.bf16.msra.mxu0 0
        %2333 = vmatprep.subr.bf16.mxu0 0
        %2334 = vmatpush1.bf16.msra.mxu0 0
        %2335 = vmatprep.subr.bf16.mxu0 0
        %2336 = vmatpush1.bf16.msra.mxu0 0
        %2337 = vmatprep.subr.bf16.mxu0 0
        %2338 = vmatpush1.bf16.msra.mxu0 0
        %2339 = vmatprep.subr.bf16.mxu0 0
        %2340 = vmatpush1.bf16.msra.mxu0 0
        %2341 = vmatprep.subr.bf16.mxu0 0
        %2342 = vmatpush1.bf16.msra.mxu0 0
        %2343 = vmatprep.subr.bf16.mxu0 0
        %2344 = vmatpush1.bf16.msra.mxu0 0
        %2345 = vmatprep.subr.bf16.mxu0 0
        %2346 = vmatpush1.bf16.msra.mxu0 0
        %2347 = vmatprep.subr.bf16.mxu0 0
        %2348 = vmatpush1.bf16.msra.mxu0 0
        %2349 = vmatprep.mubr.bf16.mxu0 0
        %2350 = vmatmul.mubr.bf16.gmra.mrb[0].mxu0 %v2315
        %v2351 = vpop.f32.mrb[0].mxu0
        %v2352 = vadd.f32 %v1458, %v2351
        %v2353 = vpop.f32.mrb[0].mxu0
        %v2354 = vpop.f32.mrb[0].mxu0
        %v2355 = vpop.f32.mrb[0].mxu0
        %2356 = vdwg.mxu0
        %v2357 = vmax.f32 %v2352, 0.0
        %v2358 = vpack.c.bf16 %v2357, %v2357
        %v2360 = vsel %vm1547, %v2358, 0
        %2362 = vmatprep.subr.bf16.mxu0 0
        %2363 = vmatpush1.bf16.msra.mxu0 %v1539
        %2364 = vmatprep.subr.bf16.mxu0 0
        %2365 = vmatpush1.bf16.msra.mxu0 %v1540
        %2366 = vmatprep.subr.bf16.mxu0 0
        %2367 = vmatpush1.bf16.msra.mxu0 %v1541
        %2368 = vmatprep.subr.bf16.mxu0 0
        %2369 = vmatpush1.bf16.msra.mxu0 %v1542
        %2370 = vmatprep.subr.bf16.mxu0 0
        %2371 = vmatpush1.bf16.msra.mxu0 0
        %2372 = vmatprep.subr.bf16.mxu0 0
        %2373 = vmatpush1.bf16.msra.mxu0 0
        %2374 = vmatprep.subr.bf16.mxu0 0
        %2375 = vmatpush1.bf16.msra.mxu0 0
        %2376 = vmatprep.subr.bf16.mxu0 0
        %2377 = vmatpush1.bf16.msra.mxu0 0
        %2378 = vmatprep.subr.bf16.mxu0 0
        %2379 = vmatpush1.bf16.msra.mxu0 0
        %2380 = vmatprep.subr.bf16.mxu0 0
        %2381 = vmatpush1.bf16.msra.mxu0 0
        %2382 = vmatprep.subr.bf16.mxu0 0
        %2383 = vmatpush1.bf16.msra.mxu0 0
        %2384 = vmatprep.subr.bf16.mxu0 0
        %2385 = vmatpush1.bf16.msra.mxu0 0
        %2386 = vmatprep.subr.bf16.mxu0 0
        %2387 = vmatpush1.bf16.msra.mxu0 0
        %2388 = vmatprep.subr.bf16.mxu0 0
        %2389 = vmatpush1.bf16.msra.mxu0 0
        %2390 = vmatprep.subr.bf16.mxu0 0
        %2391 = vmatpush1.bf16.msra.mxu0 0
        %2392 = vmatprep.subr.bf16.mxu0 0
        %2393 = vmatpush1.bf16.msra.mxu0 0
        %2394 = vmatprep.mubr.bf16.mxu0 0
        %2395 = vmatmul.mubr.bf16.gmra.mrb[0].mxu0 %v2360
        %v2396 = vpop.f32.mrb[0].mxu0
        %v2397 = vadd.f32 %v1521, %v2396
        %v2398 = vpop.f32.mrb[0].mxu0
        %v2399 = vpop.f32.mrb[0].mxu0
        %v2400 = vpop.f32.mrb[0].mxu0
        %2401 = vdwg.mxu0
        %v2402 = vadd.f32 %v2397, %v2312
        %v2403 = vsel %vm846, %v2402, 0.0
        %2404 = vadd.xlane.f32.xlu0 %v2403
        %v2405 = vpop.xlane.xlu0 %2404
        %v2406 = vmul.f32 %v2405, %v1428
        %v2407 = vsub.f32 %v2402, %v2406
        %v2408 = vmul.f32 %v2407, %v2407
        %v2409 = vsel %vm846, %v2408, 0.0
        %2410 = vadd.xlane.f32.xlu0 %v2409
        %v2411 = vpop.xlane.xlu0 %2410
        %v2412 = vmul.f32 %v2411, %v1428
        %v2413 = vadd.f32 %v2412, 1e-05
        %v2414 = vrsqrt.pop %v2413
        %v2415 = vmul.f32 %v2407, %v2414
        %v2416 = vmul.f32 %v2415, %v1609
        %v2417 = vadd.f32 %v2416, %v1616
        %2418 = vst.msk [vmem:[%s1736] sm:$0xff] %vm846, %v2417
        // Predicated region
        $region101: #{tpu_custom_call.1} parent=83 // pred_check
          %p2419 = pneg %p1620
        $region102: #{tpu_custom_call.1} parent=83 // pred_check_branch
          %2421 = sbr.rel (%p2419) target = $region104
        $region103: #{tpu_custom_call.1} parent=83 // pred_region
          %v2422 = vld [vmem:[%s2] sm:$0x1]
          %v2423 = vld [vmem:[#allocation5] sm:$0x1]
          %v2424 = vsel %vm846, %v2417, 0.0
          %2425 = vadd.xlane.f32.xlu0 %v2424
          %v2426 = vpop.xlane.xlu0 %2425
          %v2427 = vmul.f32 %v2426, %v1428
          %v2428 = vsub.f32 %v2417, %v2427
          %v2429 = vmul.f32 %v2428, %v2428
          %v2430 = vsel %vm846, %v2429, 0.0
          %2431 = vadd.xlane.f32.xlu0 %v2430
          %v2432 = vpop.xlane.xlu0 %2431
          %v2433 = vmul.f32 %v2432, %v1428
          %v2434 = vadd.f32 %v2433, 1e-12
          %v2435 = vrsqrt.pop %v2434
          %v2436 = vmul.f32 %v2428, %v2435
          %v2438 = vlaneseq
          %v2439 = vshrl.u32 %v2438, 7
          %v2440 = vsub.s32 0, %v2439
          %v2441 = vrot.slane %v2422, %v2440
          %v2443 = vmul.f32 %v2436, %v2441
          %v2445 = vlaneseq
          %v2446 = vshrl.u32 %v2445, 7
          %v2447 = vsub.s32 0, %v2446
          %v2448 = vrot.slane %v2423, %v2447
          %v2450 = vadd.f32 %v2443, %v2448
          %2451 = vst.msk [vmem:[%s1736] sm:$0xff] %vm846, %v2450
          %v2453 = vsel %vm896, %v1739, 0
          %2455 = vmatprep.subr.mxu0 0.0
          %2456 = vmatpush1.msra.mxu0 %v2450
          %2457 = vmatprep.subr.mxu0 0.0
          %2458 = vmatpush1.msra.mxu0 0.0
          %2459 = vmatprep.subr.mxu0 0.0
          %2460 = vmatpush1.msra.mxu0 0.0
          %2461 = vmatprep.subr.mxu0 0.0
          %2462 = vmatpush1.msra.mxu0 0.0
          %2463 = vmatprep.subr.mxu0 0.0
          %2464 = vmatpush1.msra.mxu0 0.0
          %2465 = vmatprep.subr.mxu0 0.0
          %2466 = vmatpush1.msra.mxu0 0.0
          %2467 = vmatprep.subr.mxu0 0.0
          %2468 = vmatpush1.msra.mxu0 0.0
          %2469 = vmatprep.subr.mxu0 0.0
          %2470 = vmatpush1.msra.mxu0 0.0
          %2471 = vmatprep.subr.mxu0 0.0
          %2472 = vmatpush1.msra.mxu0 0.0
          %2473 = vmatprep.subr.mxu0 0.0
          %2474 = vmatpush1.msra.mxu0 0.0
          %2475 = vmatprep.subr.mxu0 0.0
          %2476 = vmatpush1.msra.mxu0 0.0
          %2477 = vmatprep.subr.mxu0 0.0
          %2478 = vmatpush1.msra.mxu0 0.0
          %2479 = vmatprep.subr.mxu0 0.0
          %2480 = vmatpush1.msra.mxu0 0.0
          %2481 = vmatprep.subr.mxu0 0.0
          %2482 = vmatpush1.msra.mxu0 0.0
          %2483 = vmatprep.subr.mxu0 0.0
          %2484 = vmatpush1.msra.mxu0 0.0
          %2485 = vmatprep.subr.mxu0 0.0
          %2486 = vmatpush1.msra.mxu0 0.0
          %2487 = vmatprep.subr.mxu0 0.0
          %2488 = vmatpush1.msra.mxu0 0.0
          %2489 = vmatprep.subr.mxu0 0.0
          %2490 = vmatpush1.msra.mxu0 0.0
          %2491 = vmatprep.subr.mxu0 0.0
          %2492 = vmatpush1.msra.mxu0 0.0
          %2493 = vmatprep.subr.mxu0 0.0
          %2494 = vmatpush1.msra.mxu0 0.0
          %2495 = vmatprep.subr.mxu0 0.0
          %2496 = vmatpush1.msra.mxu0 0.0
          %2497 = vmatprep.subr.mxu0 0.0
          %2498 = vmatpush1.msra.mxu0 0.0
          %2499 = vmatprep.subr.mxu0 0.0
          %2500 = vmatpush1.msra.mxu0 0.0
          %2501 = vmatprep.subr.mxu0 0.0
          %2502 = vmatpush1.msra.mxu0 0.0
          %2503 = vmatprep.subr.mxu0 0.0
          %2504 = vmatpush1.msra.mxu0 0.0
          %2505 = vmatprep.subr.mxu0 0.0
          %2506 = vmatpush1.msra.mxu0 0.0
          %2507 = vmatprep.subr.mxu0 0.0
          %2508 = vmatpush1.msra.mxu0 0.0
          %2509 = vmatprep.subr.mxu0 0.0
          %2510 = vmatpush1.msra.mxu0 0.0
          %2511 = vmatprep.subr.mxu0 0.0
          %2512 = vmatpush1.msra.mxu0 0.0
          %2513 = vmatprep.subr.mxu0 0.0
          %2514 = vmatpush1.msra.mxu0 0.0
          %2515 = vmatprep.subr.mxu0 0.0
          %2516 = vmatpush1.msra.mxu0 0.0
          %2517 = vmatprep.subr.mxu0 0.0
          %2518 = vmatpush1.msra.mxu0 0.0
          %2519 = vmatprep.mubr.f32.mxu0 0.0
          %2520 = vmatmul.mubr.f32.gmra.mrb[0].mxu0 %v2453
          %v2521 = vpop.f32.mrb[0].mxu0
          %v2522 = vadd.f32 0.0, %v2521
          %v2523 = vpop.f32.mrb[0].mxu0
          %2524 = vdwg.mxu0
          %vm2525 = vcmask 57344
          %v2526 = vsel %vm2525, %v1739, 0.0
          %2527 = vadd.xlane.f32.xlu0 %v2526
          %v2528 = vpop.xlane.xlu0 %2527
          %v2529 = vmax.f32 %v2528, 1e-09
          %v2530 = vrcp.pop %v2529
          %v2531 = vmul.f32 %v2522, %v2530
          %s2532 = scalar_lea.vmem [#allocation8], 1
          %vm2533 = vcmask 253952
          %2534 = vst.msk [vmem:[%s2532] sm:$0x1] %vm2533, %v2531
        $region104: #{tpu_custom_call.1} parent=83 // pred_fallthru
          _
        // Predicated region
        $region105: #{tpu_custom_call.1} parent=83 // pred_check
          %p2535 = pneg %p469
        $region106: #{tpu_custom_call.1} parent=83 // pred_check_branch
          %2537 = sbr.rel (%p2535) target = $region108
        $region107: #{tpu_custom_call.1} parent=83 // pred_region
          %s2538 = smul.u32 2, %s37
          %s2540 = ssub.s32 256, 256
          %2541 = vsyncadd [#allocation4], %s2540
          %s2542 = smul.addr %s2538, 128
          %s2543 = scalar_lea.hbm %s16, %s2542
          %s2544 = sshll.u32 [#allocation7], 4
          %s2545 = int_to_ptr.vmem [resolvable:$true] %s2544
          %2550 = dma.vmem_to_hbm [thread:$0]  %s2545, 256, %s2543, [#allocation4], 128, 128, 8
        $region108: #{tpu_custom_call.1} parent=83 // pred_fallthru
          _
        // Predicated region
        $region109: #{tpu_custom_call.1} parent=83 // pred_check
          %p2551 = pneg %p495
        $region110: #{tpu_custom_call.1} parent=83 // pred_check_branch
          %2553 = sbr.rel (%p2551) target = $region112
        $region111: #{tpu_custom_call.1} parent=83 // pred_region
          %s2554 = smul.u32 2, %s37
          %s2556 = ssub.s32 32, 32
          %2557 = vsyncadd [#allocation9], %s2556
          %s2558 = smul.addr %s2554, 16
          %s2559 = scalar_lea.hbm %s17, %s2558
          %s2560 = sshll.u32 [#allocation8], 4
          %s2561 = int_to_ptr.vmem [resolvable:$true] %s2560
          %2566 = dma.vmem_to_hbm [thread:$0]  %s2561, 32, %s2559, [#allocation9], 16, 16, 1
        $region112: #{tpu_custom_call.1} parent=83 // pred_fallthru
          _
        // Predicated region
        $region113: #{tpu_custom_call.1} parent=83 // pred_check
          %p2567 = pneg %p469
        $region114: #{tpu_custom_call.1} parent=83 // pred_check_branch
          %2569 = sbr.rel (%p2567) target = $region116
        $region115: #{tpu_custom_call.1} parent=83 // pred_region
          %2570 = dma.done [#allocation4], 256
        $region116: #{tpu_custom_call.1} parent=83 // pred_fallthru
          _
        // Predicated region
        $region117: #{tpu_custom_call.1} parent=83 // pred_check
          %p2571 = pneg %p495
        $region118: #{tpu_custom_call.1} parent=83 // pred_check_branch
          %2573 = sbr.rel (%p2571) target = $region120
        $region119: #{tpu_custom_call.1} parent=83 // pred_region
          %2574 = dma.done [#allocation9], 32
        $region120: #{tpu_custom_call.1} parent=83 // pred_fallthru
          _
      $region84: #{tpu_custom_call.1} parent=5 // pred_fallthru
        _
      %p2575 = scmp.le.s32.totalorder 2, %s28
      // Predicated region
      $region121: #{tpu_custom_call.1} parent=5 // pred_check
        %p2576 = pneg %p2575
      $region122: #{tpu_custom_call.1} parent=5 // pred_check_branch
        %2578 = sbr.rel (%p2576) target = $region124
      $region123: #{tpu_custom_call.1} parent=5 // pred_region
        %s2579 = ssub.s32 %s28, 2
      $region124: #{tpu_custom_call.1} parent=5 // pred_fallthru
        _
    $region6: #{tpu_custom_call.1} parent=1 // loop_footer
      %s32 = sadd.s32 1, %s28
    $region7: #{tpu_custom_call.1} parent=1 // loop_footer_branch
      %27 = sbr.rel target = $region3
    $region8: #{tpu_custom_call.1} parent=1 // loop_exit
      _
    %2580 = vsyncpa [#allocation3], 1
    %s2581 = scalar_lea.sflag [#allocation3], 1
    %2582 = vsyncpa %s2581, 1
    %2583 = vsyncpa [#allocation6], 1
    %2584 = vsyncpa [#allocation4], 1
    %s2585 = scalar_lea.sflag [#allocation4], 1
    %2586 = vsyncpa %s2585, 1
    %2587 = vsyncpa [#allocation9], 1

</llo_original>
